<compile_context>
chip_gen: v7x
topology: tpu7x:2x2x1
jax: 0.10.0
libtpu: 0.0.40
codegen_flags: <defaults>
</compile_context>

<pallas_src>
import functools
import math

import jax
import jax.numpy as jnp
from jax.experimental import pallas as pl
from jax.experimental.pallas import tpu as pltpu


def _fd_conv_kernel(w_ref, x_ref, o_ref, xpad_ref, *,
                    K, pad, H, W, cin, cout, groups, b_blk, wseg, wacc):
    """One batch block of a 'same'-zero-padded KxK grouped conv in NCHW.

    w_ref    : SMEM (cout * (cin//groups) * K * K,) f32 effective stencil
               weights (scalar-prefetched), flattened row-major over
               (co, ci_in_group, kh, kw).
    x_ref    : VMEM (b_blk, cin, H, W) input block, native NCHW layout.
    o_ref    : VMEM (b_blk, cout, H, W) output block.
    xpad_ref : VMEM (cin, H + 2*pad, b_blk*wseg) f32 staging buffer.  Image b
               lives at rows [pad, pad+H), cols [b*wseg+pad, b*wseg+pad+W);
               the 2*pad-wide zero gaps between images make one lane-packed
               sweep equivalent to b_blk independent 'same'-padded convs.
    """
    cin_g = cin // groups
    cout_g = cout // groups
    Hp = H + 2 * pad
    wtot = b_blk * wseg
    f32 = jnp.float32

    # ---- Stage the batch block into the lane-packed, zero-haloed buffer ----
    # Halo-only zeroing: top/bottom bands + per-image left/right column strips.
    xpad_ref[:, 0:pad, :] = jnp.zeros((cin, pad, wtot), f32)
    xpad_ref[:, pad + H:Hp, :] = jnp.zeros((cin, pad, wtot), f32)
    for b in range(b_blk):
        base = b * wseg
        xpad_ref[:, pad:pad + H, base:base + pad] = jnp.zeros((cin, H, pad), f32)
        xpad_ref[:, pad:pad + H, base + pad + W:base + wseg] = (
            jnp.zeros((cin, H, pad), f32))
        # Cast once at copy-in; every stencil tap below is already f32.
        xpad_ref[:, pad:pad + H, base + pad:base + pad + W] = (
            x_ref[b].astype(f32))

    # ---- Grouped KxK stencil as VPU broadcast-FMAs over lane-packed planes --
    for g in range(groups):
        accs = [jnp.zeros((H, wacc), f32) for _ in range(cout_g)]
        for ci_g in range(cin_g):
            ci = g * cin_g + ci_g
            # Hoist the kw lane-shift out of the kh loop: K column-shifted,
            # full-padded-height planes loaded once per input channel; the kh
            # taps are cheap sublane-offset slices of these values.
            planes = [xpad_ref[ci, :, kw:kw + wacc] for kw in range(K)]
            for kh in range(K):
                for kw in range(K):
                    tap = planes[kw][kh:kh + H, :]
                    for j in range(cout_g):
                        co = g * cout_g + j
                        widx = ((co * cin_g + ci_g) * K + kh) * K + kw
                        # Tiny Cin/Cout -> VPU broadcast-FMA (skip the MXU).
                        accs[j] = accs[j] + tap * w_ref[widx]
        # Finalize this group's outputs (bounds accumulator live ranges to
        # cout_g planes), un-packing the batch lanes.
        for j in range(cout_g):
            co = g * cout_g + j
            acc = accs[j]
            for b in range(b_blk):
                o_ref[b, co, :, :] = (
                    acc[:, b * wseg:b * wseg + W].astype(o_ref.dtype))


def finite_difference_conv(x, weights, grid_width, *, groups=1):
    """x: (N, Cin, H, W); weights: (Cout, Cin//groups, K, K); returns
    conv2d(x, (weights - mean(weights)) / grid_width, groups, padding='same')."""
    N, Cin, H, W = x.shape
    Cout, Cin_g, K, K2 = weights.shape
    assert K == K2 and K % 2 == 1, "kernel size must be odd"
    assert Cin_g * groups == Cin and Cout % groups == 0
    pad = (K - 1) // 2

    # Effective finite-difference stencil (tiny tensor; done once outside the
    # kernel).  Global mean, exactly as in the reference module.
    w_eff = (weights - jnp.mean(weights)) / grid_width
    w_flat = w_eff.reshape(-1).astype(jnp.float32)

    # Batch-blocking: pack b_blk images along the lane axis of the staging
    # buffer (target ~128 active lanes), largest divisor of N.
    wseg = W + 2 * pad
    lane_target = max(1, 128 // wseg) if wseg <= 128 else 1
    b_target = max(1, min(N, lane_target, 8))
    b_blk = 1
    for b in range(b_target, 0, -1):
        if N % b == 0:
            b_blk = b
            break
    wtot = b_blk * wseg
    wacc = wtot - 2 * pad          # valid accumulator width (lane-packed)
    Hp = H + 2 * pad

    kernel = functools.partial(
        _fd_conv_kernel, K=K, pad=pad, H=H, W=W, cin=Cin, cout=Cout,
        groups=groups, b_blk=b_blk, wseg=wseg, wacc=wacc)

    return pl.pallas_call(
        kernel,
        out_shape=jax.ShapeDtypeStruct((N, Cout, H, W), x.dtype),
        grid_spec=pltpu.PrefetchScalarGridSpec(
            # Stencil weights are scalar-prefetched: one up-front SMEM copy.
            num_scalar_prefetch=1,
            grid=(N // b_blk,),
            in_specs=[
                pl.BlockSpec((b_blk, Cin, H, W), lambda n, w: (n, 0, 0, 0)),
            ],
            out_specs=pl.BlockSpec((b_blk, Cout, H, W),
                                   lambda n, w: (n, 0, 0, 0)),
            scratch_shapes=[pltpu.VMEM((Cin, Hp, wtot), jnp.float32)],
        ),
        compiler_params=pltpu.CompilerParams(
            dimension_semantics=("parallel",),
            # Working set today is ~10s of KiB; re-derive per generation once
            # batch/spatial tiles grow (cap ~48 MiB on v7x, ~100 MiB v5e/v6e).
            vmem_limit_bytes=32 * 1024 * 1024),
    )(w_flat, x)


def _reference(x, weights, grid_width, groups):
    """Pure-JAX reference matching F.conv2d(..., groups, padding='same')."""
    w_eff = (weights - jnp.mean(weights)) / grid_width
    return jax.lax.conv_general_dilated(
        x, w_eff, window_strides=(1, 1), padding="SAME",
        dimension_numbers=("NCHW", "OIHW", "NCHW"),
        feature_group_count=groups)


if __name__ == "__main__":
    key = jax.random.PRNGKey(0)

    def make_case(k, N, Cin, Cout, H, W, K, groups):
        k1, k2 = jax.random.split(k)
        x = jax.random.normal(k1, (N, Cin, H, W), dtype=jnp.float32)
        # Matches the module's init: uniform in [-kc, kc).
        kc = math.sqrt(groups / (Cin * K * K))
        w = jax.random.uniform(k2, (Cout, Cin // groups, K, K),
                               dtype=jnp.float32) * (2.0 * kc) - kc
        return x, w

    cases = [
        dict(N=2, Cin=4, Cout=8, H=16, W=16, K=3, groups=1,
             grid_width=1.0 / 16.0),
        dict(N=2, Cin=4, Cout=8, H=16, W=16, K=5, groups=2,
             grid_width=0.25),
    ]
    keys = jax.random.split(key, len(cases))

    for cfg, k in zip(cases, keys):
        x, w = make_case(k, cfg["N"], cfg["Cin"], cfg["Cout"], cfg["H"],
                         cfg["W"], cfg["K"], cfg["groups"])
        out = finite_difference_conv(x, w, cfg["grid_width"],
                                     groups=cfg["groups"])
        out = jax.block_until_ready(out)

        ref = _reference(x, w, cfg["grid_width"], cfg["groups"])
        assert out.shape == (cfg["N"], cfg["Cout"], cfg["H"], cfg["W"]), out.shape
        max_err = float(jnp.max(jnp.abs(out - ref)))
        assert jnp.allclose(out, ref, atol=1e-4, rtol=1e-4), max_err

    print("KERNEL_OK")
</pallas_src>

<mosaic_0001>
module attributes {stable_mosaic.version = 11 : i64} {
  func.func @_fd_conv_kernel(%arg0: i32, %arg1: memref<288xf32, #tpu.memory_space<smem>>, %arg2: memref<2x4x16x16xf32, #tpu.memory_space<vmem>>, %arg3: memref<2x8x16x16xf32, #tpu.memory_space<vmem>>, %arg4: memref<4x18x36xf32, #tpu.memory_space<vmem>>) attributes {dimension_semantics = [#tpu.dimension_semantics<parallel>], iteration_bounds = array<i64: 1>, scalar_prefetch = 1 : i64, scratch_operands = 1 : i64, tpu.core_type = #tpu.core_type<tc>, window_params = [{transform_indices = @transform_0, window_bounds = array<i64: 2, 4, 16, 16>}, {transform_indices = @transform_1, window_bounds = array<i64: 2, 8, 16, 16>}]} {
    %cst = arith.constant 0.000000e+00 : f32
    %0 = vector.broadcast %cst : f32 to vector<4x1x36xf32>
    %c0 = arith.constant 0 : index
    %c0_0 = arith.constant 0 : index
    %c0_1 = arith.constant 0 : index
    %1 = vector.load %arg4[%c0, %c0_0, %c0_1] : memref<4x18x36xf32, #tpu.memory_space<vmem>>, vector<4x1x36xf32>
    tpu.vector_store %arg4[%c0, %c0_0, %c0_1], %0 {strides = array<i32>} : memref<4x18x36xf32, #tpu.memory_space<vmem>>, vector<4x1x36xf32>,
    %cst_2 = arith.constant 0.000000e+00 : f32
    %2 = vector.broadcast %cst_2 : f32 to vector<4x1x36xf32>
    %c0_3 = arith.constant 0 : index
    %c17 = arith.constant 17 : index
    %c0_4 = arith.constant 0 : index
    %3 = vector.load %arg4[%c0_3, %c17, %c0_4] : memref<4x18x36xf32, #tpu.memory_space<vmem>>, vector<4x1x36xf32>
    tpu.vector_store %arg4[%c0_3, %c17, %c0_4], %2 {strides = array<i32>} : memref<4x18x36xf32, #tpu.memory_space<vmem>>, vector<4x1x36xf32>,
    %cst_5 = arith.constant 0.000000e+00 : f32
    %4 = vector.broadcast %cst_5 : f32 to vector<4x16x1xf32>
    %c0_6 = arith.constant 0 : index
    %c1 = arith.constant 1 : index
    %c0_7 = arith.constant 0 : index
    %5 = vector.load %arg4[%c0_6, %c1, %c0_7] : memref<4x18x36xf32, #tpu.memory_space<vmem>>, vector<4x16x1xf32>
    tpu.vector_store %arg4[%c0_6, %c1, %c0_7], %4 {strides = array<i32>} : memref<4x18x36xf32, #tpu.memory_space<vmem>>, vector<4x16x1xf32>,
    %cst_8 = arith.constant 0.000000e+00 : f32
    %6 = vector.broadcast %cst_8 : f32 to vector<4x16x1xf32>
    %c0_9 = arith.constant 0 : index
    %c1_10 = arith.constant 1 : index
    %c17_11 = arith.constant 17 : index
    %7 = vector.load %arg4[%c0_9, %c1_10, %c17_11] : memref<4x18x36xf32, #tpu.memory_space<vmem>>, vector<4x16x1xf32>
    tpu.vector_store %arg4[%c0_9, %c1_10, %c17_11], %6 {strides = array<i32>} : memref<4x18x36xf32, #tpu.memory_space<vmem>>, vector<4x16x1xf32>,
    %c0_12 = arith.constant 0 : index
    %c0_13 = arith.constant 0 : index
    %c0_14 = arith.constant 0 : index
    %c0_15 = arith.constant 0 : index
    %8 = vector.load %arg2[%c0_12, %c0_13, %c0_14, %c0_15] : memref<2x4x16x16xf32, #tpu.memory_space<vmem>>, vector<1x4x16x16xf32>
    %9 = vector.shape_cast %8 : vector<1x4x16x16xf32> to vector<4x16x16xf32>
    %c0_16 = arith.constant 0 : index
    %c1_17 = arith.constant 1 : index
    %c1_18 = arith.constant 1 : index
    %10 = vector.load %arg4[%c0_16, %c1_17, %c1_18] : memref<4x18x36xf32, #tpu.memory_space<vmem>>, vector<4x16x16xf32>
    tpu.vector_store %arg4[%c0_16, %c1_17, %c1_18], %9 {strides = array<i32>} : memref<4x18x36xf32, #tpu.memory_space<vmem>>, vector<4x16x16xf32>,
    %cst_19 = arith.constant 0.000000e+00 : f32
    %11 = vector.broadcast %cst_19 : f32 to vector<4x16x1xf32>
    %c0_20 = arith.constant 0 : index
    %c1_21 = arith.constant 1 : index
    %c18 = arith.constant 18 : index
    %12 = vector.load %arg4[%c0_20, %c1_21, %c18] : memref<4x18x36xf32, #tpu.memory_space<vmem>>, vector<4x16x1xf32>
    tpu.vector_store %arg4[%c0_20, %c1_21, %c18], %11 {strides = array<i32>} : memref<4x18x36xf32, #tpu.memory_space<vmem>>, vector<4x16x1xf32>,
    %cst_22 = arith.constant 0.000000e+00 : f32
    %13 = vector.broadcast %cst_22 : f32 to vector<4x16x1xf32>
    %c0_23 = arith.constant 0 : index
    %c1_24 = arith.constant 1 : index
    %c35 = arith.constant 35 : index
    %14 = vector.load %arg4[%c0_23, %c1_24, %c35] : memref<4x18x36xf32, #tpu.memory_space<vmem>>, vector<4x16x1xf32>
    tpu.vector_store %arg4[%c0_23, %c1_24, %c35], %13 {strides = array<i32>} : memref<4x18x36xf32, #tpu.memory_space<vmem>>, vector<4x16x1xf32>,
    %c1_25 = arith.constant 1 : index
    %c0_26 = arith.constant 0 : index
    %c0_27 = arith.constant 0 : index
    %c0_28 = arith.constant 0 : index
    %15 = vector.load %arg2[%c1_25, %c0_26, %c0_27, %c0_28] : memref<2x4x16x16xf32, #tpu.memory_space<vmem>>, vector<1x4x16x16xf32>
    %16 = vector.shape_cast %15 : vector<1x4x16x16xf32> to vector<4x16x16xf32>
    %c0_29 = arith.constant 0 : index
    %c1_30 = arith.constant 1 : index
    %c19 = arith.constant 19 : index
    %17 = vector.load %arg4[%c0_29, %c1_30, %c19] : memref<4x18x36xf32, #tpu.memory_space<vmem>>, vector<4x16x16xf32>
    tpu.vector_store %arg4[%c0_29, %c1_30, %c19], %16 {strides = array<i32>} : memref<4x18x36xf32, #tpu.memory_space<vmem>>, vector<4x16x16xf32>,
    %cst_31 = arith.constant 0.000000e+00 : f32
    %18 = vector.broadcast %cst_31 : f32 to vector<16x34xf32>
    %cst_32 = arith.constant 0.000000e+00 : f32
    %19 = vector.broadcast %cst_32 : f32 to vector<16x34xf32>
    %cst_33 = arith.constant 0.000000e+00 : f32
    %20 = vector.broadcast %cst_33 : f32 to vector<16x34xf32>
    %cst_34 = arith.constant 0.000000e+00 : f32
    %21 = vector.broadcast %cst_34 : f32 to vector<16x34xf32>
    %cst_35 = arith.constant 0.000000e+00 : f32
    %22 = vector.broadcast %cst_35 : f32 to vector<16x34xf32>
    %cst_36 = arith.constant 0.000000e+00 : f32
    %23 = vector.broadcast %cst_36 : f32 to vector<16x34xf32>
    %cst_37 = arith.constant 0.000000e+00 : f32
    %24 = vector.broadcast %cst_37 : f32 to vector<16x34xf32>
    %cst_38 = arith.constant 0.000000e+00 : f32
    %25 = vector.broadcast %cst_38 : f32 to vector<16x34xf32>
    %c0_39 = arith.constant 0 : index
    %c0_40 = arith.constant 0 : index
    %c0_41 = arith.constant 0 : index
    %26 = vector.load %arg4[%c0_39, %c0_40, %c0_41] : memref<4x18x36xf32, #tpu.memory_space<vmem>>, vector<1x18x34xf32>
    %27 = vector.shape_cast %26 : vector<1x18x34xf32> to vector<18x34xf32>
    %c0_42 = arith.constant 0 : index
    %c0_43 = arith.constant 0 : index
    %c1_44 = arith.constant 1 : index
    %28 = vector.load %arg4[%c0_42, %c0_43, %c1_44] : memref<4x18x36xf32, #tpu.memory_space<vmem>>, vector<1x18x34xf32>
    %29 = vector.shape_cast %28 : vector<1x18x34xf32> to vector<18x34xf32>
    %c0_45 = arith.constant 0 : index
    %c0_46 = arith.constant 0 : index
    %c2 = arith.constant 2 : index
    %30 = vector.load %arg4[%c0_45, %c0_46, %c2] : memref<4x18x36xf32, #tpu.memory_space<vmem>>, vector<1x18x34xf32>
    %31 = vector.shape_cast %30 : vector<1x18x34xf32> to vector<18x34xf32>
    %32 = vector.extract_strided_slice %27 {offsets = [0, 0], sizes = [16, 34], strides = [1, 1]} : vector<18x34xf32> to vector<16x34xf32>
    %c0_47 = arith.constant 0 : index
    %33 = memref.load %arg1[%c0_47] : memref<288xf32, #tpu.memory_space<smem>>
    %34 = vector.broadcast %33 : f32 to vector<16x34xf32>
    %35 = arith.mulf %32, %34 : vector<16x34xf32>
    %36 = arith.addf %18, %35 : vector<16x34xf32>
    %c36 = arith.constant 36 : index
    %37 = memref.load %arg1[%c36] : memref<288xf32, #tpu.memory_space<smem>>
    %38 = vector.broadcast %37 : f32 to vector<16x34xf32>
    %39 = arith.mulf %32, %38 : vector<16x34xf32>
    %40 = arith.addf %19, %39 : vector<16x34xf32>
    %c72 = arith.constant 72 : index
    %41 = memref.load %arg1[%c72] : memref<288xf32, #tpu.memory_space<smem>>
    %42 = vector.broadcast %41 : f32 to vector<16x34xf32>
    %43 = arith.mulf %32, %42 : vector<16x34xf32>
    %44 = arith.addf %20, %43 : vector<16x34xf32>
    %c108 = arith.constant 108 : index
    %45 = memref.load %arg1[%c108] : memref<288xf32, #tpu.memory_space<smem>>
    %46 = vector.broadcast %45 : f32 to vector<16x34xf32>
    %47 = arith.mulf %32, %46 : vector<16x34xf32>
    %48 = arith.addf %21, %47 : vector<16x34xf32>
    %c144 = arith.constant 144 : index
    %49 = memref.load %arg1[%c144] : memref<288xf32, #tpu.memory_space<smem>>
    %50 = vector.broadcast %49 : f32 to vector<16x34xf32>
    %51 = arith.mulf %32, %50 : vector<16x34xf32>
    %52 = arith.addf %22, %51 : vector<16x34xf32>
    %c180 = arith.constant 180 : index
    %53 = memref.load %arg1[%c180] : memref<288xf32, #tpu.memory_space<smem>>
    %54 = vector.broadcast %53 : f32 to vector<16x34xf32>
    %55 = arith.mulf %32, %54 : vector<16x34xf32>
    %56 = arith.addf %23, %55 : vector<16x34xf32>
    %c216 = arith.constant 216 : index
    %57 = memref.load %arg1[%c216] : memref<288xf32, #tpu.memory_space<smem>>
    %58 = vector.broadcast %57 : f32 to vector<16x34xf32>
    %59 = arith.mulf %32, %58 : vector<16x34xf32>
    %60 = arith.addf %24, %59 : vector<16x34xf32>
    %c252 = arith.constant 252 : index
    %61 = memref.load %arg1[%c252] : memref<288xf32, #tpu.memory_space<smem>>
    %62 = vector.broadcast %61 : f32 to vector<16x34xf32>
    %63 = arith.mulf %32, %62 : vector<16x34xf32>
    %64 = arith.addf %25, %63 : vector<16x34xf32>
    %65 = vector.extract_strided_slice %29 {offsets = [0, 0], sizes = [16, 34], strides = [1, 1]} : vector<18x34xf32> to vector<16x34xf32>
    %c1_48 = arith.constant 1 : index
    %66 = memref.load %arg1[%c1_48] : memref<288xf32, #tpu.memory_space<smem>>
    %67 = vector.broadcast %66 : f32 to vector<16x34xf32>
    %68 = arith.mulf %65, %67 : vector<16x34xf32>
    %69 = arith.addf %36, %68 : vector<16x34xf32>
    %c37 = arith.constant 37 : index
    %70 = memref.load %arg1[%c37] : memref<288xf32, #tpu.memory_space<smem>>
    %71 = vector.broadcast %70 : f32 to vector<16x34xf32>
    %72 = arith.mulf %65, %71 : vector<16x34xf32>
    %73 = arith.addf %40, %72 : vector<16x34xf32>
    %c73 = arith.constant 73 : index
    %74 = memref.load %arg1[%c73] : memref<288xf32, #tpu.memory_space<smem>>
    %75 = vector.broadcast %74 : f32 to vector<16x34xf32>
    %76 = arith.mulf %65, %75 : vector<16x34xf32>
    %77 = arith.addf %44, %76 : vector<16x34xf32>
    %c109 = arith.constant 109 : index
    %78 = memref.load %arg1[%c109] : memref<288xf32, #tpu.memory_space<smem>>
    %79 = vector.broadcast %78 : f32 to vector<16x34xf32>
    %80 = arith.mulf %65, %79 : vector<16x34xf32>
    %81 = arith.addf %48, %80 : vector<16x34xf32>
    %c145 = arith.constant 145 : index
    %82 = memref.load %arg1[%c145] : memref<288xf32, #tpu.memory_space<smem>>
    %83 = vector.broadcast %82 : f32 to vector<16x34xf32>
    %84 = arith.mulf %65, %83 : vector<16x34xf32>
    %85 = arith.addf %52, %84 : vector<16x34xf32>
    %c181 = arith.constant 181 : index
    %86 = memref.load %arg1[%c181] : memref<288xf32, #tpu.memory_space<smem>>
    %87 = vector.broadcast %86 : f32 to vector<16x34xf32>
    %88 = arith.mulf %65, %87 : vector<16x34xf32>
    %89 = arith.addf %56, %88 : vector<16x34xf32>
    %c217 = arith.constant 217 : index
    %90 = memref.load %arg1[%c217] : memref<288xf32, #tpu.memory_space<smem>>
    %91 = vector.broadcast %90 : f32 to vector<16x34xf32>
    %92 = arith.mulf %65, %91 : vector<16x34xf32>
    %93 = arith.addf %60, %92 : vector<16x34xf32>
    %c253 = arith.constant 253 : index
    %94 = memref.load %arg1[%c253] : memref<288xf32, #tpu.memory_space<smem>>
    %95 = vector.broadcast %94 : f32 to vector<16x34xf32>
    %96 = arith.mulf %65, %95 : vector<16x34xf32>
    %97 = arith.addf %64, %96 : vector<16x34xf32>
    %98 = vector.extract_strided_slice %31 {offsets = [0, 0], sizes = [16, 34], strides = [1, 1]} : vector<18x34xf32> to vector<16x34xf32>
    %c2_49 = arith.constant 2 : index
    %99 = memref.load %arg1[%c2_49] : memref<288xf32, #tpu.memory_space<smem>>
    %100 = vector.broadcast %99 : f32 to vector<16x34xf32>
    %101 = arith.mulf %98, %100 : vector<16x34xf32>
    %102 = arith.addf %69, %101 : vector<16x34xf32>
    %c38 = arith.constant 38 : index
    %103 = memref.load %arg1[%c38] : memref<288xf32, #tpu.memory_space<smem>>
    %104 = vector.broadcast %103 : f32 to vector<16x34xf32>
    %105 = arith.mulf %98, %104 : vector<16x34xf32>
    %106 = arith.addf %73, %105 : vector<16x34xf32>
    %c74 = arith.constant 74 : index
    %107 = memref.load %arg1[%c74] : memref<288xf32, #tpu.memory_space<smem>>
    %108 = vector.broadcast %107 : f32 to vector<16x34xf32>
    %109 = arith.mulf %98, %108 : vector<16x34xf32>
    %110 = arith.addf %77, %109 : vector<16x34xf32>
    %c110 = arith.constant 110 : index
    %111 = memref.load %arg1[%c110] : memref<288xf32, #tpu.memory_space<smem>>
    %112 = vector.broadcast %111 : f32 to vector<16x34xf32>
    %113 = arith.mulf %98, %112 : vector<16x34xf32>
    %114 = arith.addf %81, %113 : vector<16x34xf32>
    %c146 = arith.constant 146 : index
    %115 = memref.load %arg1[%c146] : memref<288xf32, #tpu.memory_space<smem>>
    %116 = vector.broadcast %115 : f32 to vector<16x34xf32>
    %117 = arith.mulf %98, %116 : vector<16x34xf32>
    %118 = arith.addf %85, %117 : vector<16x34xf32>
    %c182 = arith.constant 182 : index
    %119 = memref.load %arg1[%c182] : memref<288xf32, #tpu.memory_space<smem>>
    %120 = vector.broadcast %119 : f32 to vector<16x34xf32>
    %121 = arith.mulf %98, %120 : vector<16x34xf32>
    %122 = arith.addf %89, %121 : vector<16x34xf32>
    %c218 = arith.constant 218 : index
    %123 = memref.load %arg1[%c218] : memref<288xf32, #tpu.memory_space<smem>>
    %124 = vector.broadcast %123 : f32 to vector<16x34xf32>
    %125 = arith.mulf %98, %124 : vector<16x34xf32>
    %126 = arith.addf %93, %125 : vector<16x34xf32>
    %c254 = arith.constant 254 : index
    %127 = memref.load %arg1[%c254] : memref<288xf32, #tpu.memory_space<smem>>
    %128 = vector.broadcast %127 : f32 to vector<16x34xf32>
    %129 = arith.mulf %98, %128 : vector<16x34xf32>
    %130 = arith.addf %97, %129 : vector<16x34xf32>
    %131 = vector.extract_strided_slice %27 {offsets = [1, 0], sizes = [16, 34], strides = [1, 1]} : vector<18x34xf32> to vector<16x34xf32>
    %c3 = arith.constant 3 : index
    %132 = memref.load %arg1[%c3] : memref<288xf32, #tpu.memory_space<smem>>
    %133 = vector.broadcast %132 : f32 to vector<16x34xf32>
    %134 = arith.mulf %131, %133 : vector<16x34xf32>
    %135 = arith.addf %102, %134 : vector<16x34xf32>
    %c39 = arith.constant 39 : index
    %136 = memref.load %arg1[%c39] : memref<288xf32, #tpu.memory_space<smem>>
    %137 = vector.broadcast %136 : f32 to vector<16x34xf32>
    %138 = arith.mulf %131, %137 : vector<16x34xf32>
    %139 = arith.addf %106, %138 : vector<16x34xf32>
    %c75 = arith.constant 75 : index
    %140 = memref.load %arg1[%c75] : memref<288xf32, #tpu.memory_space<smem>>
    %141 = vector.broadcast %140 : f32 to vector<16x34xf32>
    %142 = arith.mulf %131, %141 : vector<16x34xf32>
    %143 = arith.addf %110, %142 : vector<16x34xf32>
    %c111 = arith.constant 111 : index
    %144 = memref.load %arg1[%c111] : memref<288xf32, #tpu.memory_space<smem>>
    %145 = vector.broadcast %144 : f32 to vector<16x34xf32>
    %146 = arith.mulf %131, %145 : vector<16x34xf32>
    %147 = arith.addf %114, %146 : vector<16x34xf32>
    %c147 = arith.constant 147 : index
    %148 = memref.load %arg1[%c147] : memref<288xf32, #tpu.memory_space<smem>>
    %149 = vector.broadcast %148 : f32 to vector<16x34xf32>
    %150 = arith.mulf %131, %149 : vector<16x34xf32>
    %151 = arith.addf %118, %150 : vector<16x34xf32>
    %c183 = arith.constant 183 : index
    %152 = memref.load %arg1[%c183] : memref<288xf32, #tpu.memory_space<smem>>
    %153 = vector.broadcast %152 : f32 to vector<16x34xf32>
    %154 = arith.mulf %131, %153 : vector<16x34xf32>
    %155 = arith.addf %122, %154 : vector<16x34xf32>
    %c219 = arith.constant 219 : index
    %156 = memref.load %arg1[%c219] : memref<288xf32, #tpu.memory_space<smem>>
    %157 = vector.broadcast %156 : f32 to vector<16x34xf32>
    %158 = arith.mulf %131, %157 : vector<16x34xf32>
    %159 = arith.addf %126, %158 : vector<16x34xf32>
    %c255 = arith.constant 255 : index
    %160 = memref.load %arg1[%c255] : memref<288xf32, #tpu.memory_space<smem>>
    %161 = vector.broadcast %160 : f32 to vector<16x34xf32>
    %162 = arith.mulf %131, %161 : vector<16x34xf32>
    %163 = arith.addf %130, %162 : vector<16x34xf32>
    %164 = vector.extract_strided_slice %29 {offsets = [1, 0], sizes = [16, 34], strides = [1, 1]} : vector<18x34xf32> to vector<16x34xf32>
    %c4 = arith.constant 4 : index
    %165 = memref.load %arg1[%c4] : memref<288xf32, #tpu.memory_space<smem>>
    %166 = vector.broadcast %165 : f32 to vector<16x34xf32>
    %167 = arith.mulf %164, %166 : vector<16x34xf32>
    %168 = arith.addf %135, %167 : vector<16x34xf32>
    %c40 = arith.constant 40 : index
    %169 = memref.load %arg1[%c40] : memref<288xf32, #tpu.memory_space<smem>>
    %170 = vector.broadcast %169 : f32 to vector<16x34xf32>
    %171 = arith.mulf %164, %170 : vector<16x34xf32>
    %172 = arith.addf %139, %171 : vector<16x34xf32>
    %c76 = arith.constant 76 : index
    %173 = memref.load %arg1[%c76] : memref<288xf32, #tpu.memory_space<smem>>
    %174 = vector.broadcast %173 : f32 to vector<16x34xf32>
    %175 = arith.mulf %164, %174 : vector<16x34xf32>
    %176 = arith.addf %143, %175 : vector<16x34xf32>
    %c112 = arith.constant 112 : index
    %177 = memref.load %arg1[%c112] : memref<288xf32, #tpu.memory_space<smem>>
    %178 = vector.broadcast %177 : f32 to vector<16x34xf32>
    %179 = arith.mulf %164, %178 : vector<16x34xf32>
    %180 = arith.addf %147, %179 : vector<16x34xf32>
    %c148 = arith.constant 148 : index
    %181 = memref.load %arg1[%c148] : memref<288xf32, #tpu.memory_space<smem>>
    %182 = vector.broadcast %181 : f32 to vector<16x34xf32>
    %183 = arith.mulf %164, %182 : vector<16x34xf32>
    %184 = arith.addf %151, %183 : vector<16x34xf32>
    %c184 = arith.constant 184 : index
    %185 = memref.load %arg1[%c184] : memref<288xf32, #tpu.memory_space<smem>>
    %186 = vector.broadcast %185 : f32 to vector<16x34xf32>
    %187 = arith.mulf %164, %186 : vector<16x34xf32>
    %188 = arith.addf %155, %187 : vector<16x34xf32>
    %c220 = arith.constant 220 : index
    %189 = memref.load %arg1[%c220] : memref<288xf32, #tpu.memory_space<smem>>
    %190 = vector.broadcast %189 : f32 to vector<16x34xf32>
    %191 = arith.mulf %164, %190 : vector<16x34xf32>
    %192 = arith.addf %159, %191 : vector<16x34xf32>
    %c256 = arith.constant 256 : index
    %193 = memref.load %arg1[%c256] : memref<288xf32, #tpu.memory_space<smem>>
    %194 = vector.broadcast %193 : f32 to vector<16x34xf32>
    %195 = arith.mulf %164, %194 : vector<16x34xf32>
    %196 = arith.addf %163, %195 : vector<16x34xf32>
    %197 = vector.extract_strided_slice %31 {offsets = [1, 0], sizes = [16, 34], strides = [1, 1]} : vector<18x34xf32> to vector<16x34xf32>
    %c5 = arith.constant 5 : index
    %198 = memref.load %arg1[%c5] : memref<288xf32, #tpu.memory_space<smem>>
    %199 = vector.broadcast %198 : f32 to vector<16x34xf32>
    %200 = arith.mulf %197, %199 : vector<16x34xf32>
    %201 = arith.addf %168, %200 : vector<16x34xf32>
    %c41 = arith.constant 41 : index
    %202 = memref.load %arg1[%c41] : memref<288xf32, #tpu.memory_space<smem>>
    %203 = vector.broadcast %202 : f32 to vector<16x34xf32>
    %204 = arith.mulf %197, %203 : vector<16x34xf32>
    %205 = arith.addf %172, %204 : vector<16x34xf32>
    %c77 = arith.constant 77 : index
    %206 = memref.load %arg1[%c77] : memref<288xf32, #tpu.memory_space<smem>>
    %207 = vector.broadcast %206 : f32 to vector<16x34xf32>
    %208 = arith.mulf %197, %207 : vector<16x34xf32>
    %209 = arith.addf %176, %208 : vector<16x34xf32>
    %c113 = arith.constant 113 : index
    %210 = memref.load %arg1[%c113] : memref<288xf32, #tpu.memory_space<smem>>
    %211 = vector.broadcast %210 : f32 to vector<16x34xf32>
    %212 = arith.mulf %197, %211 : vector<16x34xf32>
    %213 = arith.addf %180, %212 : vector<16x34xf32>
    %c149 = arith.constant 149 : index
    %214 = memref.load %arg1[%c149] : memref<288xf32, #tpu.memory_space<smem>>
    %215 = vector.broadcast %214 : f32 to vector<16x34xf32>
    %216 = arith.mulf %197, %215 : vector<16x34xf32>
    %217 = arith.addf %184, %216 : vector<16x34xf32>
    %c185 = arith.constant 185 : index
    %218 = memref.load %arg1[%c185] : memref<288xf32, #tpu.memory_space<smem>>
    %219 = vector.broadcast %218 : f32 to vector<16x34xf32>
    %220 = arith.mulf %197, %219 : vector<16x34xf32>
    %221 = arith.addf %188, %220 : vector<16x34xf32>
    %c221 = arith.constant 221 : index
    %222 = memref.load %arg1[%c221] : memref<288xf32, #tpu.memory_space<smem>>
    %223 = vector.broadcast %222 : f32 to vector<16x34xf32>
    %224 = arith.mulf %197, %223 : vector<16x34xf32>
    %225 = arith.addf %192, %224 : vector<16x34xf32>
    %c257 = arith.constant 257 : index
    %226 = memref.load %arg1[%c257] : memref<288xf32, #tpu.memory_space<smem>>
    %227 = vector.broadcast %226 : f32 to vector<16x34xf32>
    %228 = arith.mulf %197, %227 : vector<16x34xf32>
    %229 = arith.addf %196, %228 : vector<16x34xf32>
    %230 = vector.extract_strided_slice %27 {offsets = [2, 0], sizes = [16, 34], strides = [1, 1]} : vector<18x34xf32> to vector<16x34xf32>
    %c6 = arith.constant 6 : index
    %231 = memref.load %arg1[%c6] : memref<288xf32, #tpu.memory_space<smem>>
    %232 = vector.broadcast %231 : f32 to vector<16x34xf32>
    %233 = arith.mulf %230, %232 : vector<16x34xf32>
    %234 = arith.addf %201, %233 : vector<16x34xf32>
    %c42 = arith.constant 42 : index
    %235 = memref.load %arg1[%c42] : memref<288xf32, #tpu.memory_space<smem>>
    %236 = vector.broadcast %235 : f32 to vector<16x34xf32>
    %237 = arith.mulf %230, %236 : vector<16x34xf32>
    %238 = arith.addf %205, %237 : vector<16x34xf32>
    %c78 = arith.constant 78 : index
    %239 = memref.load %arg1[%c78] : memref<288xf32, #tpu.memory_space<smem>>
    %240 = vector.broadcast %239 : f32 to vector<16x34xf32>
    %241 = arith.mulf %230, %240 : vector<16x34xf32>
    %242 = arith.addf %209, %241 : vector<16x34xf32>
    %c114 = arith.constant 114 : index
    %243 = memref.load %arg1[%c114] : memref<288xf32, #tpu.memory_space<smem>>
    %244 = vector.broadcast %243 : f32 to vector<16x34xf32>
    %245 = arith.mulf %230, %244 : vector<16x34xf32>
    %246 = arith.addf %213, %245 : vector<16x34xf32>
    %c150 = arith.constant 150 : index
    %247 = memref.load %arg1[%c150] : memref<288xf32, #tpu.memory_space<smem>>
    %248 = vector.broadcast %247 : f32 to vector<16x34xf32>
    %249 = arith.mulf %230, %248 : vector<16x34xf32>
    %250 = arith.addf %217, %249 : vector<16x34xf32>
    %c186 = arith.constant 186 : index
    %251 = memref.load %arg1[%c186] : memref<288xf32, #tpu.memory_space<smem>>
    %252 = vector.broadcast %251 : f32 to vector<16x34xf32>
    %253 = arith.mulf %230, %252 : vector<16x34xf32>
    %254 = arith.addf %221, %253 : vector<16x34xf32>
    %c222 = arith.constant 222 : index
    %255 = memref.load %arg1[%c222] : memref<288xf32, #tpu.memory_space<smem>>
    %256 = vector.broadcast %255 : f32 to vector<16x34xf32>
    %257 = arith.mulf %230, %256 : vector<16x34xf32>
    %258 = arith.addf %225, %257 : vector<16x34xf32>
    %c258 = arith.constant 258 : index
    %259 = memref.load %arg1[%c258] : memref<288xf32, #tpu.memory_space<smem>>
    %260 = vector.broadcast %259 : f32 to vector<16x34xf32>
    %261 = arith.mulf %230, %260 : vector<16x34xf32>
    %262 = arith.addf %229, %261 : vector<16x34xf32>
    %263 = vector.extract_strided_slice %29 {offsets = [2, 0], sizes = [16, 34], strides = [1, 1]} : vector<18x34xf32> to vector<16x34xf32>
    %c7 = arith.constant 7 : index
    %264 = memref.load %arg1[%c7] : memref<288xf32, #tpu.memory_space<smem>>
    %265 = vector.broadcast %264 : f32 to vector<16x34xf32>
    %266 = arith.mulf %263, %265 : vector<16x34xf32>
    %267 = arith.addf %234, %266 : vector<16x34xf32>
    %c43 = arith.constant 43 : index
    %268 = memref.load %arg1[%c43] : memref<288xf32, #tpu.memory_space<smem>>
    %269 = vector.broadcast %268 : f32 to vector<16x34xf32>
    %270 = arith.mulf %263, %269 : vector<16x34xf32>
    %271 = arith.addf %238, %270 : vector<16x34xf32>
    %c79 = arith.constant 79 : index
    %272 = memref.load %arg1[%c79] : memref<288xf32, #tpu.memory_space<smem>>
    %273 = vector.broadcast %272 : f32 to vector<16x34xf32>
    %274 = arith.mulf %263, %273 : vector<16x34xf32>
    %275 = arith.addf %242, %274 : vector<16x34xf32>
    %c115 = arith.constant 115 : index
    %276 = memref.load %arg1[%c115] : memref<288xf32, #tpu.memory_space<smem>>
    %277 = vector.broadcast %276 : f32 to vector<16x34xf32>
    %278 = arith.mulf %263, %277 : vector<16x34xf32>
    %279 = arith.addf %246, %278 : vector<16x34xf32>
    %c151 = arith.constant 151 : index
    %280 = memref.load %arg1[%c151] : memref<288xf32, #tpu.memory_space<smem>>
    %281 = vector.broadcast %280 : f32 to vector<16x34xf32>
    %282 = arith.mulf %263, %281 : vector<16x34xf32>
    %283 = arith.addf %250, %282 : vector<16x34xf32>
    %c187 = arith.constant 187 : index
    %284 = memref.load %arg1[%c187] : memref<288xf32, #tpu.memory_space<smem>>
    %285 = vector.broadcast %284 : f32 to vector<16x34xf32>
    %286 = arith.mulf %263, %285 : vector<16x34xf32>
    %287 = arith.addf %254, %286 : vector<16x34xf32>
    %c223 = arith.constant 223 : index
    %288 = memref.load %arg1[%c223] : memref<288xf32, #tpu.memory_space<smem>>
    %289 = vector.broadcast %288 : f32 to vector<16x34xf32>
    %290 = arith.mulf %263, %289 : vector<16x34xf32>
    %291 = arith.addf %258, %290 : vector<16x34xf32>
    %c259 = arith.constant 259 : index
    %292 = memref.load %arg1[%c259] : memref<288xf32, #tpu.memory_space<smem>>
    %293 = vector.broadcast %292 : f32 to vector<16x34xf32>
    %294 = arith.mulf %263, %293 : vector<16x34xf32>
    %295 = arith.addf %262, %294 : vector<16x34xf32>
    %296 = vector.extract_strided_slice %31 {offsets = [2, 0], sizes = [16, 34], strides = [1, 1]} : vector<18x34xf32> to vector<16x34xf32>
    %c8 = arith.constant 8 : index
    %297 = memref.load %arg1[%c8] : memref<288xf32, #tpu.memory_space<smem>>
    %298 = vector.broadcast %297 : f32 to vector<16x34xf32>
    %299 = arith.mulf %296, %298 : vector<16x34xf32>
    %300 = arith.addf %267, %299 : vector<16x34xf32>
    %c44 = arith.constant 44 : index
    %301 = memref.load %arg1[%c44] : memref<288xf32, #tpu.memory_space<smem>>
    %302 = vector.broadcast %301 : f32 to vector<16x34xf32>
    %303 = arith.mulf %296, %302 : vector<16x34xf32>
    %304 = arith.addf %271, %303 : vector<16x34xf32>
    %c80 = arith.constant 80 : index
    %305 = memref.load %arg1[%c80] : memref<288xf32, #tpu.memory_space<smem>>
    %306 = vector.broadcast %305 : f32 to vector<16x34xf32>
    %307 = arith.mulf %296, %306 : vector<16x34xf32>
    %308 = arith.addf %275, %307 : vector<16x34xf32>
    %c116 = arith.constant 116 : index
    %309 = memref.load %arg1[%c116] : memref<288xf32, #tpu.memory_space<smem>>
    %310 = vector.broadcast %309 : f32 to vector<16x34xf32>
    %311 = arith.mulf %296, %310 : vector<16x34xf32>
    %312 = arith.addf %279, %311 : vector<16x34xf32>
    %c152 = arith.constant 152 : index
    %313 = memref.load %arg1[%c152] : memref<288xf32, #tpu.memory_space<smem>>
    %314 = vector.broadcast %313 : f32 to vector<16x34xf32>
    %315 = arith.mulf %296, %314 : vector<16x34xf32>
    %316 = arith.addf %283, %315 : vector<16x34xf32>
    %c188 = arith.constant 188 : index
    %317 = memref.load %arg1[%c188] : memref<288xf32, #tpu.memory_space<smem>>
    %318 = vector.broadcast %317 : f32 to vector<16x34xf32>
    %319 = arith.mulf %296, %318 : vector<16x34xf32>
    %320 = arith.addf %287, %319 : vector<16x34xf32>
    %c224 = arith.constant 224 : index
    %321 = memref.load %arg1[%c224] : memref<288xf32, #tpu.memory_space<smem>>
    %322 = vector.broadcast %321 : f32 to vector<16x34xf32>
    %323 = arith.mulf %296, %322 : vector<16x34xf32>
    %324 = arith.addf %291, %323 : vector<16x34xf32>
    %c260 = arith.constant 260 : index
    %325 = memref.load %arg1[%c260] : memref<288xf32, #tpu.memory_space<smem>>
    %326 = vector.broadcast %325 : f32 to vector<16x34xf32>
    %327 = arith.mulf %296, %326 : vector<16x34xf32>
    %328 = arith.addf %295, %327 : vector<16x34xf32>
    %c1_50 = arith.constant 1 : index
    %c0_51 = arith.constant 0 : index
    %c0_52 = arith.constant 0 : index
    %329 = vector.load %arg4[%c1_50, %c0_51, %c0_52] : memref<4x18x36xf32, #tpu.memory_space<vmem>>, vector<1x18x34xf32>
    %330 = vector.shape_cast %329 : vector<1x18x34xf32> to vector<18x34xf32>
    %c1_53 = arith.constant 1 : index
    %c0_54 = arith.constant 0 : index
    %c1_55 = arith.constant 1 : index
    %331 = vector.load %arg4[%c1_53, %c0_54, %c1_55] : memref<4x18x36xf32, #tpu.memory_space<vmem>>, vector<1x18x34xf32>
    %332 = vector.shape_cast %331 : vector<1x18x34xf32> to vector<18x34xf32>
    %c1_56 = arith.constant 1 : index
    %c0_57 = arith.constant 0 : index
    %c2_58 = arith.constant 2 : index
    %333 = vector.load %arg4[%c1_56, %c0_57, %c2_58] : memref<4x18x36xf32, #tpu.memory_space<vmem>>, vector<1x18x34xf32>
    %334 = vector.shape_cast %333 : vector<1x18x34xf32> to vector<18x34xf32>
    %335 = vector.extract_strided_slice %330 {offsets = [0, 0], sizes = [16, 34], strides = [1, 1]} : vector<18x34xf32> to vector<16x34xf32>
    %c9 = arith.constant 9 : index
    %336 = memref.load %arg1[%c9] : memref<288xf32, #tpu.memory_space<smem>>
    %337 = vector.broadcast %336 : f32 to vector<16x34xf32>
    %338 = arith.mulf %335, %337 : vector<16x34xf32>
    %339 = arith.addf %300, %338 : vector<16x34xf32>
    %c45 = arith.constant 45 : index
    %340 = memref.load %arg1[%c45] : memref<288xf32, #tpu.memory_space<smem>>
    %341 = vector.broadcast %340 : f32 to vector<16x34xf32>
    %342 = arith.mulf %335, %341 : vector<16x34xf32>
    %343 = arith.addf %304, %342 : vector<16x34xf32>
    %c81 = arith.constant 81 : index
    %344 = memref.load %arg1[%c81] : memref<288xf32, #tpu.memory_space<smem>>
    %345 = vector.broadcast %344 : f32 to vector<16x34xf32>
    %346 = arith.mulf %335, %345 : vector<16x34xf32>
    %347 = arith.addf %308, %346 : vector<16x34xf32>
    %c117 = arith.constant 117 : index
    %348 = memref.load %arg1[%c117] : memref<288xf32, #tpu.memory_space<smem>>
    %349 = vector.broadcast %348 : f32 to vector<16x34xf32>
    %350 = arith.mulf %335, %349 : vector<16x34xf32>
    %351 = arith.addf %312, %350 : vector<16x34xf32>
    %c153 = arith.constant 153 : index
    %352 = memref.load %arg1[%c153] : memref<288xf32, #tpu.memory_space<smem>>
    %353 = vector.broadcast %352 : f32 to vector<16x34xf32>
    %354 = arith.mulf %335, %353 : vector<16x34xf32>
    %355 = arith.addf %316, %354 : vector<16x34xf32>
    %c189 = arith.constant 189 : index
    %356 = memref.load %arg1[%c189] : memref<288xf32, #tpu.memory_space<smem>>
    %357 = vector.broadcast %356 : f32 to vector<16x34xf32>
    %358 = arith.mulf %335, %357 : vector<16x34xf32>
    %359 = arith.addf %320, %358 : vector<16x34xf32>
    %c225 = arith.constant 225 : index
    %360 = memref.load %arg1[%c225] : memref<288xf32, #tpu.memory_space<smem>>
    %361 = vector.broadcast %360 : f32 to vector<16x34xf32>
    %362 = arith.mulf %335, %361 : vector<16x34xf32>
    %363 = arith.addf %324, %362 : vector<16x34xf32>
    %c261 = arith.constant 261 : index
    %364 = memref.load %arg1[%c261] : memref<288xf32, #tpu.memory_space<smem>>
    %365 = vector.broadcast %364 : f32 to vector<16x34xf32>
    %366 = arith.mulf %335, %365 : vector<16x34xf32>
    %367 = arith.addf %328, %366 : vector<16x34xf32>
    %368 = vector.extract_strided_slice %332 {offsets = [0, 0], sizes = [16, 34], strides = [1, 1]} : vector<18x34xf32> to vector<16x34xf32>
    %c10 = arith.constant 10 : index
    %369 = memref.load %arg1[%c10] : memref<288xf32, #tpu.memory_space<smem>>
    %370 = vector.broadcast %369 : f32 to vector<16x34xf32>
    %371 = arith.mulf %368, %370 : vector<16x34xf32>
    %372 = arith.addf %339, %371 : vector<16x34xf32>
    %c46 = arith.constant 46 : index
    %373 = memref.load %arg1[%c46] : memref<288xf32, #tpu.memory_space<smem>>
    %374 = vector.broadcast %373 : f32 to vector<16x34xf32>
    %375 = arith.mulf %368, %374 : vector<16x34xf32>
    %376 = arith.addf %343, %375 : vector<16x34xf32>
    %c82 = arith.constant 82 : index
    %377 = memref.load %arg1[%c82] : memref<288xf32, #tpu.memory_space<smem>>
    %378 = vector.broadcast %377 : f32 to vector<16x34xf32>
    %379 = arith.mulf %368, %378 : vector<16x34xf32>
    %380 = arith.addf %347, %379 : vector<16x34xf32>
    %c118 = arith.constant 118 : index
    %381 = memref.load %arg1[%c118] : memref<288xf32, #tpu.memory_space<smem>>
    %382 = vector.broadcast %381 : f32 to vector<16x34xf32>
    %383 = arith.mulf %368, %382 : vector<16x34xf32>
    %384 = arith.addf %351, %383 : vector<16x34xf32>
    %c154 = arith.constant 154 : index
    %385 = memref.load %arg1[%c154] : memref<288xf32, #tpu.memory_space<smem>>
    %386 = vector.broadcast %385 : f32 to vector<16x34xf32>
    %387 = arith.mulf %368, %386 : vector<16x34xf32>
    %388 = arith.addf %355, %387 : vector<16x34xf32>
    %c190 = arith.constant 190 : index
    %389 = memref.load %arg1[%c190] : memref<288xf32, #tpu.memory_space<smem>>
    %390 = vector.broadcast %389 : f32 to vector<16x34xf32>
    %391 = arith.mulf %368, %390 : vector<16x34xf32>
    %392 = arith.addf %359, %391 : vector<16x34xf32>
    %c226 = arith.constant 226 : index
    %393 = memref.load %arg1[%c226] : memref<288xf32, #tpu.memory_space<smem>>
    %394 = vector.broadcast %393 : f32 to vector<16x34xf32>
    %395 = arith.mulf %368, %394 : vector<16x34xf32>
    %396 = arith.addf %363, %395 : vector<16x34xf32>
    %c262 = arith.constant 262 : index
    %397 = memref.load %arg1[%c262] : memref<288xf32, #tpu.memory_space<smem>>
    %398 = vector.broadcast %397 : f32 to vector<16x34xf32>
    %399 = arith.mulf %368, %398 : vector<16x34xf32>
    %400 = arith.addf %367, %399 : vector<16x34xf32>
    %401 = vector.extract_strided_slice %334 {offsets = [0, 0], sizes = [16, 34], strides = [1, 1]} : vector<18x34xf32> to vector<16x34xf32>
    %c11 = arith.constant 11 : index
    %402 = memref.load %arg1[%c11] : memref<288xf32, #tpu.memory_space<smem>>
    %403 = vector.broadcast %402 : f32 to vector<16x34xf32>
    %404 = arith.mulf %401, %403 : vector<16x34xf32>
    %405 = arith.addf %372, %404 : vector<16x34xf32>
    %c47 = arith.constant 47 : index
    %406 = memref.load %arg1[%c47] : memref<288xf32, #tpu.memory_space<smem>>
    %407 = vector.broadcast %406 : f32 to vector<16x34xf32>
    %408 = arith.mulf %401, %407 : vector<16x34xf32>
    %409 = arith.addf %376, %408 : vector<16x34xf32>
    %c83 = arith.constant 83 : index
    %410 = memref.load %arg1[%c83] : memref<288xf32, #tpu.memory_space<smem>>
    %411 = vector.broadcast %410 : f32 to vector<16x34xf32>
    %412 = arith.mulf %401, %411 : vector<16x34xf32>
    %413 = arith.addf %380, %412 : vector<16x34xf32>
    %c119 = arith.constant 119 : index
    %414 = memref.load %arg1[%c119] : memref<288xf32, #tpu.memory_space<smem>>
    %415 = vector.broadcast %414 : f32 to vector<16x34xf32>
    %416 = arith.mulf %401, %415 : vector<16x34xf32>
    %417 = arith.addf %384, %416 : vector<16x34xf32>
    %c155 = arith.constant 155 : index
    %418 = memref.load %arg1[%c155] : memref<288xf32, #tpu.memory_space<smem>>
    %419 = vector.broadcast %418 : f32 to vector<16x34xf32>
    %420 = arith.mulf %401, %419 : vector<16x34xf32>
    %421 = arith.addf %388, %420 : vector<16x34xf32>
    %c191 = arith.constant 191 : index
    %422 = memref.load %arg1[%c191] : memref<288xf32, #tpu.memory_space<smem>>
    %423 = vector.broadcast %422 : f32 to vector<16x34xf32>
    %424 = arith.mulf %401, %423 : vector<16x34xf32>
    %425 = arith.addf %392, %424 : vector<16x34xf32>
    %c227 = arith.constant 227 : index
    %426 = memref.load %arg1[%c227] : memref<288xf32, #tpu.memory_space<smem>>
    %427 = vector.broadcast %426 : f32 to vector<16x34xf32>
    %428 = arith.mulf %401, %427 : vector<16x34xf32>
    %429 = arith.addf %396, %428 : vector<16x34xf32>
    %c263 = arith.constant 263 : index
    %430 = memref.load %arg1[%c263] : memref<288xf32, #tpu.memory_space<smem>>
    %431 = vector.broadcast %430 : f32 to vector<16x34xf32>
    %432 = arith.mulf %401, %431 : vector<16x34xf32>
    %433 = arith.addf %400, %432 : vector<16x34xf32>
    %434 = vector.extract_strided_slice %330 {offsets = [1, 0], sizes = [16, 34], strides = [1, 1]} : vector<18x34xf32> to vector<16x34xf32>
    %c12 = arith.constant 12 : index
    %435 = memref.load %arg1[%c12] : memref<288xf32, #tpu.memory_space<smem>>
    %436 = vector.broadcast %435 : f32 to vector<16x34xf32>
    %437 = arith.mulf %434, %436 : vector<16x34xf32>
    %438 = arith.addf %405, %437 : vector<16x34xf32>
    %c48 = arith.constant 48 : index
    %439 = memref.load %arg1[%c48] : memref<288xf32, #tpu.memory_space<smem>>
    %440 = vector.broadcast %439 : f32 to vector<16x34xf32>
    %441 = arith.mulf %434, %440 : vector<16x34xf32>
    %442 = arith.addf %409, %441 : vector<16x34xf32>
    %c84 = arith.constant 84 : index
    %443 = memref.load %arg1[%c84] : memref<288xf32, #tpu.memory_space<smem>>
    %444 = vector.broadcast %443 : f32 to vector<16x34xf32>
    %445 = arith.mulf %434, %444 : vector<16x34xf32>
    %446 = arith.addf %413, %445 : vector<16x34xf32>
    %c120 = arith.constant 120 : index
    %447 = memref.load %arg1[%c120] : memref<288xf32, #tpu.memory_space<smem>>
    %448 = vector.broadcast %447 : f32 to vector<16x34xf32>
    %449 = arith.mulf %434, %448 : vector<16x34xf32>
    %450 = arith.addf %417, %449 : vector<16x34xf32>
    %c156 = arith.constant 156 : index
    %451 = memref.load %arg1[%c156] : memref<288xf32, #tpu.memory_space<smem>>
    %452 = vector.broadcast %451 : f32 to vector<16x34xf32>
    %453 = arith.mulf %434, %452 : vector<16x34xf32>
    %454 = arith.addf %421, %453 : vector<16x34xf32>
    %c192 = arith.constant 192 : index
    %455 = memref.load %arg1[%c192] : memref<288xf32, #tpu.memory_space<smem>>
    %456 = vector.broadcast %455 : f32 to vector<16x34xf32>
    %457 = arith.mulf %434, %456 : vector<16x34xf32>
    %458 = arith.addf %425, %457 : vector<16x34xf32>
    %c228 = arith.constant 228 : index
    %459 = memref.load %arg1[%c228] : memref<288xf32, #tpu.memory_space<smem>>
    %460 = vector.broadcast %459 : f32 to vector<16x34xf32>
    %461 = arith.mulf %434, %460 : vector<16x34xf32>
    %462 = arith.addf %429, %461 : vector<16x34xf32>
    %c264 = arith.constant 264 : index
    %463 = memref.load %arg1[%c264] : memref<288xf32, #tpu.memory_space<smem>>
    %464 = vector.broadcast %463 : f32 to vector<16x34xf32>
    %465 = arith.mulf %434, %464 : vector<16x34xf32>
    %466 = arith.addf %433, %465 : vector<16x34xf32>
    %467 = vector.extract_strided_slice %332 {offsets = [1, 0], sizes = [16, 34], strides = [1, 1]} : vector<18x34xf32> to vector<16x34xf32>
    %c13 = arith.constant 13 : index
    %468 = memref.load %arg1[%c13] : memref<288xf32, #tpu.memory_space<smem>>
    %469 = vector.broadcast %468 : f32 to vector<16x34xf32>
    %470 = arith.mulf %467, %469 : vector<16x34xf32>
    %471 = arith.addf %438, %470 : vector<16x34xf32>
    %c49 = arith.constant 49 : index
    %472 = memref.load %arg1[%c49] : memref<288xf32, #tpu.memory_space<smem>>
    %473 = vector.broadcast %472 : f32 to vector<16x34xf32>
    %474 = arith.mulf %467, %473 : vector<16x34xf32>
    %475 = arith.addf %442, %474 : vector<16x34xf32>
    %c85 = arith.constant 85 : index
    %476 = memref.load %arg1[%c85] : memref<288xf32, #tpu.memory_space<smem>>
    %477 = vector.broadcast %476 : f32 to vector<16x34xf32>
    %478 = arith.mulf %467, %477 : vector<16x34xf32>
    %479 = arith.addf %446, %478 : vector<16x34xf32>
    %c121 = arith.constant 121 : index
    %480 = memref.load %arg1[%c121] : memref<288xf32, #tpu.memory_space<smem>>
    %481 = vector.broadcast %480 : f32 to vector<16x34xf32>
    %482 = arith.mulf %467, %481 : vector<16x34xf32>
    %483 = arith.addf %450, %482 : vector<16x34xf32>
    %c157 = arith.constant 157 : index
    %484 = memref.load %arg1[%c157] : memref<288xf32, #tpu.memory_space<smem>>
    %485 = vector.broadcast %484 : f32 to vector<16x34xf32>
    %486 = arith.mulf %467, %485 : vector<16x34xf32>
    %487 = arith.addf %454, %486 : vector<16x34xf32>
    %c193 = arith.constant 193 : index
    %488 = memref.load %arg1[%c193] : memref<288xf32, #tpu.memory_space<smem>>
    %489 = vector.broadcast %488 : f32 to vector<16x34xf32>
    %490 = arith.mulf %467, %489 : vector<16x34xf32>
    %491 = arith.addf %458, %490 : vector<16x34xf32>
    %c229 = arith.constant 229 : index
    %492 = memref.load %arg1[%c229] : memref<288xf32, #tpu.memory_space<smem>>
    %493 = vector.broadcast %492 : f32 to vector<16x34xf32>
    %494 = arith.mulf %467, %493 : vector<16x34xf32>
    %495 = arith.addf %462, %494 : vector<16x34xf32>
    %c265 = arith.constant 265 : index
    %496 = memref.load %arg1[%c265] : memref<288xf32, #tpu.memory_space<smem>>
    %497 = vector.broadcast %496 : f32 to vector<16x34xf32>
    %498 = arith.mulf %467, %497 : vector<16x34xf32>
    %499 = arith.addf %466, %498 : vector<16x34xf32>
    %500 = vector.extract_strided_slice %334 {offsets = [1, 0], sizes = [16, 34], strides = [1, 1]} : vector<18x34xf32> to vector<16x34xf32>
    %c14 = arith.constant 14 : index
    %501 = memref.load %arg1[%c14] : memref<288xf32, #tpu.memory_space<smem>>
    %502 = vector.broadcast %501 : f32 to vector<16x34xf32>
    %503 = arith.mulf %500, %502 : vector<16x34xf32>
    %504 = arith.addf %471, %503 : vector<16x34xf32>
    %c50 = arith.constant 50 : index
    %505 = memref.load %arg1[%c50] : memref<288xf32, #tpu.memory_space<smem>>
    %506 = vector.broadcast %505 : f32 to vector<16x34xf32>
    %507 = arith.mulf %500, %506 : vector<16x34xf32>
    %508 = arith.addf %475, %507 : vector<16x34xf32>
    %c86 = arith.constant 86 : index
    %509 = memref.load %arg1[%c86] : memref<288xf32, #tpu.memory_space<smem>>
    %510 = vector.broadcast %509 : f32 to vector<16x34xf32>
    %511 = arith.mulf %500, %510 : vector<16x34xf32>
    %512 = arith.addf %479, %511 : vector<16x34xf32>
    %c122 = arith.constant 122 : index
    %513 = memref.load %arg1[%c122] : memref<288xf32, #tpu.memory_space<smem>>
    %514 = vector.broadcast %513 : f32 to vector<16x34xf32>
    %515 = arith.mulf %500, %514 : vector<16x34xf32>
    %516 = arith.addf %483, %515 : vector<16x34xf32>
    %c158 = arith.constant 158 : index
    %517 = memref.load %arg1[%c158] : memref<288xf32, #tpu.memory_space<smem>>
    %518 = vector.broadcast %517 : f32 to vector<16x34xf32>
    %519 = arith.mulf %500, %518 : vector<16x34xf32>
    %520 = arith.addf %487, %519 : vector<16x34xf32>
    %c194 = arith.constant 194 : index
    %521 = memref.load %arg1[%c194] : memref<288xf32, #tpu.memory_space<smem>>
    %522 = vector.broadcast %521 : f32 to vector<16x34xf32>
    %523 = arith.mulf %500, %522 : vector<16x34xf32>
    %524 = arith.addf %491, %523 : vector<16x34xf32>
    %c230 = arith.constant 230 : index
    %525 = memref.load %arg1[%c230] : memref<288xf32, #tpu.memory_space<smem>>
    %526 = vector.broadcast %525 : f32 to vector<16x34xf32>
    %527 = arith.mulf %500, %526 : vector<16x34xf32>
    %528 = arith.addf %495, %527 : vector<16x34xf32>
    %c266 = arith.constant 266 : index
    %529 = memref.load %arg1[%c266] : memref<288xf32, #tpu.memory_space<smem>>
    %530 = vector.broadcast %529 : f32 to vector<16x34xf32>
    %531 = arith.mulf %500, %530 : vector<16x34xf32>
    %532 = arith.addf %499, %531 : vector<16x34xf32>
    %533 = vector.extract_strided_slice %330 {offsets = [2, 0], sizes = [16, 34], strides = [1, 1]} : vector<18x34xf32> to vector<16x34xf32>
    %c15 = arith.constant 15 : index
    %534 = memref.load %arg1[%c15] : memref<288xf32, #tpu.memory_space<smem>>
    %535 = vector.broadcast %534 : f32 to vector<16x34xf32>
    %536 = arith.mulf %533, %535 : vector<16x34xf32>
    %537 = arith.addf %504, %536 : vector<16x34xf32>
    %c51 = arith.constant 51 : index
    %538 = memref.load %arg1[%c51] : memref<288xf32, #tpu.memory_space<smem>>
    %539 = vector.broadcast %538 : f32 to vector<16x34xf32>
    %540 = arith.mulf %533, %539 : vector<16x34xf32>
    %541 = arith.addf %508, %540 : vector<16x34xf32>
    %c87 = arith.constant 87 : index
    %542 = memref.load %arg1[%c87] : memref<288xf32, #tpu.memory_space<smem>>
    %543 = vector.broadcast %542 : f32 to vector<16x34xf32>
    %544 = arith.mulf %533, %543 : vector<16x34xf32>
    %545 = arith.addf %512, %544 : vector<16x34xf32>
    %c123 = arith.constant 123 : index
    %546 = memref.load %arg1[%c123] : memref<288xf32, #tpu.memory_space<smem>>
    %547 = vector.broadcast %546 : f32 to vector<16x34xf32>
    %548 = arith.mulf %533, %547 : vector<16x34xf32>
    %549 = arith.addf %516, %548 : vector<16x34xf32>
    %c159 = arith.constant 159 : index
    %550 = memref.load %arg1[%c159] : memref<288xf32, #tpu.memory_space<smem>>
    %551 = vector.broadcast %550 : f32 to vector<16x34xf32>
    %552 = arith.mulf %533, %551 : vector<16x34xf32>
    %553 = arith.addf %520, %552 : vector<16x34xf32>
    %c195 = arith.constant 195 : index
    %554 = memref.load %arg1[%c195] : memref<288xf32, #tpu.memory_space<smem>>
    %555 = vector.broadcast %554 : f32 to vector<16x34xf32>
    %556 = arith.mulf %533, %555 : vector<16x34xf32>
    %557 = arith.addf %524, %556 : vector<16x34xf32>
    %c231 = arith.constant 231 : index
    %558 = memref.load %arg1[%c231] : memref<288xf32, #tpu.memory_space<smem>>
    %559 = vector.broadcast %558 : f32 to vector<16x34xf32>
    %560 = arith.mulf %533, %559 : vector<16x34xf32>
    %561 = arith.addf %528, %560 : vector<16x34xf32>
    %c267 = arith.constant 267 : index
    %562 = memref.load %arg1[%c267] : memref<288xf32, #tpu.memory_space<smem>>
    %563 = vector.broadcast %562 : f32 to vector<16x34xf32>
    %564 = arith.mulf %533, %563 : vector<16x34xf32>
    %565 = arith.addf %532, %564 : vector<16x34xf32>
    %566 = vector.extract_strided_slice %332 {offsets = [2, 0], sizes = [16, 34], strides = [1, 1]} : vector<18x34xf32> to vector<16x34xf32>
    %c16 = arith.constant 16 : index
    %567 = memref.load %arg1[%c16] : memref<288xf32, #tpu.memory_space<smem>>
    %568 = vector.broadcast %567 : f32 to vector<16x34xf32>
    %569 = arith.mulf %566, %568 : vector<16x34xf32>
    %570 = arith.addf %537, %569 : vector<16x34xf32>
    %c52 = arith.constant 52 : index
    %571 = memref.load %arg1[%c52] : memref<288xf32, #tpu.memory_space<smem>>
    %572 = vector.broadcast %571 : f32 to vector<16x34xf32>
    %573 = arith.mulf %566, %572 : vector<16x34xf32>
    %574 = arith.addf %541, %573 : vector<16x34xf32>
    %c88 = arith.constant 88 : index
    %575 = memref.load %arg1[%c88] : memref<288xf32, #tpu.memory_space<smem>>
    %576 = vector.broadcast %575 : f32 to vector<16x34xf32>
    %577 = arith.mulf %566, %576 : vector<16x34xf32>
    %578 = arith.addf %545, %577 : vector<16x34xf32>
    %c124 = arith.constant 124 : index
    %579 = memref.load %arg1[%c124] : memref<288xf32, #tpu.memory_space<smem>>
    %580 = vector.broadcast %579 : f32 to vector<16x34xf32>
    %581 = arith.mulf %566, %580 : vector<16x34xf32>
    %582 = arith.addf %549, %581 : vector<16x34xf32>
    %c160 = arith.constant 160 : index
    %583 = memref.load %arg1[%c160] : memref<288xf32, #tpu.memory_space<smem>>
    %584 = vector.broadcast %583 : f32 to vector<16x34xf32>
    %585 = arith.mulf %566, %584 : vector<16x34xf32>
    %586 = arith.addf %553, %585 : vector<16x34xf32>
    %c196 = arith.constant 196 : index
    %587 = memref.load %arg1[%c196] : memref<288xf32, #tpu.memory_space<smem>>
    %588 = vector.broadcast %587 : f32 to vector<16x34xf32>
    %589 = arith.mulf %566, %588 : vector<16x34xf32>
    %590 = arith.addf %557, %589 : vector<16x34xf32>
    %c232 = arith.constant 232 : index
    %591 = memref.load %arg1[%c232] : memref<288xf32, #tpu.memory_space<smem>>
    %592 = vector.broadcast %591 : f32 to vector<16x34xf32>
    %593 = arith.mulf %566, %592 : vector<16x34xf32>
    %594 = arith.addf %561, %593 : vector<16x34xf32>
    %c268 = arith.constant 268 : index
    %595 = memref.load %arg1[%c268] : memref<288xf32, #tpu.memory_space<smem>>
    %596 = vector.broadcast %595 : f32 to vector<16x34xf32>
    %597 = arith.mulf %566, %596 : vector<16x34xf32>
    %598 = arith.addf %565, %597 : vector<16x34xf32>
    %599 = vector.extract_strided_slice %334 {offsets = [2, 0], sizes = [16, 34], strides = [1, 1]} : vector<18x34xf32> to vector<16x34xf32>
    %c17_59 = arith.constant 17 : index
    %600 = memref.load %arg1[%c17_59] : memref<288xf32, #tpu.memory_space<smem>>
    %601 = vector.broadcast %600 : f32 to vector<16x34xf32>
    %602 = arith.mulf %599, %601 : vector<16x34xf32>
    %603 = arith.addf %570, %602 : vector<16x34xf32>
    %c53 = arith.constant 53 : index
    %604 = memref.load %arg1[%c53] : memref<288xf32, #tpu.memory_space<smem>>
    %605 = vector.broadcast %604 : f32 to vector<16x34xf32>
    %606 = arith.mulf %599, %605 : vector<16x34xf32>
    %607 = arith.addf %574, %606 : vector<16x34xf32>
    %c89 = arith.constant 89 : index
    %608 = memref.load %arg1[%c89] : memref<288xf32, #tpu.memory_space<smem>>
    %609 = vector.broadcast %608 : f32 to vector<16x34xf32>
    %610 = arith.mulf %599, %609 : vector<16x34xf32>
    %611 = arith.addf %578, %610 : vector<16x34xf32>
    %c125 = arith.constant 125 : index
    %612 = memref.load %arg1[%c125] : memref<288xf32, #tpu.memory_space<smem>>
    %613 = vector.broadcast %612 : f32 to vector<16x34xf32>
    %614 = arith.mulf %599, %613 : vector<16x34xf32>
    %615 = arith.addf %582, %614 : vector<16x34xf32>
    %c161 = arith.constant 161 : index
    %616 = memref.load %arg1[%c161] : memref<288xf32, #tpu.memory_space<smem>>
    %617 = vector.broadcast %616 : f32 to vector<16x34xf32>
    %618 = arith.mulf %599, %617 : vector<16x34xf32>
    %619 = arith.addf %586, %618 : vector<16x34xf32>
    %c197 = arith.constant 197 : index
    %620 = memref.load %arg1[%c197] : memref<288xf32, #tpu.memory_space<smem>>
    %621 = vector.broadcast %620 : f32 to vector<16x34xf32>
    %622 = arith.mulf %599, %621 : vector<16x34xf32>
    %623 = arith.addf %590, %622 : vector<16x34xf32>
    %c233 = arith.constant 233 : index
    %624 = memref.load %arg1[%c233] : memref<288xf32, #tpu.memory_space<smem>>
    %625 = vector.broadcast %624 : f32 to vector<16x34xf32>
    %626 = arith.mulf %599, %625 : vector<16x34xf32>
    %627 = arith.addf %594, %626 : vector<16x34xf32>
    %c269 = arith.constant 269 : index
    %628 = memref.load %arg1[%c269] : memref<288xf32, #tpu.memory_space<smem>>
    %629 = vector.broadcast %628 : f32 to vector<16x34xf32>
    %630 = arith.mulf %599, %629 : vector<16x34xf32>
    %631 = arith.addf %598, %630 : vector<16x34xf32>
    %c2_60 = arith.constant 2 : index
    %c0_61 = arith.constant 0 : index
    %c0_62 = arith.constant 0 : index
    %632 = vector.load %arg4[%c2_60, %c0_61, %c0_62] : memref<4x18x36xf32, #tpu.memory_space<vmem>>, vector<1x18x34xf32>
    %633 = vector.shape_cast %632 : vector<1x18x34xf32> to vector<18x34xf32>
    %c2_63 = arith.constant 2 : index
    %c0_64 = arith.constant 0 : index
    %c1_65 = arith.constant 1 : index
    %634 = vector.load %arg4[%c2_63, %c0_64, %c1_65] : memref<4x18x36xf32, #tpu.memory_space<vmem>>, vector<1x18x34xf32>
    %635 = vector.shape_cast %634 : vector<1x18x34xf32> to vector<18x34xf32>
    %c2_66 = arith.constant 2 : index
    %c0_67 = arith.constant 0 : index
    %c2_68 = arith.constant 2 : index
    %636 = vector.load %arg4[%c2_66, %c0_67, %c2_68] : memref<4x18x36xf32, #tpu.memory_space<vmem>>, vector<1x18x34xf32>
    %637 = vector.shape_cast %636 : vector<1x18x34xf32> to vector<18x34xf32>
    %638 = vector.extract_strided_slice %633 {offsets = [0, 0], sizes = [16, 34], strides = [1, 1]} : vector<18x34xf32> to vector<16x34xf32>
    %c18_69 = arith.constant 18 : index
    %639 = memref.load %arg1[%c18_69] : memref<288xf32, #tpu.memory_space<smem>>
    %640 = vector.broadcast %639 : f32 to vector<16x34xf32>
    %641 = arith.mulf %638, %640 : vector<16x34xf32>
    %642 = arith.addf %603, %641 : vector<16x34xf32>
    %c54 = arith.constant 54 : index
    %643 = memref.load %arg1[%c54] : memref<288xf32, #tpu.memory_space<smem>>
    %644 = vector.broadcast %643 : f32 to vector<16x34xf32>
    %645 = arith.mulf %638, %644 : vector<16x34xf32>
    %646 = arith.addf %607, %645 : vector<16x34xf32>
    %c90 = arith.constant 90 : index
    %647 = memref.load %arg1[%c90] : memref<288xf32, #tpu.memory_space<smem>>
    %648 = vector.broadcast %647 : f32 to vector<16x34xf32>
    %649 = arith.mulf %638, %648 : vector<16x34xf32>
    %650 = arith.addf %611, %649 : vector<16x34xf32>
    %c126 = arith.constant 126 : index
    %651 = memref.load %arg1[%c126] : memref<288xf32, #tpu.memory_space<smem>>
    %652 = vector.broadcast %651 : f32 to vector<16x34xf32>
    %653 = arith.mulf %638, %652 : vector<16x34xf32>
    %654 = arith.addf %615, %653 : vector<16x34xf32>
    %c162 = arith.constant 162 : index
    %655 = memref.load %arg1[%c162] : memref<288xf32, #tpu.memory_space<smem>>
    %656 = vector.broadcast %655 : f32 to vector<16x34xf32>
    %657 = arith.mulf %638, %656 : vector<16x34xf32>
    %658 = arith.addf %619, %657 : vector<16x34xf32>
    %c198 = arith.constant 198 : index
    %659 = memref.load %arg1[%c198] : memref<288xf32, #tpu.memory_space<smem>>
    %660 = vector.broadcast %659 : f32 to vector<16x34xf32>
    %661 = arith.mulf %638, %660 : vector<16x34xf32>
    %662 = arith.addf %623, %661 : vector<16x34xf32>
    %c234 = arith.constant 234 : index
    %663 = memref.load %arg1[%c234] : memref<288xf32, #tpu.memory_space<smem>>
    %664 = vector.broadcast %663 : f32 to vector<16x34xf32>
    %665 = arith.mulf %638, %664 : vector<16x34xf32>
    %666 = arith.addf %627, %665 : vector<16x34xf32>
    %c270 = arith.constant 270 : index
    %667 = memref.load %arg1[%c270] : memref<288xf32, #tpu.memory_space<smem>>
    %668 = vector.broadcast %667 : f32 to vector<16x34xf32>
    %669 = arith.mulf %638, %668 : vector<16x34xf32>
    %670 = arith.addf %631, %669 : vector<16x34xf32>
    %671 = vector.extract_strided_slice %635 {offsets = [0, 0], sizes = [16, 34], strides = [1, 1]} : vector<18x34xf32> to vector<16x34xf32>
    %c19_70 = arith.constant 19 : index
    %672 = memref.load %arg1[%c19_70] : memref<288xf32, #tpu.memory_space<smem>>
    %673 = vector.broadcast %672 : f32 to vector<16x34xf32>
    %674 = arith.mulf %671, %673 : vector<16x34xf32>
    %675 = arith.addf %642, %674 : vector<16x34xf32>
    %c55 = arith.constant 55 : index
    %676 = memref.load %arg1[%c55] : memref<288xf32, #tpu.memory_space<smem>>
    %677 = vector.broadcast %676 : f32 to vector<16x34xf32>
    %678 = arith.mulf %671, %677 : vector<16x34xf32>
    %679 = arith.addf %646, %678 : vector<16x34xf32>
    %c91 = arith.constant 91 : index
    %680 = memref.load %arg1[%c91] : memref<288xf32, #tpu.memory_space<smem>>
    %681 = vector.broadcast %680 : f32 to vector<16x34xf32>
    %682 = arith.mulf %671, %681 : vector<16x34xf32>
    %683 = arith.addf %650, %682 : vector<16x34xf32>
    %c127 = arith.constant 127 : index
    %684 = memref.load %arg1[%c127] : memref<288xf32, #tpu.memory_space<smem>>
    %685 = vector.broadcast %684 : f32 to vector<16x34xf32>
    %686 = arith.mulf %671, %685 : vector<16x34xf32>
    %687 = arith.addf %654, %686 : vector<16x34xf32>
    %c163 = arith.constant 163 : index
    %688 = memref.load %arg1[%c163] : memref<288xf32, #tpu.memory_space<smem>>
    %689 = vector.broadcast %688 : f32 to vector<16x34xf32>
    %690 = arith.mulf %671, %689 : vector<16x34xf32>
    %691 = arith.addf %658, %690 : vector<16x34xf32>
    %c199 = arith.constant 199 : index
    %692 = memref.load %arg1[%c199] : memref<288xf32, #tpu.memory_space<smem>>
    %693 = vector.broadcast %692 : f32 to vector<16x34xf32>
    %694 = arith.mulf %671, %693 : vector<16x34xf32>
    %695 = arith.addf %662, %694 : vector<16x34xf32>
    %c235 = arith.constant 235 : index
    %696 = memref.load %arg1[%c235] : memref<288xf32, #tpu.memory_space<smem>>
    %697 = vector.broadcast %696 : f32 to vector<16x34xf32>
    %698 = arith.mulf %671, %697 : vector<16x34xf32>
    %699 = arith.addf %666, %698 : vector<16x34xf32>
    %c271 = arith.constant 271 : index
    %700 = memref.load %arg1[%c271] : memref<288xf32, #tpu.memory_space<smem>>
    %701 = vector.broadcast %700 : f32 to vector<16x34xf32>
    %702 = arith.mulf %671, %701 : vector<16x34xf32>
    %703 = arith.addf %670, %702 : vector<16x34xf32>
    %704 = vector.extract_strided_slice %637 {offsets = [0, 0], sizes = [16, 34], strides = [1, 1]} : vector<18x34xf32> to vector<16x34xf32>
    %c20 = arith.constant 20 : index
    %705 = memref.load %arg1[%c20] : memref<288xf32, #tpu.memory_space<smem>>
    %706 = vector.broadcast %705 : f32 to vector<16x34xf32>
    %707 = arith.mulf %704, %706 : vector<16x34xf32>
    %708 = arith.addf %675, %707 : vector<16x34xf32>
    %c56 = arith.constant 56 : index
    %709 = memref.load %arg1[%c56] : memref<288xf32, #tpu.memory_space<smem>>
    %710 = vector.broadcast %709 : f32 to vector<16x34xf32>
    %711 = arith.mulf %704, %710 : vector<16x34xf32>
    %712 = arith.addf %679, %711 : vector<16x34xf32>
    %c92 = arith.constant 92 : index
    %713 = memref.load %arg1[%c92] : memref<288xf32, #tpu.memory_space<smem>>
    %714 = vector.broadcast %713 : f32 to vector<16x34xf32>
    %715 = arith.mulf %704, %714 : vector<16x34xf32>
    %716 = arith.addf %683, %715 : vector<16x34xf32>
    %c128 = arith.constant 128 : index
    %717 = memref.load %arg1[%c128] : memref<288xf32, #tpu.memory_space<smem>>
    %718 = vector.broadcast %717 : f32 to vector<16x34xf32>
    %719 = arith.mulf %704, %718 : vector<16x34xf32>
    %720 = arith.addf %687, %719 : vector<16x34xf32>
    %c164 = arith.constant 164 : index
    %721 = memref.load %arg1[%c164] : memref<288xf32, #tpu.memory_space<smem>>
    %722 = vector.broadcast %721 : f32 to vector<16x34xf32>
    %723 = arith.mulf %704, %722 : vector<16x34xf32>
    %724 = arith.addf %691, %723 : vector<16x34xf32>
    %c200 = arith.constant 200 : index
    %725 = memref.load %arg1[%c200] : memref<288xf32, #tpu.memory_space<smem>>
    %726 = vector.broadcast %725 : f32 to vector<16x34xf32>
    %727 = arith.mulf %704, %726 : vector<16x34xf32>
    %728 = arith.addf %695, %727 : vector<16x34xf32>
    %c236 = arith.constant 236 : index
    %729 = memref.load %arg1[%c236] : memref<288xf32, #tpu.memory_space<smem>>
    %730 = vector.broadcast %729 : f32 to vector<16x34xf32>
    %731 = arith.mulf %704, %730 : vector<16x34xf32>
    %732 = arith.addf %699, %731 : vector<16x34xf32>
    %c272 = arith.constant 272 : index
    %733 = memref.load %arg1[%c272] : memref<288xf32, #tpu.memory_space<smem>>
    %734 = vector.broadcast %733 : f32 to vector<16x34xf32>
    %735 = arith.mulf %704, %734 : vector<16x34xf32>
    %736 = arith.addf %703, %735 : vector<16x34xf32>
    %737 = vector.extract_strided_slice %633 {offsets = [1, 0], sizes = [16, 34], strides = [1, 1]} : vector<18x34xf32> to vector<16x34xf32>
    %c21 = arith.constant 21 : index
    %738 = memref.load %arg1[%c21] : memref<288xf32, #tpu.memory_space<smem>>
    %739 = vector.broadcast %738 : f32 to vector<16x34xf32>
    %740 = arith.mulf %737, %739 : vector<16x34xf32>
    %741 = arith.addf %708, %740 : vector<16x34xf32>
    %c57 = arith.constant 57 : index
    %742 = memref.load %arg1[%c57] : memref<288xf32, #tpu.memory_space<smem>>
    %743 = vector.broadcast %742 : f32 to vector<16x34xf32>
    %744 = arith.mulf %737, %743 : vector<16x34xf32>
    %745 = arith.addf %712, %744 : vector<16x34xf32>
    %c93 = arith.constant 93 : index
    %746 = memref.load %arg1[%c93] : memref<288xf32, #tpu.memory_space<smem>>
    %747 = vector.broadcast %746 : f32 to vector<16x34xf32>
    %748 = arith.mulf %737, %747 : vector<16x34xf32>
    %749 = arith.addf %716, %748 : vector<16x34xf32>
    %c129 = arith.constant 129 : index
    %750 = memref.load %arg1[%c129] : memref<288xf32, #tpu.memory_space<smem>>
    %751 = vector.broadcast %750 : f32 to vector<16x34xf32>
    %752 = arith.mulf %737, %751 : vector<16x34xf32>
    %753 = arith.addf %720, %752 : vector<16x34xf32>
    %c165 = arith.constant 165 : index
    %754 = memref.load %arg1[%c165] : memref<288xf32, #tpu.memory_space<smem>>
    %755 = vector.broadcast %754 : f32 to vector<16x34xf32>
    %756 = arith.mulf %737, %755 : vector<16x34xf32>
    %757 = arith.addf %724, %756 : vector<16x34xf32>
    %c201 = arith.constant 201 : index
    %758 = memref.load %arg1[%c201] : memref<288xf32, #tpu.memory_space<smem>>
    %759 = vector.broadcast %758 : f32 to vector<16x34xf32>
    %760 = arith.mulf %737, %759 : vector<16x34xf32>
    %761 = arith.addf %728, %760 : vector<16x34xf32>
    %c237 = arith.constant 237 : index
    %762 = memref.load %arg1[%c237] : memref<288xf32, #tpu.memory_space<smem>>
    %763 = vector.broadcast %762 : f32 to vector<16x34xf32>
    %764 = arith.mulf %737, %763 : vector<16x34xf32>
    %765 = arith.addf %732, %764 : vector<16x34xf32>
    %c273 = arith.constant 273 : index
    %766 = memref.load %arg1[%c273] : memref<288xf32, #tpu.memory_space<smem>>
    %767 = vector.broadcast %766 : f32 to vector<16x34xf32>
    %768 = arith.mulf %737, %767 : vector<16x34xf32>
    %769 = arith.addf %736, %768 : vector<16x34xf32>
    %770 = vector.extract_strided_slice %635 {offsets = [1, 0], sizes = [16, 34], strides = [1, 1]} : vector<18x34xf32> to vector<16x34xf32>
    %c22 = arith.constant 22 : index
    %771 = memref.load %arg1[%c22] : memref<288xf32, #tpu.memory_space<smem>>
    %772 = vector.broadcast %771 : f32 to vector<16x34xf32>
    %773 = arith.mulf %770, %772 : vector<16x34xf32>
    %774 = arith.addf %741, %773 : vector<16x34xf32>
    %c58 = arith.constant 58 : index
    %775 = memref.load %arg1[%c58] : memref<288xf32, #tpu.memory_space<smem>>
    %776 = vector.broadcast %775 : f32 to vector<16x34xf32>
    %777 = arith.mulf %770, %776 : vector<16x34xf32>
    %778 = arith.addf %745, %777 : vector<16x34xf32>
    %c94 = arith.constant 94 : index
    %779 = memref.load %arg1[%c94] : memref<288xf32, #tpu.memory_space<smem>>
    %780 = vector.broadcast %779 : f32 to vector<16x34xf32>
    %781 = arith.mulf %770, %780 : vector<16x34xf32>
    %782 = arith.addf %749, %781 : vector<16x34xf32>
    %c130 = arith.constant 130 : index
    %783 = memref.load %arg1[%c130] : memref<288xf32, #tpu.memory_space<smem>>
    %784 = vector.broadcast %783 : f32 to vector<16x34xf32>
    %785 = arith.mulf %770, %784 : vector<16x34xf32>
    %786 = arith.addf %753, %785 : vector<16x34xf32>
    %c166 = arith.constant 166 : index
    %787 = memref.load %arg1[%c166] : memref<288xf32, #tpu.memory_space<smem>>
    %788 = vector.broadcast %787 : f32 to vector<16x34xf32>
    %789 = arith.mulf %770, %788 : vector<16x34xf32>
    %790 = arith.addf %757, %789 : vector<16x34xf32>
    %c202 = arith.constant 202 : index
    %791 = memref.load %arg1[%c202] : memref<288xf32, #tpu.memory_space<smem>>
    %792 = vector.broadcast %791 : f32 to vector<16x34xf32>
    %793 = arith.mulf %770, %792 : vector<16x34xf32>
    %794 = arith.addf %761, %793 : vector<16x34xf32>
    %c238 = arith.constant 238 : index
    %795 = memref.load %arg1[%c238] : memref<288xf32, #tpu.memory_space<smem>>
    %796 = vector.broadcast %795 : f32 to vector<16x34xf32>
    %797 = arith.mulf %770, %796 : vector<16x34xf32>
    %798 = arith.addf %765, %797 : vector<16x34xf32>
    %c274 = arith.constant 274 : index
    %799 = memref.load %arg1[%c274] : memref<288xf32, #tpu.memory_space<smem>>
    %800 = vector.broadcast %799 : f32 to vector<16x34xf32>
    %801 = arith.mulf %770, %800 : vector<16x34xf32>
    %802 = arith.addf %769, %801 : vector<16x34xf32>
    %803 = vector.extract_strided_slice %637 {offsets = [1, 0], sizes = [16, 34], strides = [1, 1]} : vector<18x34xf32> to vector<16x34xf32>
    %c23 = arith.constant 23 : index
    %804 = memref.load %arg1[%c23] : memref<288xf32, #tpu.memory_space<smem>>
    %805 = vector.broadcast %804 : f32 to vector<16x34xf32>
    %806 = arith.mulf %803, %805 : vector<16x34xf32>
    %807 = arith.addf %774, %806 : vector<16x34xf32>
    %c59 = arith.constant 59 : index
    %808 = memref.load %arg1[%c59] : memref<288xf32, #tpu.memory_space<smem>>
    %809 = vector.broadcast %808 : f32 to vector<16x34xf32>
    %810 = arith.mulf %803, %809 : vector<16x34xf32>
    %811 = arith.addf %778, %810 : vector<16x34xf32>
    %c95 = arith.constant 95 : index
    %812 = memref.load %arg1[%c95] : memref<288xf32, #tpu.memory_space<smem>>
    %813 = vector.broadcast %812 : f32 to vector<16x34xf32>
    %814 = arith.mulf %803, %813 : vector<16x34xf32>
    %815 = arith.addf %782, %814 : vector<16x34xf32>
    %c131 = arith.constant 131 : index
    %816 = memref.load %arg1[%c131] : memref<288xf32, #tpu.memory_space<smem>>
    %817 = vector.broadcast %816 : f32 to vector<16x34xf32>
    %818 = arith.mulf %803, %817 : vector<16x34xf32>
    %819 = arith.addf %786, %818 : vector<16x34xf32>
    %c167 = arith.constant 167 : index
    %820 = memref.load %arg1[%c167] : memref<288xf32, #tpu.memory_space<smem>>
    %821 = vector.broadcast %820 : f32 to vector<16x34xf32>
    %822 = arith.mulf %803, %821 : vector<16x34xf32>
    %823 = arith.addf %790, %822 : vector<16x34xf32>
    %c203 = arith.constant 203 : index
    %824 = memref.load %arg1[%c203] : memref<288xf32, #tpu.memory_space<smem>>
    %825 = vector.broadcast %824 : f32 to vector<16x34xf32>
    %826 = arith.mulf %803, %825 : vector<16x34xf32>
    %827 = arith.addf %794, %826 : vector<16x34xf32>
    %c239 = arith.constant 239 : index
    %828 = memref.load %arg1[%c239] : memref<288xf32, #tpu.memory_space<smem>>
    %829 = vector.broadcast %828 : f32 to vector<16x34xf32>
    %830 = arith.mulf %803, %829 : vector<16x34xf32>
    %831 = arith.addf %798, %830 : vector<16x34xf32>
    %c275 = arith.constant 275 : index
    %832 = memref.load %arg1[%c275] : memref<288xf32, #tpu.memory_space<smem>>
    %833 = vector.broadcast %832 : f32 to vector<16x34xf32>
    %834 = arith.mulf %803, %833 : vector<16x34xf32>
    %835 = arith.addf %802, %834 : vector<16x34xf32>
    %836 = vector.extract_strided_slice %633 {offsets = [2, 0], sizes = [16, 34], strides = [1, 1]} : vector<18x34xf32> to vector<16x34xf32>
    %c24 = arith.constant 24 : index
    %837 = memref.load %arg1[%c24] : memref<288xf32, #tpu.memory_space<smem>>
    %838 = vector.broadcast %837 : f32 to vector<16x34xf32>
    %839 = arith.mulf %836, %838 : vector<16x34xf32>
    %840 = arith.addf %807, %839 : vector<16x34xf32>
    %c60 = arith.constant 60 : index
    %841 = memref.load %arg1[%c60] : memref<288xf32, #tpu.memory_space<smem>>
    %842 = vector.broadcast %841 : f32 to vector<16x34xf32>
    %843 = arith.mulf %836, %842 : vector<16x34xf32>
    %844 = arith.addf %811, %843 : vector<16x34xf32>
    %c96 = arith.constant 96 : index
    %845 = memref.load %arg1[%c96] : memref<288xf32, #tpu.memory_space<smem>>
    %846 = vector.broadcast %845 : f32 to vector<16x34xf32>
    %847 = arith.mulf %836, %846 : vector<16x34xf32>
    %848 = arith.addf %815, %847 : vector<16x34xf32>
    %c132 = arith.constant 132 : index
    %849 = memref.load %arg1[%c132] : memref<288xf32, #tpu.memory_space<smem>>
    %850 = vector.broadcast %849 : f32 to vector<16x34xf32>
    %851 = arith.mulf %836, %850 : vector<16x34xf32>
    %852 = arith.addf %819, %851 : vector<16x34xf32>
    %c168 = arith.constant 168 : index
    %853 = memref.load %arg1[%c168] : memref<288xf32, #tpu.memory_space<smem>>
    %854 = vector.broadcast %853 : f32 to vector<16x34xf32>
    %855 = arith.mulf %836, %854 : vector<16x34xf32>
    %856 = arith.addf %823, %855 : vector<16x34xf32>
    %c204 = arith.constant 204 : index
    %857 = memref.load %arg1[%c204] : memref<288xf32, #tpu.memory_space<smem>>
    %858 = vector.broadcast %857 : f32 to vector<16x34xf32>
    %859 = arith.mulf %836, %858 : vector<16x34xf32>
    %860 = arith.addf %827, %859 : vector<16x34xf32>
    %c240 = arith.constant 240 : index
    %861 = memref.load %arg1[%c240] : memref<288xf32, #tpu.memory_space<smem>>
    %862 = vector.broadcast %861 : f32 to vector<16x34xf32>
    %863 = arith.mulf %836, %862 : vector<16x34xf32>
    %864 = arith.addf %831, %863 : vector<16x34xf32>
    %c276 = arith.constant 276 : index
    %865 = memref.load %arg1[%c276] : memref<288xf32, #tpu.memory_space<smem>>
    %866 = vector.broadcast %865 : f32 to vector<16x34xf32>
    %867 = arith.mulf %836, %866 : vector<16x34xf32>
    %868 = arith.addf %835, %867 : vector<16x34xf32>
    %869 = vector.extract_strided_slice %635 {offsets = [2, 0], sizes = [16, 34], strides = [1, 1]} : vector<18x34xf32> to vector<16x34xf32>
    %c25 = arith.constant 25 : index
    %870 = memref.load %arg1[%c25] : memref<288xf32, #tpu.memory_space<smem>>
    %871 = vector.broadcast %870 : f32 to vector<16x34xf32>
    %872 = arith.mulf %869, %871 : vector<16x34xf32>
    %873 = arith.addf %840, %872 : vector<16x34xf32>
    %c61 = arith.constant 61 : index
    %874 = memref.load %arg1[%c61] : memref<288xf32, #tpu.memory_space<smem>>
    %875 = vector.broadcast %874 : f32 to vector<16x34xf32>
    %876 = arith.mulf %869, %875 : vector<16x34xf32>
    %877 = arith.addf %844, %876 : vector<16x34xf32>
    %c97 = arith.constant 97 : index
    %878 = memref.load %arg1[%c97] : memref<288xf32, #tpu.memory_space<smem>>
    %879 = vector.broadcast %878 : f32 to vector<16x34xf32>
    %880 = arith.mulf %869, %879 : vector<16x34xf32>
    %881 = arith.addf %848, %880 : vector<16x34xf32>
    %c133 = arith.constant 133 : index
    %882 = memref.load %arg1[%c133] : memref<288xf32, #tpu.memory_space<smem>>
    %883 = vector.broadcast %882 : f32 to vector<16x34xf32>
    %884 = arith.mulf %869, %883 : vector<16x34xf32>
    %885 = arith.addf %852, %884 : vector<16x34xf32>
    %c169 = arith.constant 169 : index
    %886 = memref.load %arg1[%c169] : memref<288xf32, #tpu.memory_space<smem>>
    %887 = vector.broadcast %886 : f32 to vector<16x34xf32>
    %888 = arith.mulf %869, %887 : vector<16x34xf32>
    %889 = arith.addf %856, %888 : vector<16x34xf32>
    %c205 = arith.constant 205 : index
    %890 = memref.load %arg1[%c205] : memref<288xf32, #tpu.memory_space<smem>>
    %891 = vector.broadcast %890 : f32 to vector<16x34xf32>
    %892 = arith.mulf %869, %891 : vector<16x34xf32>
    %893 = arith.addf %860, %892 : vector<16x34xf32>
    %c241 = arith.constant 241 : index
    %894 = memref.load %arg1[%c241] : memref<288xf32, #tpu.memory_space<smem>>
    %895 = vector.broadcast %894 : f32 to vector<16x34xf32>
    %896 = arith.mulf %869, %895 : vector<16x34xf32>
    %897 = arith.addf %864, %896 : vector<16x34xf32>
    %c277 = arith.constant 277 : index
    %898 = memref.load %arg1[%c277] : memref<288xf32, #tpu.memory_space<smem>>
    %899 = vector.broadcast %898 : f32 to vector<16x34xf32>
    %900 = arith.mulf %869, %899 : vector<16x34xf32>
    %901 = arith.addf %868, %900 : vector<16x34xf32>
    %902 = vector.extract_strided_slice %637 {offsets = [2, 0], sizes = [16, 34], strides = [1, 1]} : vector<18x34xf32> to vector<16x34xf32>
    %c26 = arith.constant 26 : index
    %903 = memref.load %arg1[%c26] : memref<288xf32, #tpu.memory_space<smem>>
    %904 = vector.broadcast %903 : f32 to vector<16x34xf32>
    %905 = arith.mulf %902, %904 : vector<16x34xf32>
    %906 = arith.addf %873, %905 : vector<16x34xf32>
    %c62 = arith.constant 62 : index
    %907 = memref.load %arg1[%c62] : memref<288xf32, #tpu.memory_space<smem>>
    %908 = vector.broadcast %907 : f32 to vector<16x34xf32>
    %909 = arith.mulf %902, %908 : vector<16x34xf32>
    %910 = arith.addf %877, %909 : vector<16x34xf32>
    %c98 = arith.constant 98 : index
    %911 = memref.load %arg1[%c98] : memref<288xf32, #tpu.memory_space<smem>>
    %912 = vector.broadcast %911 : f32 to vector<16x34xf32>
    %913 = arith.mulf %902, %912 : vector<16x34xf32>
    %914 = arith.addf %881, %913 : vector<16x34xf32>
    %c134 = arith.constant 134 : index
    %915 = memref.load %arg1[%c134] : memref<288xf32, #tpu.memory_space<smem>>
    %916 = vector.broadcast %915 : f32 to vector<16x34xf32>
    %917 = arith.mulf %902, %916 : vector<16x34xf32>
    %918 = arith.addf %885, %917 : vector<16x34xf32>
    %c170 = arith.constant 170 : index
    %919 = memref.load %arg1[%c170] : memref<288xf32, #tpu.memory_space<smem>>
    %920 = vector.broadcast %919 : f32 to vector<16x34xf32>
    %921 = arith.mulf %902, %920 : vector<16x34xf32>
    %922 = arith.addf %889, %921 : vector<16x34xf32>
    %c206 = arith.constant 206 : index
    %923 = memref.load %arg1[%c206] : memref<288xf32, #tpu.memory_space<smem>>
    %924 = vector.broadcast %923 : f32 to vector<16x34xf32>
    %925 = arith.mulf %902, %924 : vector<16x34xf32>
    %926 = arith.addf %893, %925 : vector<16x34xf32>
    %c242 = arith.constant 242 : index
    %927 = memref.load %arg1[%c242] : memref<288xf32, #tpu.memory_space<smem>>
    %928 = vector.broadcast %927 : f32 to vector<16x34xf32>
    %929 = arith.mulf %902, %928 : vector<16x34xf32>
    %930 = arith.addf %897, %929 : vector<16x34xf32>
    %c278 = arith.constant 278 : index
    %931 = memref.load %arg1[%c278] : memref<288xf32, #tpu.memory_space<smem>>
    %932 = vector.broadcast %931 : f32 to vector<16x34xf32>
    %933 = arith.mulf %902, %932 : vector<16x34xf32>
    %934 = arith.addf %901, %933 : vector<16x34xf32>
    %c3_71 = arith.constant 3 : index
    %c0_72 = arith.constant 0 : index
    %c0_73 = arith.constant 0 : index
    %935 = vector.load %arg4[%c3_71, %c0_72, %c0_73] : memref<4x18x36xf32, #tpu.memory_space<vmem>>, vector<1x18x34xf32>
    %936 = vector.shape_cast %935 : vector<1x18x34xf32> to vector<18x34xf32>
    %c3_74 = arith.constant 3 : index
    %c0_75 = arith.constant 0 : index
    %c1_76 = arith.constant 1 : index
    %937 = vector.load %arg4[%c3_74, %c0_75, %c1_76] : memref<4x18x36xf32, #tpu.memory_space<vmem>>, vector<1x18x34xf32>
    %938 = vector.shape_cast %937 : vector<1x18x34xf32> to vector<18x34xf32>
    %c3_77 = arith.constant 3 : index
    %c0_78 = arith.constant 0 : index
    %c2_79 = arith.constant 2 : index
    %939 = vector.load %arg4[%c3_77, %c0_78, %c2_79] : memref<4x18x36xf32, #tpu.memory_space<vmem>>, vector<1x18x34xf32>
    %940 = vector.shape_cast %939 : vector<1x18x34xf32> to vector<18x34xf32>
    %941 = vector.extract_strided_slice %936 {offsets = [0, 0], sizes = [16, 34], strides = [1, 1]} : vector<18x34xf32> to vector<16x34xf32>
    %c27 = arith.constant 27 : index
    %942 = memref.load %arg1[%c27] : memref<288xf32, #tpu.memory_space<smem>>
    %943 = vector.broadcast %942 : f32 to vector<16x34xf32>
    %944 = arith.mulf %941, %943 : vector<16x34xf32>
    %945 = arith.addf %906, %944 : vector<16x34xf32>
    %c63 = arith.constant 63 : index
    %946 = memref.load %arg1[%c63] : memref<288xf32, #tpu.memory_space<smem>>
    %947 = vector.broadcast %946 : f32 to vector<16x34xf32>
    %948 = arith.mulf %941, %947 : vector<16x34xf32>
    %949 = arith.addf %910, %948 : vector<16x34xf32>
    %c99 = arith.constant 99 : index
    %950 = memref.load %arg1[%c99] : memref<288xf32, #tpu.memory_space<smem>>
    %951 = vector.broadcast %950 : f32 to vector<16x34xf32>
    %952 = arith.mulf %941, %951 : vector<16x34xf32>
    %953 = arith.addf %914, %952 : vector<16x34xf32>
    %c135 = arith.constant 135 : index
    %954 = memref.load %arg1[%c135] : memref<288xf32, #tpu.memory_space<smem>>
    %955 = vector.broadcast %954 : f32 to vector<16x34xf32>
    %956 = arith.mulf %941, %955 : vector<16x34xf32>
    %957 = arith.addf %918, %956 : vector<16x34xf32>
    %c171 = arith.constant 171 : index
    %958 = memref.load %arg1[%c171] : memref<288xf32, #tpu.memory_space<smem>>
    %959 = vector.broadcast %958 : f32 to vector<16x34xf32>
    %960 = arith.mulf %941, %959 : vector<16x34xf32>
    %961 = arith.addf %922, %960 : vector<16x34xf32>
    %c207 = arith.constant 207 : index
    %962 = memref.load %arg1[%c207] : memref<288xf32, #tpu.memory_space<smem>>
    %963 = vector.broadcast %962 : f32 to vector<16x34xf32>
    %964 = arith.mulf %941, %963 : vector<16x34xf32>
    %965 = arith.addf %926, %964 : vector<16x34xf32>
    %c243 = arith.constant 243 : index
    %966 = memref.load %arg1[%c243] : memref<288xf32, #tpu.memory_space<smem>>
    %967 = vector.broadcast %966 : f32 to vector<16x34xf32>
    %968 = arith.mulf %941, %967 : vector<16x34xf32>
    %969 = arith.addf %930, %968 : vector<16x34xf32>
    %c279 = arith.constant 279 : index
    %970 = memref.load %arg1[%c279] : memref<288xf32, #tpu.memory_space<smem>>
    %971 = vector.broadcast %970 : f32 to vector<16x34xf32>
    %972 = arith.mulf %941, %971 : vector<16x34xf32>
    %973 = arith.addf %934, %972 : vector<16x34xf32>
    %974 = vector.extract_strided_slice %938 {offsets = [0, 0], sizes = [16, 34], strides = [1, 1]} : vector<18x34xf32> to vector<16x34xf32>
    %c28 = arith.constant 28 : index
    %975 = memref.load %arg1[%c28] : memref<288xf32, #tpu.memory_space<smem>>
    %976 = vector.broadcast %975 : f32 to vector<16x34xf32>
    %977 = arith.mulf %974, %976 : vector<16x34xf32>
    %978 = arith.addf %945, %977 : vector<16x34xf32>
    %c64 = arith.constant 64 : index
    %979 = memref.load %arg1[%c64] : memref<288xf32, #tpu.memory_space<smem>>
    %980 = vector.broadcast %979 : f32 to vector<16x34xf32>
    %981 = arith.mulf %974, %980 : vector<16x34xf32>
    %982 = arith.addf %949, %981 : vector<16x34xf32>
    %c100 = arith.constant 100 : index
    %983 = memref.load %arg1[%c100] : memref<288xf32, #tpu.memory_space<smem>>
    %984 = vector.broadcast %983 : f32 to vector<16x34xf32>
    %985 = arith.mulf %974, %984 : vector<16x34xf32>
    %986 = arith.addf %953, %985 : vector<16x34xf32>
    %c136 = arith.constant 136 : index
    %987 = memref.load %arg1[%c136] : memref<288xf32, #tpu.memory_space<smem>>
    %988 = vector.broadcast %987 : f32 to vector<16x34xf32>
    %989 = arith.mulf %974, %988 : vector<16x34xf32>
    %990 = arith.addf %957, %989 : vector<16x34xf32>
    %c172 = arith.constant 172 : index
    %991 = memref.load %arg1[%c172] : memref<288xf32, #tpu.memory_space<smem>>
    %992 = vector.broadcast %991 : f32 to vector<16x34xf32>
    %993 = arith.mulf %974, %992 : vector<16x34xf32>
    %994 = arith.addf %961, %993 : vector<16x34xf32>
    %c208 = arith.constant 208 : index
    %995 = memref.load %arg1[%c208] : memref<288xf32, #tpu.memory_space<smem>>
    %996 = vector.broadcast %995 : f32 to vector<16x34xf32>
    %997 = arith.mulf %974, %996 : vector<16x34xf32>
    %998 = arith.addf %965, %997 : vector<16x34xf32>
    %c244 = arith.constant 244 : index
    %999 = memref.load %arg1[%c244] : memref<288xf32, #tpu.memory_space<smem>>
    %1000 = vector.broadcast %999 : f32 to vector<16x34xf32>
    %1001 = arith.mulf %974, %1000 : vector<16x34xf32>
    %1002 = arith.addf %969, %1001 : vector<16x34xf32>
    %c280 = arith.constant 280 : index
    %1003 = memref.load %arg1[%c280] : memref<288xf32, #tpu.memory_space<smem>>
    %1004 = vector.broadcast %1003 : f32 to vector<16x34xf32>
    %1005 = arith.mulf %974, %1004 : vector<16x34xf32>
    %1006 = arith.addf %973, %1005 : vector<16x34xf32>
    %1007 = vector.extract_strided_slice %940 {offsets = [0, 0], sizes = [16, 34], strides = [1, 1]} : vector<18x34xf32> to vector<16x34xf32>
    %c29 = arith.constant 29 : index
    %1008 = memref.load %arg1[%c29] : memref<288xf32, #tpu.memory_space<smem>>
    %1009 = vector.broadcast %1008 : f32 to vector<16x34xf32>
    %1010 = arith.mulf %1007, %1009 : vector<16x34xf32>
    %1011 = arith.addf %978, %1010 : vector<16x34xf32>
    %c65 = arith.constant 65 : index
    %1012 = memref.load %arg1[%c65] : memref<288xf32, #tpu.memory_space<smem>>
    %1013 = vector.broadcast %1012 : f32 to vector<16x34xf32>
    %1014 = arith.mulf %1007, %1013 : vector<16x34xf32>
    %1015 = arith.addf %982, %1014 : vector<16x34xf32>
    %c101 = arith.constant 101 : index
    %1016 = memref.load %arg1[%c101] : memref<288xf32, #tpu.memory_space<smem>>
    %1017 = vector.broadcast %1016 : f32 to vector<16x34xf32>
    %1018 = arith.mulf %1007, %1017 : vector<16x34xf32>
    %1019 = arith.addf %986, %1018 : vector<16x34xf32>
    %c137 = arith.constant 137 : index
    %1020 = memref.load %arg1[%c137] : memref<288xf32, #tpu.memory_space<smem>>
    %1021 = vector.broadcast %1020 : f32 to vector<16x34xf32>
    %1022 = arith.mulf %1007, %1021 : vector<16x34xf32>
    %1023 = arith.addf %990, %1022 : vector<16x34xf32>
    %c173 = arith.constant 173 : index
    %1024 = memref.load %arg1[%c173] : memref<288xf32, #tpu.memory_space<smem>>
    %1025 = vector.broadcast %1024 : f32 to vector<16x34xf32>
    %1026 = arith.mulf %1007, %1025 : vector<16x34xf32>
    %1027 = arith.addf %994, %1026 : vector<16x34xf32>
    %c209 = arith.constant 209 : index
    %1028 = memref.load %arg1[%c209] : memref<288xf32, #tpu.memory_space<smem>>
    %1029 = vector.broadcast %1028 : f32 to vector<16x34xf32>
    %1030 = arith.mulf %1007, %1029 : vector<16x34xf32>
    %1031 = arith.addf %998, %1030 : vector<16x34xf32>
    %c245 = arith.constant 245 : index
    %1032 = memref.load %arg1[%c245] : memref<288xf32, #tpu.memory_space<smem>>
    %1033 = vector.broadcast %1032 : f32 to vector<16x34xf32>
    %1034 = arith.mulf %1007, %1033 : vector<16x34xf32>
    %1035 = arith.addf %1002, %1034 : vector<16x34xf32>
    %c281 = arith.constant 281 : index
    %1036 = memref.load %arg1[%c281] : memref<288xf32, #tpu.memory_space<smem>>
    %1037 = vector.broadcast %1036 : f32 to vector<16x34xf32>
    %1038 = arith.mulf %1007, %1037 : vector<16x34xf32>
    %1039 = arith.addf %1006, %1038 : vector<16x34xf32>
    %1040 = vector.extract_strided_slice %936 {offsets = [1, 0], sizes = [16, 34], strides = [1, 1]} : vector<18x34xf32> to vector<16x34xf32>
    %c30 = arith.constant 30 : index
    %1041 = memref.load %arg1[%c30] : memref<288xf32, #tpu.memory_space<smem>>
    %1042 = vector.broadcast %1041 : f32 to vector<16x34xf32>
    %1043 = arith.mulf %1040, %1042 : vector<16x34xf32>
    %1044 = arith.addf %1011, %1043 : vector<16x34xf32>
    %c66 = arith.constant 66 : index
    %1045 = memref.load %arg1[%c66] : memref<288xf32, #tpu.memory_space<smem>>
    %1046 = vector.broadcast %1045 : f32 to vector<16x34xf32>
    %1047 = arith.mulf %1040, %1046 : vector<16x34xf32>
    %1048 = arith.addf %1015, %1047 : vector<16x34xf32>
    %c102 = arith.constant 102 : index
    %1049 = memref.load %arg1[%c102] : memref<288xf32, #tpu.memory_space<smem>>
    %1050 = vector.broadcast %1049 : f32 to vector<16x34xf32>
    %1051 = arith.mulf %1040, %1050 : vector<16x34xf32>
    %1052 = arith.addf %1019, %1051 : vector<16x34xf32>
    %c138 = arith.constant 138 : index
    %1053 = memref.load %arg1[%c138] : memref<288xf32, #tpu.memory_space<smem>>
    %1054 = vector.broadcast %1053 : f32 to vector<16x34xf32>
    %1055 = arith.mulf %1040, %1054 : vector<16x34xf32>
    %1056 = arith.addf %1023, %1055 : vector<16x34xf32>
    %c174 = arith.constant 174 : index
    %1057 = memref.load %arg1[%c174] : memref<288xf32, #tpu.memory_space<smem>>
    %1058 = vector.broadcast %1057 : f32 to vector<16x34xf32>
    %1059 = arith.mulf %1040, %1058 : vector<16x34xf32>
    %1060 = arith.addf %1027, %1059 : vector<16x34xf32>
    %c210 = arith.constant 210 : index
    %1061 = memref.load %arg1[%c210] : memref<288xf32, #tpu.memory_space<smem>>
    %1062 = vector.broadcast %1061 : f32 to vector<16x34xf32>
    %1063 = arith.mulf %1040, %1062 : vector<16x34xf32>
    %1064 = arith.addf %1031, %1063 : vector<16x34xf32>
    %c246 = arith.constant 246 : index
    %1065 = memref.load %arg1[%c246] : memref<288xf32, #tpu.memory_space<smem>>
    %1066 = vector.broadcast %1065 : f32 to vector<16x34xf32>
    %1067 = arith.mulf %1040, %1066 : vector<16x34xf32>
    %1068 = arith.addf %1035, %1067 : vector<16x34xf32>
    %c282 = arith.constant 282 : index
    %1069 = memref.load %arg1[%c282] : memref<288xf32, #tpu.memory_space<smem>>
    %1070 = vector.broadcast %1069 : f32 to vector<16x34xf32>
    %1071 = arith.mulf %1040, %1070 : vector<16x34xf32>
    %1072 = arith.addf %1039, %1071 : vector<16x34xf32>
    %1073 = vector.extract_strided_slice %938 {offsets = [1, 0], sizes = [16, 34], strides = [1, 1]} : vector<18x34xf32> to vector<16x34xf32>
    %c31 = arith.constant 31 : index
    %1074 = memref.load %arg1[%c31] : memref<288xf32, #tpu.memory_space<smem>>
    %1075 = vector.broadcast %1074 : f32 to vector<16x34xf32>
    %1076 = arith.mulf %1073, %1075 : vector<16x34xf32>
    %1077 = arith.addf %1044, %1076 : vector<16x34xf32>
    %c67 = arith.constant 67 : index
    %1078 = memref.load %arg1[%c67] : memref<288xf32, #tpu.memory_space<smem>>
    %1079 = vector.broadcast %1078 : f32 to vector<16x34xf32>
    %1080 = arith.mulf %1073, %1079 : vector<16x34xf32>
    %1081 = arith.addf %1048, %1080 : vector<16x34xf32>
    %c103 = arith.constant 103 : index
    %1082 = memref.load %arg1[%c103] : memref<288xf32, #tpu.memory_space<smem>>
    %1083 = vector.broadcast %1082 : f32 to vector<16x34xf32>
    %1084 = arith.mulf %1073, %1083 : vector<16x34xf32>
    %1085 = arith.addf %1052, %1084 : vector<16x34xf32>
    %c139 = arith.constant 139 : index
    %1086 = memref.load %arg1[%c139] : memref<288xf32, #tpu.memory_space<smem>>
    %1087 = vector.broadcast %1086 : f32 to vector<16x34xf32>
    %1088 = arith.mulf %1073, %1087 : vector<16x34xf32>
    %1089 = arith.addf %1056, %1088 : vector<16x34xf32>
    %c175 = arith.constant 175 : index
    %1090 = memref.load %arg1[%c175] : memref<288xf32, #tpu.memory_space<smem>>
    %1091 = vector.broadcast %1090 : f32 to vector<16x34xf32>
    %1092 = arith.mulf %1073, %1091 : vector<16x34xf32>
    %1093 = arith.addf %1060, %1092 : vector<16x34xf32>
    %c211 = arith.constant 211 : index
    %1094 = memref.load %arg1[%c211] : memref<288xf32, #tpu.memory_space<smem>>
    %1095 = vector.broadcast %1094 : f32 to vector<16x34xf32>
    %1096 = arith.mulf %1073, %1095 : vector<16x34xf32>
    %1097 = arith.addf %1064, %1096 : vector<16x34xf32>
    %c247 = arith.constant 247 : index
    %1098 = memref.load %arg1[%c247] : memref<288xf32, #tpu.memory_space<smem>>
    %1099 = vector.broadcast %1098 : f32 to vector<16x34xf32>
    %1100 = arith.mulf %1073, %1099 : vector<16x34xf32>
    %1101 = arith.addf %1068, %1100 : vector<16x34xf32>
    %c283 = arith.constant 283 : index
    %1102 = memref.load %arg1[%c283] : memref<288xf32, #tpu.memory_space<smem>>
    %1103 = vector.broadcast %1102 : f32 to vector<16x34xf32>
    %1104 = arith.mulf %1073, %1103 : vector<16x34xf32>
    %1105 = arith.addf %1072, %1104 : vector<16x34xf32>
    %1106 = vector.extract_strided_slice %940 {offsets = [1, 0], sizes = [16, 34], strides = [1, 1]} : vector<18x34xf32> to vector<16x34xf32>
    %c32 = arith.constant 32 : index
    %1107 = memref.load %arg1[%c32] : memref<288xf32, #tpu.memory_space<smem>>
    %1108 = vector.broadcast %1107 : f32 to vector<16x34xf32>
    %1109 = arith.mulf %1106, %1108 : vector<16x34xf32>
    %1110 = arith.addf %1077, %1109 : vector<16x34xf32>
    %c68 = arith.constant 68 : index
    %1111 = memref.load %arg1[%c68] : memref<288xf32, #tpu.memory_space<smem>>
    %1112 = vector.broadcast %1111 : f32 to vector<16x34xf32>
    %1113 = arith.mulf %1106, %1112 : vector<16x34xf32>
    %1114 = arith.addf %1081, %1113 : vector<16x34xf32>
    %c104 = arith.constant 104 : index
    %1115 = memref.load %arg1[%c104] : memref<288xf32, #tpu.memory_space<smem>>
    %1116 = vector.broadcast %1115 : f32 to vector<16x34xf32>
    %1117 = arith.mulf %1106, %1116 : vector<16x34xf32>
    %1118 = arith.addf %1085, %1117 : vector<16x34xf32>
    %c140 = arith.constant 140 : index
    %1119 = memref.load %arg1[%c140] : memref<288xf32, #tpu.memory_space<smem>>
    %1120 = vector.broadcast %1119 : f32 to vector<16x34xf32>
    %1121 = arith.mulf %1106, %1120 : vector<16x34xf32>
    %1122 = arith.addf %1089, %1121 : vector<16x34xf32>
    %c176 = arith.constant 176 : index
    %1123 = memref.load %arg1[%c176] : memref<288xf32, #tpu.memory_space<smem>>
    %1124 = vector.broadcast %1123 : f32 to vector<16x34xf32>
    %1125 = arith.mulf %1106, %1124 : vector<16x34xf32>
    %1126 = arith.addf %1093, %1125 : vector<16x34xf32>
    %c212 = arith.constant 212 : index
    %1127 = memref.load %arg1[%c212] : memref<288xf32, #tpu.memory_space<smem>>
    %1128 = vector.broadcast %1127 : f32 to vector<16x34xf32>
    %1129 = arith.mulf %1106, %1128 : vector<16x34xf32>
    %1130 = arith.addf %1097, %1129 : vector<16x34xf32>
    %c248 = arith.constant 248 : index
    %1131 = memref.load %arg1[%c248] : memref<288xf32, #tpu.memory_space<smem>>
    %1132 = vector.broadcast %1131 : f32 to vector<16x34xf32>
    %1133 = arith.mulf %1106, %1132 : vector<16x34xf32>
    %1134 = arith.addf %1101, %1133 : vector<16x34xf32>
    %c284 = arith.constant 284 : index
    %1135 = memref.load %arg1[%c284] : memref<288xf32, #tpu.memory_space<smem>>
    %1136 = vector.broadcast %1135 : f32 to vector<16x34xf32>
    %1137 = arith.mulf %1106, %1136 : vector<16x34xf32>
    %1138 = arith.addf %1105, %1137 : vector<16x34xf32>
    %1139 = vector.extract_strided_slice %936 {offsets = [2, 0], sizes = [16, 34], strides = [1, 1]} : vector<18x34xf32> to vector<16x34xf32>
    %c33 = arith.constant 33 : index
    %1140 = memref.load %arg1[%c33] : memref<288xf32, #tpu.memory_space<smem>>
    %1141 = vector.broadcast %1140 : f32 to vector<16x34xf32>
    %1142 = arith.mulf %1139, %1141 : vector<16x34xf32>
    %1143 = arith.addf %1110, %1142 : vector<16x34xf32>
    %c69 = arith.constant 69 : index
    %1144 = memref.load %arg1[%c69] : memref<288xf32, #tpu.memory_space<smem>>
    %1145 = vector.broadcast %1144 : f32 to vector<16x34xf32>
    %1146 = arith.mulf %1139, %1145 : vector<16x34xf32>
    %1147 = arith.addf %1114, %1146 : vector<16x34xf32>
    %c105 = arith.constant 105 : index
    %1148 = memref.load %arg1[%c105] : memref<288xf32, #tpu.memory_space<smem>>
    %1149 = vector.broadcast %1148 : f32 to vector<16x34xf32>
    %1150 = arith.mulf %1139, %1149 : vector<16x34xf32>
    %1151 = arith.addf %1118, %1150 : vector<16x34xf32>
    %c141 = arith.constant 141 : index
    %1152 = memref.load %arg1[%c141] : memref<288xf32, #tpu.memory_space<smem>>
    %1153 = vector.broadcast %1152 : f32 to vector<16x34xf32>
    %1154 = arith.mulf %1139, %1153 : vector<16x34xf32>
    %1155 = arith.addf %1122, %1154 : vector<16x34xf32>
    %c177 = arith.constant 177 : index
    %1156 = memref.load %arg1[%c177] : memref<288xf32, #tpu.memory_space<smem>>
    %1157 = vector.broadcast %1156 : f32 to vector<16x34xf32>
    %1158 = arith.mulf %1139, %1157 : vector<16x34xf32>
    %1159 = arith.addf %1126, %1158 : vector<16x34xf32>
    %c213 = arith.constant 213 : index
    %1160 = memref.load %arg1[%c213] : memref<288xf32, #tpu.memory_space<smem>>
    %1161 = vector.broadcast %1160 : f32 to vector<16x34xf32>
    %1162 = arith.mulf %1139, %1161 : vector<16x34xf32>
    %1163 = arith.addf %1130, %1162 : vector<16x34xf32>
    %c249 = arith.constant 249 : index
    %1164 = memref.load %arg1[%c249] : memref<288xf32, #tpu.memory_space<smem>>
    %1165 = vector.broadcast %1164 : f32 to vector<16x34xf32>
    %1166 = arith.mulf %1139, %1165 : vector<16x34xf32>
    %1167 = arith.addf %1134, %1166 : vector<16x34xf32>
    %c285 = arith.constant 285 : index
    %1168 = memref.load %arg1[%c285] : memref<288xf32, #tpu.memory_space<smem>>
    %1169 = vector.broadcast %1168 : f32 to vector<16x34xf32>
    %1170 = arith.mulf %1139, %1169 : vector<16x34xf32>
    %1171 = arith.addf %1138, %1170 : vector<16x34xf32>
    %1172 = vector.extract_strided_slice %938 {offsets = [2, 0], sizes = [16, 34], strides = [1, 1]} : vector<18x34xf32> to vector<16x34xf32>
    %c34 = arith.constant 34 : index
    %1173 = memref.load %arg1[%c34] : memref<288xf32, #tpu.memory_space<smem>>
    %1174 = vector.broadcast %1173 : f32 to vector<16x34xf32>
    %1175 = arith.mulf %1172, %1174 : vector<16x34xf32>
    %1176 = arith.addf %1143, %1175 : vector<16x34xf32>
    %c70 = arith.constant 70 : index
    %1177 = memref.load %arg1[%c70] : memref<288xf32, #tpu.memory_space<smem>>
    %1178 = vector.broadcast %1177 : f32 to vector<16x34xf32>
    %1179 = arith.mulf %1172, %1178 : vector<16x34xf32>
    %1180 = arith.addf %1147, %1179 : vector<16x34xf32>
    %c106 = arith.constant 106 : index
    %1181 = memref.load %arg1[%c106] : memref<288xf32, #tpu.memory_space<smem>>
    %1182 = vector.broadcast %1181 : f32 to vector<16x34xf32>
    %1183 = arith.mulf %1172, %1182 : vector<16x34xf32>
    %1184 = arith.addf %1151, %1183 : vector<16x34xf32>
    %c142 = arith.constant 142 : index
    %1185 = memref.load %arg1[%c142] : memref<288xf32, #tpu.memory_space<smem>>
    %1186 = vector.broadcast %1185 : f32 to vector<16x34xf32>
    %1187 = arith.mulf %1172, %1186 : vector<16x34xf32>
    %1188 = arith.addf %1155, %1187 : vector<16x34xf32>
    %c178 = arith.constant 178 : index
    %1189 = memref.load %arg1[%c178] : memref<288xf32, #tpu.memory_space<smem>>
    %1190 = vector.broadcast %1189 : f32 to vector<16x34xf32>
    %1191 = arith.mulf %1172, %1190 : vector<16x34xf32>
    %1192 = arith.addf %1159, %1191 : vector<16x34xf32>
    %c214 = arith.constant 214 : index
    %1193 = memref.load %arg1[%c214] : memref<288xf32, #tpu.memory_space<smem>>
    %1194 = vector.broadcast %1193 : f32 to vector<16x34xf32>
    %1195 = arith.mulf %1172, %1194 : vector<16x34xf32>
    %1196 = arith.addf %1163, %1195 : vector<16x34xf32>
    %c250 = arith.constant 250 : index
    %1197 = memref.load %arg1[%c250] : memref<288xf32, #tpu.memory_space<smem>>
    %1198 = vector.broadcast %1197 : f32 to vector<16x34xf32>
    %1199 = arith.mulf %1172, %1198 : vector<16x34xf32>
    %1200 = arith.addf %1167, %1199 : vector<16x34xf32>
    %c286 = arith.constant 286 : index
    %1201 = memref.load %arg1[%c286] : memref<288xf32, #tpu.memory_space<smem>>
    %1202 = vector.broadcast %1201 : f32 to vector<16x34xf32>
    %1203 = arith.mulf %1172, %1202 : vector<16x34xf32>
    %1204 = arith.addf %1171, %1203 : vector<16x34xf32>
    %1205 = vector.extract_strided_slice %940 {offsets = [2, 0], sizes = [16, 34], strides = [1, 1]} : vector<18x34xf32> to vector<16x34xf32>
    %c35_80 = arith.constant 35 : index
    %1206 = memref.load %arg1[%c35_80] : memref<288xf32, #tpu.memory_space<smem>>
    %1207 = vector.broadcast %1206 : f32 to vector<16x34xf32>
    %1208 = arith.mulf %1205, %1207 : vector<16x34xf32>
    %1209 = arith.addf %1176, %1208 : vector<16x34xf32>
    %c71 = arith.constant 71 : index
    %1210 = memref.load %arg1[%c71] : memref<288xf32, #tpu.memory_space<smem>>
    %1211 = vector.broadcast %1210 : f32 to vector<16x34xf32>
    %1212 = arith.mulf %1205, %1211 : vector<16x34xf32>
    %1213 = arith.addf %1180, %1212 : vector<16x34xf32>
    %c107 = arith.constant 107 : index
    %1214 = memref.load %arg1[%c107] : memref<288xf32, #tpu.memory_space<smem>>
    %1215 = vector.broadcast %1214 : f32 to vector<16x34xf32>
    %1216 = arith.mulf %1205, %1215 : vector<16x34xf32>
    %1217 = arith.addf %1184, %1216 : vector<16x34xf32>
    %c143 = arith.constant 143 : index
    %1218 = memref.load %arg1[%c143] : memref<288xf32, #tpu.memory_space<smem>>
    %1219 = vector.broadcast %1218 : f32 to vector<16x34xf32>
    %1220 = arith.mulf %1205, %1219 : vector<16x34xf32>
    %1221 = arith.addf %1188, %1220 : vector<16x34xf32>
    %c179 = arith.constant 179 : index
    %1222 = memref.load %arg1[%c179] : memref<288xf32, #tpu.memory_space<smem>>
    %1223 = vector.broadcast %1222 : f32 to vector<16x34xf32>
    %1224 = arith.mulf %1205, %1223 : vector<16x34xf32>
    %1225 = arith.addf %1192, %1224 : vector<16x34xf32>
    %c215 = arith.constant 215 : index
    %1226 = memref.load %arg1[%c215] : memref<288xf32, #tpu.memory_space<smem>>
    %1227 = vector.broadcast %1226 : f32 to vector<16x34xf32>
    %1228 = arith.mulf %1205, %1227 : vector<16x34xf32>
    %1229 = arith.addf %1196, %1228 : vector<16x34xf32>
    %c251 = arith.constant 251 : index
    %1230 = memref.load %arg1[%c251] : memref<288xf32, #tpu.memory_space<smem>>
    %1231 = vector.broadcast %1230 : f32 to vector<16x34xf32>
    %1232 = arith.mulf %1205, %1231 : vector<16x34xf32>
    %1233 = arith.addf %1200, %1232 : vector<16x34xf32>
    %c287 = arith.constant 287 : index
    %1234 = memref.load %arg1[%c287] : memref<288xf32, #tpu.memory_space<smem>>
    %1235 = vector.broadcast %1234 : f32 to vector<16x34xf32>
    %1236 = arith.mulf %1205, %1235 : vector<16x34xf32>
    %1237 = arith.addf %1204, %1236 : vector<16x34xf32>
    %1238 = vector.extract_strided_slice %1209 {offsets = [0, 0], sizes = [16, 16], strides = [1, 1]} : vector<16x34xf32> to vector<16x16xf32>
    %c0_81 = arith.constant 0 : index
    %c0_82 = arith.constant 0 : index
    %c0_83 = arith.constant 0 : index
    %c0_84 = arith.constant 0 : index
    %1239 = vector.load %arg3[%c0_81, %c0_82, %c0_83, %c0_84] : memref<2x8x16x16xf32, #tpu.memory_space<vmem>>, vector<1x1x16x16xf32>
    %1240 = vector.shape_cast %1239 : vector<1x1x16x16xf32> to vector<16x16xf32>
    %1241 = vector.shape_cast %1238 : vector<16x16xf32> to vector<1x1x16x16xf32>
    tpu.vector_store %arg3[%c0_81, %c0_82, %c0_83, %c0_84], %1241 {strides = array<i32>} : memref<2x8x16x16xf32, #tpu.memory_space<vmem>>, vector<1x1x16x16xf32>,
    %1242 = vector.extract_strided_slice %1209 {offsets = [0, 18], sizes = [16, 16], strides = [1, 1]} : vector<16x34xf32> to vector<16x16xf32>
    %c1_85 = arith.constant 1 : index
    %c0_86 = arith.constant 0 : index
    %c0_87 = arith.constant 0 : index
    %c0_88 = arith.constant 0 : index
    %1243 = vector.load %arg3[%c1_85, %c0_86, %c0_87, %c0_88] : memref<2x8x16x16xf32, #tpu.memory_space<vmem>>, vector<1x1x16x16xf32>
    %1244 = vector.shape_cast %1243 : vector<1x1x16x16xf32> to vector<16x16xf32>
    %1245 = vector.shape_cast %1242 : vector<16x16xf32> to vector<1x1x16x16xf32>
    tpu.vector_store %arg3[%c1_85, %c0_86, %c0_87, %c0_88], %1245 {strides = array<i32>} : memref<2x8x16x16xf32, #tpu.memory_space<vmem>>, vector<1x1x16x16xf32>,
    %1246 = vector.extract_strided_slice %1213 {offsets = [0, 0], sizes = [16, 16], strides = [1, 1]} : vector<16x34xf32> to vector<16x16xf32>
    %c0_89 = arith.constant 0 : index
    %c1_90 = arith.constant 1 : index
    %c0_91 = arith.constant 0 : index
    %c0_92 = arith.constant 0 : index
    %1247 = vector.load %arg3[%c0_89, %c1_90, %c0_91, %c0_92] : memref<2x8x16x16xf32, #tpu.memory_space<vmem>>, vector<1x1x16x16xf32>
    %1248 = vector.shape_cast %1247 : vector<1x1x16x16xf32> to vector<16x16xf32>
    %1249 = vector.shape_cast %1246 : vector<16x16xf32> to vector<1x1x16x16xf32>
    tpu.vector_store %arg3[%c0_89, %c1_90, %c0_91, %c0_92], %1249 {strides = array<i32>} : memref<2x8x16x16xf32, #tpu.memory_space<vmem>>, vector<1x1x16x16xf32>,
    %1250 = vector.extract_strided_slice %1213 {offsets = [0, 18], sizes = [16, 16], strides = [1, 1]} : vector<16x34xf32> to vector<16x16xf32>
    %c1_93 = arith.constant 1 : index
    %c1_94 = arith.constant 1 : index
    %c0_95 = arith.constant 0 : index
    %c0_96 = arith.constant 0 : index
    %1251 = vector.load %arg3[%c1_93, %c1_94, %c0_95, %c0_96] : memref<2x8x16x16xf32, #tpu.memory_space<vmem>>, vector<1x1x16x16xf32>
    %1252 = vector.shape_cast %1251 : vector<1x1x16x16xf32> to vector<16x16xf32>
    %1253 = vector.shape_cast %1250 : vector<16x16xf32> to vector<1x1x16x16xf32>
    tpu.vector_store %arg3[%c1_93, %c1_94, %c0_95, %c0_96], %1253 {strides = array<i32>} : memref<2x8x16x16xf32, #tpu.memory_space<vmem>>, vector<1x1x16x16xf32>,
    %1254 = vector.extract_strided_slice %1217 {offsets = [0, 0], sizes = [16, 16], strides = [1, 1]} : vector<16x34xf32> to vector<16x16xf32>
    %c0_97 = arith.constant 0 : index
    %c2_98 = arith.constant 2 : index
    %c0_99 = arith.constant 0 : index
    %c0_100 = arith.constant 0 : index
    %1255 = vector.load %arg3[%c0_97, %c2_98, %c0_99, %c0_100] : memref<2x8x16x16xf32, #tpu.memory_space<vmem>>, vector<1x1x16x16xf32>
    %1256 = vector.shape_cast %1255 : vector<1x1x16x16xf32> to vector<16x16xf32>
    %1257 = vector.shape_cast %1254 : vector<16x16xf32> to vector<1x1x16x16xf32>
    tpu.vector_store %arg3[%c0_97, %c2_98, %c0_99, %c0_100], %1257 {strides = array<i32>} : memref<2x8x16x16xf32, #tpu.memory_space<vmem>>, vector<1x1x16x16xf32>,
    %1258 = vector.extract_strided_slice %1217 {offsets = [0, 18], sizes = [16, 16], strides = [1, 1]} : vector<16x34xf32> to vector<16x16xf32>
    %c1_101 = arith.constant 1 : index
    %c2_102 = arith.constant 2 : index
    %c0_103 = arith.constant 0 : index
    %c0_104 = arith.constant 0 : index
    %1259 = vector.load %arg3[%c1_101, %c2_102, %c0_103, %c0_104] : memref<2x8x16x16xf32, #tpu.memory_space<vmem>>, vector<1x1x16x16xf32>
    %1260 = vector.shape_cast %1259 : vector<1x1x16x16xf32> to vector<16x16xf32>
    %1261 = vector.shape_cast %1258 : vector<16x16xf32> to vector<1x1x16x16xf32>
    tpu.vector_store %arg3[%c1_101, %c2_102, %c0_103, %c0_104], %1261 {strides = array<i32>} : memref<2x8x16x16xf32, #tpu.memory_space<vmem>>, vector<1x1x16x16xf32>,
    %1262 = vector.extract_strided_slice %1221 {offsets = [0, 0], sizes = [16, 16], strides = [1, 1]} : vector<16x34xf32> to vector<16x16xf32>
    %c0_105 = arith.constant 0 : index
    %c3_106 = arith.constant 3 : index
    %c0_107 = arith.constant 0 : index
    %c0_108 = arith.constant 0 : index
    %1263 = vector.load %arg3[%c0_105, %c3_106, %c0_107, %c0_108] : memref<2x8x16x16xf32, #tpu.memory_space<vmem>>, vector<1x1x16x16xf32>
    %1264 = vector.shape_cast %1263 : vector<1x1x16x16xf32> to vector<16x16xf32>
    %1265 = vector.shape_cast %1262 : vector<16x16xf32> to vector<1x1x16x16xf32>
    tpu.vector_store %arg3[%c0_105, %c3_106, %c0_107, %c0_108], %1265 {strides = array<i32>} : memref<2x8x16x16xf32, #tpu.memory_space<vmem>>, vector<1x1x16x16xf32>,
    %1266 = vector.extract_strided_slice %1221 {offsets = [0, 18], sizes = [16, 16], strides = [1, 1]} : vector<16x34xf32> to vector<16x16xf32>
    %c1_109 = arith.constant 1 : index
    %c3_110 = arith.constant 3 : index
    %c0_111 = arith.constant 0 : index
    %c0_112 = arith.constant 0 : index
    %1267 = vector.load %arg3[%c1_109, %c3_110, %c0_111, %c0_112] : memref<2x8x16x16xf32, #tpu.memory_space<vmem>>, vector<1x1x16x16xf32>
    %1268 = vector.shape_cast %1267 : vector<1x1x16x16xf32> to vector<16x16xf32>
    %1269 = vector.shape_cast %1266 : vector<16x16xf32> to vector<1x1x16x16xf32>
    tpu.vector_store %arg3[%c1_109, %c3_110, %c0_111, %c0_112], %1269 {strides = array<i32>} : memref<2x8x16x16xf32, #tpu.memory_space<vmem>>, vector<1x1x16x16xf32>,
    %1270 = vector.extract_strided_slice %1225 {offsets = [0, 0], sizes = [16, 16], strides = [1, 1]} : vector<16x34xf32> to vector<16x16xf32>
    %c0_113 = arith.constant 0 : index
    %c4_114 = arith.constant 4 : index
    %c0_115 = arith.constant 0 : index
    %c0_116 = arith.constant 0 : index
    %1271 = vector.load %arg3[%c0_113, %c4_114, %c0_115, %c0_116] : memref<2x8x16x16xf32, #tpu.memory_space<vmem>>, vector<1x1x16x16xf32>
    %1272 = vector.shape_cast %1271 : vector<1x1x16x16xf32> to vector<16x16xf32>
    %1273 = vector.shape_cast %1270 : vector<16x16xf32> to vector<1x1x16x16xf32>
    tpu.vector_store %arg3[%c0_113, %c4_114, %c0_115, %c0_116], %1273 {strides = array<i32>} : memref<2x8x16x16xf32, #tpu.memory_space<vmem>>, vector<1x1x16x16xf32>,
    %1274 = vector.extract_strided_slice %1225 {offsets = [0, 18], sizes = [16, 16], strides = [1, 1]} : vector<16x34xf32> to vector<16x16xf32>
    %c1_117 = arith.constant 1 : index
    %c4_118 = arith.constant 4 : index
    %c0_119 = arith.constant 0 : index
    %c0_120 = arith.constant 0 : index
    %1275 = vector.load %arg3[%c1_117, %c4_118, %c0_119, %c0_120] : memref<2x8x16x16xf32, #tpu.memory_space<vmem>>, vector<1x1x16x16xf32>
    %1276 = vector.shape_cast %1275 : vector<1x1x16x16xf32> to vector<16x16xf32>
    %1277 = vector.shape_cast %1274 : vector<16x16xf32> to vector<1x1x16x16xf32>
    tpu.vector_store %arg3[%c1_117, %c4_118, %c0_119, %c0_120], %1277 {strides = array<i32>} : memref<2x8x16x16xf32, #tpu.memory_space<vmem>>, vector<1x1x16x16xf32>,
    %1278 = vector.extract_strided_slice %1229 {offsets = [0, 0], sizes = [16, 16], strides = [1, 1]} : vector<16x34xf32> to vector<16x16xf32>
    %c0_121 = arith.constant 0 : index
    %c5_122 = arith.constant 5 : index
    %c0_123 = arith.constant 0 : index
    %c0_124 = arith.constant 0 : index
    %1279 = vector.load %arg3[%c0_121, %c5_122, %c0_123, %c0_124] : memref<2x8x16x16xf32, #tpu.memory_space<vmem>>, vector<1x1x16x16xf32>
    %1280 = vector.shape_cast %1279 : vector<1x1x16x16xf32> to vector<16x16xf32>
    %1281 = vector.shape_cast %1278 : vector<16x16xf32> to vector<1x1x16x16xf32>
    tpu.vector_store %arg3[%c0_121, %c5_122, %c0_123, %c0_124], %1281 {strides = array<i32>} : memref<2x8x16x16xf32, #tpu.memory_space<vmem>>, vector<1x1x16x16xf32>,
    %1282 = vector.extract_strided_slice %1229 {offsets = [0, 18], sizes = [16, 16], strides = [1, 1]} : vector<16x34xf32> to vector<16x16xf32>
    %c1_125 = arith.constant 1 : index
    %c5_126 = arith.constant 5 : index
    %c0_127 = arith.constant 0 : index
    %c0_128 = arith.constant 0 : index
    %1283 = vector.load %arg3[%c1_125, %c5_126, %c0_127, %c0_128] : memref<2x8x16x16xf32, #tpu.memory_space<vmem>>, vector<1x1x16x16xf32>
    %1284 = vector.shape_cast %1283 : vector<1x1x16x16xf32> to vector<16x16xf32>
    %1285 = vector.shape_cast %1282 : vector<16x16xf32> to vector<1x1x16x16xf32>
    tpu.vector_store %arg3[%c1_125, %c5_126, %c0_127, %c0_128], %1285 {strides = array<i32>} : memref<2x8x16x16xf32, #tpu.memory_space<vmem>>, vector<1x1x16x16xf32>,
    %1286 = vector.extract_strided_slice %1233 {offsets = [0, 0], sizes = [16, 16], strides = [1, 1]} : vector<16x34xf32> to vector<16x16xf32>
    %c0_129 = arith.constant 0 : index
    %c6_130 = arith.constant 6 : index
    %c0_131 = arith.constant 0 : index
    %c0_132 = arith.constant 0 : index
    %1287 = vector.load %arg3[%c0_129, %c6_130, %c0_131, %c0_132] : memref<2x8x16x16xf32, #tpu.memory_space<vmem>>, vector<1x1x16x16xf32>
    %1288 = vector.shape_cast %1287 : vector<1x1x16x16xf32> to vector<16x16xf32>
    %1289 = vector.shape_cast %1286 : vector<16x16xf32> to vector<1x1x16x16xf32>
    tpu.vector_store %arg3[%c0_129, %c6_130, %c0_131, %c0_132], %1289 {strides = array<i32>} : memref<2x8x16x16xf32, #tpu.memory_space<vmem>>, vector<1x1x16x16xf32>,
    %1290 = vector.extract_strided_slice %1233 {offsets = [0, 18], sizes = [16, 16], strides = [1, 1]} : vector<16x34xf32> to vector<16x16xf32>
    %c1_133 = arith.constant 1 : index
    %c6_134 = arith.constant 6 : index
    %c0_135 = arith.constant 0 : index
    %c0_136 = arith.constant 0 : index
    %1291 = vector.load %arg3[%c1_133, %c6_134, %c0_135, %c0_136] : memref<2x8x16x16xf32, #tpu.memory_space<vmem>>, vector<1x1x16x16xf32>
    %1292 = vector.shape_cast %1291 : vector<1x1x16x16xf32> to vector<16x16xf32>
    %1293 = vector.shape_cast %1290 : vector<16x16xf32> to vector<1x1x16x16xf32>
    tpu.vector_store %arg3[%c1_133, %c6_134, %c0_135, %c0_136], %1293 {strides = array<i32>} : memref<2x8x16x16xf32, #tpu.memory_space<vmem>>, vector<1x1x16x16xf32>,
    %1294 = vector.extract_strided_slice %1237 {offsets = [0, 0], sizes = [16, 16], strides = [1, 1]} : vector<16x34xf32> to vector<16x16xf32>
    %c0_137 = arith.constant 0 : index
    %c7_138 = arith.constant 7 : index
    %c0_139 = arith.constant 0 : index
    %c0_140 = arith.constant 0 : index
    %1295 = vector.load %arg3[%c0_137, %c7_138, %c0_139, %c0_140] : memref<2x8x16x16xf32, #tpu.memory_space<vmem>>, vector<1x1x16x16xf32>
    %1296 = vector.shape_cast %1295 : vector<1x1x16x16xf32> to vector<16x16xf32>
    %1297 = vector.shape_cast %1294 : vector<16x16xf32> to vector<1x1x16x16xf32>
    tpu.vector_store %arg3[%c0_137, %c7_138, %c0_139, %c0_140], %1297 {strides = array<i32>} : memref<2x8x16x16xf32, #tpu.memory_space<vmem>>, vector<1x1x16x16xf32>,
    %1298 = vector.extract_strided_slice %1237 {offsets = [0, 18], sizes = [16, 16], strides = [1, 1]} : vector<16x34xf32> to vector<16x16xf32>
    %c1_141 = arith.constant 1 : index
    %c7_142 = arith.constant 7 : index
    %c0_143 = arith.constant 0 : index
    %c0_144 = arith.constant 0 : index
    %1299 = vector.load %arg3[%c1_141, %c7_142, %c0_143, %c0_144] : memref<2x8x16x16xf32, #tpu.memory_space<vmem>>, vector<1x1x16x16xf32>
    %1300 = vector.shape_cast %1299 : vector<1x1x16x16xf32> to vector<16x16xf32>
    %1301 = vector.shape_cast %1298 : vector<16x16xf32> to vector<1x1x16x16xf32>
    tpu.vector_store %arg3[%c1_141, %c7_142, %c0_143, %c0_144], %1301 {strides = array<i32>} : memref<2x8x16x16xf32, #tpu.memory_space<vmem>>, vector<1x1x16x16xf32>,
    return
  }
  func.func @transform_0(%arg0: i32, %arg1: memref<288xf32, #tpu.memory_space<smem>>) -> (i32, i32, i32, i32) {
    %c0_i32 = arith.constant 0 : i32
    %c0_i32_0 = arith.constant 0 : i32
    %c0_i32_1 = arith.constant 0 : i32
    %c0_i32_2 = arith.constant 0 : i32
    return %arg0, %c0_i32, %c0_i32_0, %c0_i32_1 : i32, i32, i32, i32
  }
  func.func @transform_1(%arg0: i32, %arg1: memref<288xf32, #tpu.memory_space<smem>>) -> (i32, i32, i32, i32) {
    %c0_i32 = arith.constant 0 : i32
    %c0_i32_0 = arith.constant 0 : i32
    %c0_i32_1 = arith.constant 0 : i32
    %c0_i32_2 = arith.constant 0 : i32
    return %arg0, %c0_i32, %c0_i32_0, %c0_i32_1 : i32, i32, i32, i32
  }
}

</mosaic_0001>

<llo_original>
// kernel: tpu_custom_call.1
$region0: #{tpu_custom_call.1}
  #allocation0 [shape = 'u32[]', space=smem, size = 0x4, offset = 0x4, fixed_abs, tag = 'smem constant byte address 0x4 - core index']
  #allocation1 [shape = 'u32[144,128]{1,0:T(1,128)}', space=vmem, size = 0x12000, scoped, tag = 'internal scratch']
  #allocation2 [shape = 'f32[4,18,36]{2,1,0:T(8,128)}', space=vmem, size = 0xc000, scoped, tag = 'scratch operand']
  #allocation3 [shape = 's32[1]{0}', space=sflag, size = 0x4, scoped, tag = 'scoped memory for tpu_custom_call.1']
  #allocation4 [shape = 'u8[1536]{0}', space=smem, size = 0x600, scoped, tag = 'prefetched SMEM operand 0']
  %s0 = inlined_call_operand.hbm [shape: f32[288], index: 0, kind: input, shape index: {}]
  %s1 = inlined_call_operand.hbm [shape: f32[2,4,16,16], index: 1, kind: input, shape index: {}]
  %s2 = inlined_call_operand.hbm [shape: f32[2,8,16,16], index: 2, kind: output, shape index: {}]
  %s3 = sld [smem:[#allocation0]]
  $region18: #{tpu_custom_call.1} parent=0
    _
  %s5 = ssub.s32 1, %s3
  %s6 = scalar_select 0, %s5, %s3
  %8 = dma.hbm_to_smem %s0, 48, [#allocation4], [#allocation3]
  %9 = dma.done [#allocation3], 48
  %10 = sfence
  $region1: #{tpu_custom_call.1} parent=0
    #allocation5 [shape = 'u8[65536]{0}', space=vmem, size = 0x10000, scoped, tag = 'input window, operand 1, single buffered']
    #allocation6 [shape = 's32[1]{0}', space=sflag, size = 0x4, scoped, tag = 'scoped memory for tpu_custom_call.1']
    #allocation7 [shape = 's32[1]{0}', space=sflag, size = 0x4, scoped, tag = 'scoped memory for tpu_custom_call.1']
    #allocation8 [shape = 'u8[131072]{0}', space=vmem, size = 0x20000, scoped, tag = 'output window, operand 0, single buffered']
    %11 = vsyncpa [#allocation6], 0
    %12 = vsyncpa [#allocation7], 0
    // Predicated region
    $region2: #{tpu_custom_call.1} parent=1 // pred_check
      _
    $region3: #{tpu_custom_call.1} parent=1 // pred_check_branch
      %14 = sbr.rel (0) target = $region5
    $region4: #{tpu_custom_call.1} parent=1 // pred_region
      %s16 = ssub.s32 2048, 2048
      %17 = vsyncadd [#allocation6], %s16
      %s18 = sshll.u32 [#allocation5], 4
      %s19 = int_to_ptr.vmem [resolvable:$true] %s18
      %24 = dma.hbm_to_vmem [thread:$0]  %s1, 2048, %s19, [#allocation6], 128, 128, 8
    $region5: #{tpu_custom_call.1} parent=1 // pred_fallthru
      _
    // Predicated region
    $region6: #{tpu_custom_call.1} parent=1 // pred_check
      _
    $region7: #{tpu_custom_call.1} parent=1 // pred_check_branch
      %26 = sbr.rel (0) target = $region9
    $region8: #{tpu_custom_call.1} parent=1 // pred_region
      %27 = dma.done [#allocation6], 2048
    $region9: #{tpu_custom_call.1} parent=1 // pred_fallthru
      _
    %vm28 = vcmask 286720
    %29 = vst.msk [vmem:[#allocation2] sm:$0x1] %vm28, 0.0
    %30 = vst.msk [vmem:[#allocation2 + $0x18] sm:$0x1] %vm28, 0.0
    %31 = vst.msk [vmem:[#allocation2 + $0x30] sm:$0x1] %vm28, 0.0
    %32 = vst.msk [vmem:[#allocation2 + $0x48] sm:$0x1] %vm28, 0.0
    %33 = vst.msk [vmem:[#allocation2 + $0x11] sm:$0x1] %vm28, 0.0
    %34 = vst.msk [vmem:[#allocation2 + $0x29] sm:$0x1] %vm28, 0.0
    %35 = vst.msk [vmem:[#allocation2 + $0x41] sm:$0x1] %vm28, 0.0
    %36 = vst.msk [vmem:[#allocation2 + $0x59] sm:$0x1] %vm28, 0.0
    %vm37 = vcmask 7168
    %38 = vst.msk [vmem:[#allocation2 + $0x1] sm:$0xff] %vm37, 0.0
    %39 = vst.msk [vmem:[#allocation2 + $0x9] sm:$0xff] %vm37, 0.0
    %40 = vst.msk [vmem:[#allocation2 + $0x19] sm:$0xff] %vm37, 0.0
    %41 = vst.msk [vmem:[#allocation2 + $0x21] sm:$0xff] %vm37, 0.0
    %42 = vst.msk [vmem:[#allocation2 + $0x31] sm:$0xff] %vm37, 0.0
    %43 = vst.msk [vmem:[#allocation2 + $0x39] sm:$0xff] %vm37, 0.0
    %44 = vst.msk [vmem:[#allocation2 + $0x49] sm:$0xff] %vm37, 0.0
    %45 = vst.msk [vmem:[#allocation2 + $0x51] sm:$0xff] %vm37, 0.0
    %vm46 = vcmask 146568
    %47 = vst.msk [vmem:[#allocation2 + $0x1] sm:$0xff] %vm46, 0.0
    %48 = vst.msk [vmem:[#allocation2 + $0x9] sm:$0xff] %vm46, 0.0
    %49 = vst.msk [vmem:[#allocation2 + $0x19] sm:$0xff] %vm46, 0.0
    %50 = vst.msk [vmem:[#allocation2 + $0x21] sm:$0xff] %vm46, 0.0
    %51 = vst.msk [vmem:[#allocation2 + $0x31] sm:$0xff] %vm46, 0.0
    %52 = vst.msk [vmem:[#allocation2 + $0x39] sm:$0xff] %vm46, 0.0
    %53 = vst.msk [vmem:[#allocation2 + $0x49] sm:$0xff] %vm46, 0.0
    %54 = vst.msk [vmem:[#allocation2 + $0x51] sm:$0xff] %vm46, 0.0
    %v55 = vld [vmem:[#allocation5] sm:$0xff]
    %v56 = vld [vmem:[#allocation5 + $0x8] sm:$0xff]
    %v57 = vld [vmem:[#allocation5 + $0x10] sm:$0xff]
    %v58 = vld [vmem:[#allocation5 + $0x18] sm:$0xff]
    %v59 = vld [vmem:[#allocation5 + $0x20] sm:$0xff]
    %v60 = vld [vmem:[#allocation5 + $0x28] sm:$0xff]
    %v61 = vld [vmem:[#allocation5 + $0x30] sm:$0xff]
    %v62 = vld [vmem:[#allocation5 + $0x38] sm:$0xff]
    %71 = vrot.lane.b32.xlu0 %v55, 1
    %v72 = vpop.permute.xlu0 %71
    %73 = vrot.lane.b32.xlu0 %v56, 1
    %v74 = vpop.permute.xlu0 %73
    %75 = vrot.lane.b32.xlu0 %v57, 1
    %v76 = vpop.permute.xlu0 %75
    %77 = vrot.lane.b32.xlu0 %v58, 1
    %v78 = vpop.permute.xlu0 %77
    %79 = vrot.lane.b32.xlu0 %v59, 1
    %v80 = vpop.permute.xlu0 %79
    %81 = vrot.lane.b32.xlu0 %v60, 1
    %v82 = vpop.permute.xlu0 %81
    %83 = vrot.lane.b32.xlu0 %v61, 1
    %v84 = vpop.permute.xlu0 %83
    %85 = vrot.lane.b32.xlu0 %v62, 1
    %v86 = vpop.permute.xlu0 %85
    %vm95 = vcmask 138248
    %96 = vst.msk [vmem:[#allocation2 + $0x1] sm:$0xff] %vm95, %v72
    %97 = vst.msk [vmem:[#allocation2 + $0x9] sm:$0xff] %vm95, %v74
    %98 = vst.msk [vmem:[#allocation2 + $0x19] sm:$0xff] %vm95, %v76
    %99 = vst.msk [vmem:[#allocation2 + $0x21] sm:$0xff] %vm95, %v78
    %100 = vst.msk [vmem:[#allocation2 + $0x31] sm:$0xff] %vm95, %v80
    %101 = vst.msk [vmem:[#allocation2 + $0x39] sm:$0xff] %vm95, %v82
    %102 = vst.msk [vmem:[#allocation2 + $0x49] sm:$0xff] %vm95, %v84
    %103 = vst.msk [vmem:[#allocation2 + $0x51] sm:$0xff] %vm95, %v86
    %vm104 = vcmask 154768
    %105 = vst.msk [vmem:[#allocation2 + $0x1] sm:$0xff] %vm104, 0.0
    %106 = vst.msk [vmem:[#allocation2 + $0x9] sm:$0xff] %vm104, 0.0
    %107 = vst.msk [vmem:[#allocation2 + $0x19] sm:$0xff] %vm104, 0.0
    %108 = vst.msk [vmem:[#allocation2 + $0x21] sm:$0xff] %vm104, 0.0
    %109 = vst.msk [vmem:[#allocation2 + $0x31] sm:$0xff] %vm104, 0.0
    %110 = vst.msk [vmem:[#allocation2 + $0x39] sm:$0xff] %vm104, 0.0
    %111 = vst.msk [vmem:[#allocation2 + $0x49] sm:$0xff] %vm104, 0.0
    %112 = vst.msk [vmem:[#allocation2 + $0x51] sm:$0xff] %vm104, 0.0
    %vm113 = vcmask 294168
    %114 = vst.msk [vmem:[#allocation2 + $0x1] sm:$0xff] %vm113, 0.0
    %115 = vst.msk [vmem:[#allocation2 + $0x9] sm:$0xff] %vm113, 0.0
    %116 = vst.msk [vmem:[#allocation2 + $0x19] sm:$0xff] %vm113, 0.0
    %117 = vst.msk [vmem:[#allocation2 + $0x21] sm:$0xff] %vm113, 0.0
    %118 = vst.msk [vmem:[#allocation2 + $0x31] sm:$0xff] %vm113, 0.0
    %119 = vst.msk [vmem:[#allocation2 + $0x39] sm:$0xff] %vm113, 0.0
    %120 = vst.msk [vmem:[#allocation2 + $0x49] sm:$0xff] %vm113, 0.0
    %121 = vst.msk [vmem:[#allocation2 + $0x51] sm:$0xff] %vm113, 0.0
    %s122 = scalar_lea.vmem [#allocation5], 64
    %v123 = vld [vmem:[%s122] sm:$0xff]
    %v124 = vld [vmem:[%s122 + $0x8] sm:$0xff]
    %v125 = vld [vmem:[%s122 + $0x10] sm:$0xff]
    %v126 = vld [vmem:[%s122 + $0x18] sm:$0xff]
    %v127 = vld [vmem:[%s122 + $0x20] sm:$0xff]
    %v128 = vld [vmem:[%s122 + $0x28] sm:$0xff]
    %v129 = vld [vmem:[%s122 + $0x30] sm:$0xff]
    %v130 = vld [vmem:[%s122 + $0x38] sm:$0xff]
    %139 = vrot.lane.b32.xlu0 %v123, 19
    %v140 = vpop.permute.xlu0 %139
    %141 = vrot.lane.b32.xlu0 %v124, 19
    %v142 = vpop.permute.xlu0 %141
    %143 = vrot.lane.b32.xlu0 %v125, 19
    %v144 = vpop.permute.xlu0 %143
    %145 = vrot.lane.b32.xlu0 %v126, 19
    %v146 = vpop.permute.xlu0 %145
    %147 = vrot.lane.b32.xlu0 %v127, 19
    %v148 = vpop.permute.xlu0 %147
    %149 = vrot.lane.b32.xlu0 %v128, 19
    %v150 = vpop.permute.xlu0 %149
    %151 = vrot.lane.b32.xlu0 %v129, 19
    %v152 = vpop.permute.xlu0 %151
    %153 = vrot.lane.b32.xlu0 %v130, 19
    %v154 = vpop.permute.xlu0 %153
    %vm163 = vcmask 285848
    %164 = vst.msk [vmem:[#allocation2 + $0x1] sm:$0xff] %vm163, %v140
    %165 = vst.msk [vmem:[#allocation2 + $0x9] sm:$0xff] %vm163, %v142
    %166 = vst.msk [vmem:[#allocation2 + $0x19] sm:$0xff] %vm163, %v144
    %167 = vst.msk [vmem:[#allocation2 + $0x21] sm:$0xff] %vm163, %v146
    %168 = vst.msk [vmem:[#allocation2 + $0x31] sm:$0xff] %vm163, %v148
    %169 = vst.msk [vmem:[#allocation2 + $0x39] sm:$0xff] %vm163, %v150
    %170 = vst.msk [vmem:[#allocation2 + $0x49] sm:$0xff] %vm163, %v152
    %171 = vst.msk [vmem:[#allocation2 + $0x51] sm:$0xff] %vm163, %v154
    %v172 = vld [vmem:[#allocation2] sm:$0xff]
    %v173 = vld [vmem:[#allocation2 + $0x8] sm:$0xff]
    %v174 = vld [vmem:[#allocation2 + $0x10] sm:$0x3]
    %s175 = sld [smem:[#allocation4]]
    %v176 = vstv %s175
    %v177 = vmul.f32 %v172, %v176
    %v178 = vmul.f32 %v173, %v176
    %v179 = vadd.f32 %v177, 0.0
    %v180 = vadd.f32 %v178, 0.0
    %s181 = sld [smem:[#allocation4 + $0x24]]
    %v182 = vstv %s181
    %v183 = vmul.f32 %v172, %v182
    %v184 = vmul.f32 %v173, %v182
    %v185 = vadd.f32 %v183, 0.0
    %v186 = vadd.f32 %v184, 0.0
    %s187 = sld [smem:[#allocation4 + $0x48]]
    %v188 = vstv %s187
    %v189 = vmul.f32 %v172, %v188
    %v190 = vmul.f32 %v173, %v188
    %v191 = vadd.f32 %v189, 0.0
    %v192 = vadd.f32 %v190, 0.0
    %s193 = sld [smem:[#allocation4 + $0x6c]]
    %v194 = vstv %s193
    %v195 = vmul.f32 %v172, %v194
    %v196 = vmul.f32 %v173, %v194
    %v197 = vadd.f32 %v195, 0.0
    %v198 = vadd.f32 %v196, 0.0
    %s199 = sld [smem:[#allocation4 + $0x90]]
    %v200 = vstv %s199
    %v201 = vmul.f32 %v172, %v200
    %v202 = vmul.f32 %v173, %v200
    %v203 = vadd.f32 %v201, 0.0
    %v204 = vadd.f32 %v202, 0.0
    %s205 = sld [smem:[#allocation4 + $0xb4]]
    %v206 = vstv %s205
    %v207 = vmul.f32 %v172, %v206
    %v208 = vmul.f32 %v173, %v206
    %v209 = vadd.f32 %v207, 0.0
    %v210 = vadd.f32 %v208, 0.0
    %s211 = sld [smem:[#allocation4 + $0xd8]]
    %v212 = vstv %s211
    %v213 = vmul.f32 %v172, %v212
    %v214 = vmul.f32 %v173, %v212
    %v215 = vadd.f32 %v213, 0.0
    %v216 = vadd.f32 %v214, 0.0
    %s217 = sld [smem:[#allocation4 + $0xfc]]
    %v218 = vstv %s217
    %v219 = vmul.f32 %v172, %v218
    %v220 = vmul.f32 %v173, %v218
    %v221 = vadd.f32 %v219, 0.0
    %v222 = vadd.f32 %v220, 0.0
    %s223 = sld [smem:[#allocation4 + $0x1]]
    %v224 = vstv %s223
    %v225 = vmul.f32 %v172, %v224
    %v226 = vmul.f32 %v173, %v224
    %229 = vrot.lane.b32.xlu0 %v225, 127
    %v230 = vpop.permute.xlu0 %229
    %231 = vrot.lane.b32.xlu0 %v226, 127
    %v232 = vpop.permute.xlu0 %231
    %v235 = vadd.f32 %v179, %v230
    %v236 = vadd.f32 %v180, %v232
    %s237 = sld [smem:[#allocation4 + $0x25]]
    %v238 = vstv %s237
    %v239 = vmul.f32 %v172, %v238
    %v240 = vmul.f32 %v173, %v238
    %243 = vrot.lane.b32.xlu0 %v239, 127
    %v244 = vpop.permute.xlu0 %243
    %245 = vrot.lane.b32.xlu0 %v240, 127
    %v246 = vpop.permute.xlu0 %245
    %v249 = vadd.f32 %v185, %v244
    %v250 = vadd.f32 %v186, %v246
    %s251 = sld [smem:[#allocation4 + $0x49]]
    %v252 = vstv %s251
    %v253 = vmul.f32 %v172, %v252
    %v254 = vmul.f32 %v173, %v252
    %257 = vrot.lane.b32.xlu0 %v253, 127
    %v258 = vpop.permute.xlu0 %257
    %259 = vrot.lane.b32.xlu0 %v254, 127
    %v260 = vpop.permute.xlu0 %259
    %v263 = vadd.f32 %v191, %v258
    %v264 = vadd.f32 %v192, %v260
    %s265 = sld [smem:[#allocation4 + $0x6d]]
    %v266 = vstv %s265
    %v267 = vmul.f32 %v172, %v266
    %v268 = vmul.f32 %v173, %v266
    %271 = vrot.lane.b32.xlu0 %v267, 127
    %v272 = vpop.permute.xlu0 %271
    %273 = vrot.lane.b32.xlu0 %v268, 127
    %v274 = vpop.permute.xlu0 %273
    %v277 = vadd.f32 %v197, %v272
    %v278 = vadd.f32 %v198, %v274
    %s279 = sld [smem:[#allocation4 + $0x91]]
    %v280 = vstv %s279
    %v281 = vmul.f32 %v172, %v280
    %v282 = vmul.f32 %v173, %v280
    %285 = vrot.lane.b32.xlu0 %v281, 127
    %v286 = vpop.permute.xlu0 %285
    %287 = vrot.lane.b32.xlu0 %v282, 127
    %v288 = vpop.permute.xlu0 %287
    %v291 = vadd.f32 %v203, %v286
    %v292 = vadd.f32 %v204, %v288
    %s293 = sld [smem:[#allocation4 + $0xb5]]
    %v294 = vstv %s293
    %v295 = vmul.f32 %v172, %v294
    %v296 = vmul.f32 %v173, %v294
    %299 = vrot.lane.b32.xlu0 %v295, 127
    %v300 = vpop.permute.xlu0 %299
    %301 = vrot.lane.b32.xlu0 %v296, 127
    %v302 = vpop.permute.xlu0 %301
    %v305 = vadd.f32 %v209, %v300
    %v306 = vadd.f32 %v210, %v302
    %s307 = sld [smem:[#allocation4 + $0xd9]]
    %v308 = vstv %s307
    %v309 = vmul.f32 %v172, %v308
    %v310 = vmul.f32 %v173, %v308
    %313 = vrot.lane.b32.xlu0 %v309, 127
    %v314 = vpop.permute.xlu0 %313
    %315 = vrot.lane.b32.xlu0 %v310, 127
    %v316 = vpop.permute.xlu0 %315
    %v319 = vadd.f32 %v215, %v314
    %v320 = vadd.f32 %v216, %v316
    %s321 = sld [smem:[#allocation4 + $0xfd]]
    %v322 = vstv %s321
    %v323 = vmul.f32 %v172, %v322
    %v324 = vmul.f32 %v173, %v322
    %327 = vrot.lane.b32.xlu0 %v323, 127
    %v328 = vpop.permute.xlu0 %327
    %329 = vrot.lane.b32.xlu0 %v324, 127
    %v330 = vpop.permute.xlu0 %329
    %v333 = vadd.f32 %v221, %v328
    %v334 = vadd.f32 %v222, %v330
    %s335 = sld [smem:[#allocation4 + $0x2]]
    %v336 = vstv %s335
    %v337 = vmul.f32 %v172, %v336
    %v338 = vmul.f32 %v173, %v336
    %341 = vrot.lane.b32.xlu0 %v337, 126
    %v342 = vpop.permute.xlu0 %341
    %343 = vrot.lane.b32.xlu0 %v338, 126
    %v344 = vpop.permute.xlu0 %343
    %v347 = vadd.f32 %v235, %v342
    %v348 = vadd.f32 %v236, %v344
    %s349 = sld [smem:[#allocation4 + $0x26]]
    %v350 = vstv %s349
    %v351 = vmul.f32 %v172, %v350
    %v352 = vmul.f32 %v173, %v350
    %355 = vrot.lane.b32.xlu0 %v351, 126
    %v356 = vpop.permute.xlu0 %355
    %357 = vrot.lane.b32.xlu0 %v352, 126
    %v358 = vpop.permute.xlu0 %357
    %v361 = vadd.f32 %v249, %v356
    %v362 = vadd.f32 %v250, %v358
    %s363 = sld [smem:[#allocation4 + $0x4a]]
    %v364 = vstv %s363
    %v365 = vmul.f32 %v172, %v364
    %v366 = vmul.f32 %v173, %v364
    %369 = vrot.lane.b32.xlu0 %v365, 126
    %v370 = vpop.permute.xlu0 %369
    %371 = vrot.lane.b32.xlu0 %v366, 126
    %v372 = vpop.permute.xlu0 %371
    %v375 = vadd.f32 %v263, %v370
    %v376 = vadd.f32 %v264, %v372
    %s377 = sld [smem:[#allocation4 + $0x6e]]
    %v378 = vstv %s377
    %v379 = vmul.f32 %v172, %v378
    %v380 = vmul.f32 %v173, %v378
    %383 = vrot.lane.b32.xlu0 %v379, 126
    %v384 = vpop.permute.xlu0 %383
    %385 = vrot.lane.b32.xlu0 %v380, 126
    %v386 = vpop.permute.xlu0 %385
    %v389 = vadd.f32 %v277, %v384
    %v390 = vadd.f32 %v278, %v386
    %s391 = sld [smem:[#allocation4 + $0x92]]
    %v392 = vstv %s391
    %v393 = vmul.f32 %v172, %v392
    %v394 = vmul.f32 %v173, %v392
    %397 = vrot.lane.b32.xlu0 %v393, 126
    %v398 = vpop.permute.xlu0 %397
    %399 = vrot.lane.b32.xlu0 %v394, 126
    %v400 = vpop.permute.xlu0 %399
    %v403 = vadd.f32 %v291, %v398
    %v404 = vadd.f32 %v292, %v400
    %s405 = sld [smem:[#allocation4 + $0xb6]]
    %v406 = vstv %s405
    %v407 = vmul.f32 %v172, %v406
    %v408 = vmul.f32 %v173, %v406
    %411 = vrot.lane.b32.xlu0 %v407, 126
    %v412 = vpop.permute.xlu0 %411
    %413 = vrot.lane.b32.xlu0 %v408, 126
    %v414 = vpop.permute.xlu0 %413
    %v417 = vadd.f32 %v305, %v412
    %v418 = vadd.f32 %v306, %v414
    %s419 = sld [smem:[#allocation4 + $0xda]]
    %v420 = vstv %s419
    %v421 = vmul.f32 %v172, %v420
    %v422 = vmul.f32 %v173, %v420
    %425 = vrot.lane.b32.xlu0 %v421, 126
    %v426 = vpop.permute.xlu0 %425
    %427 = vrot.lane.b32.xlu0 %v422, 126
    %v428 = vpop.permute.xlu0 %427
    %v431 = vadd.f32 %v319, %v426
    %v432 = vadd.f32 %v320, %v428
    %s433 = sld [smem:[#allocation4 + $0xfe]]
    %v434 = vstv %s433
    %v435 = vmul.f32 %v172, %v434
    %v436 = vmul.f32 %v173, %v434
    %439 = vrot.lane.b32.xlu0 %v435, 126
    %v440 = vpop.permute.xlu0 %439
    %441 = vrot.lane.b32.xlu0 %v436, 126
    %v442 = vpop.permute.xlu0 %441
    %v445 = vadd.f32 %v333, %v440
    %v446 = vadd.f32 %v334, %v442
    %s447 = sld [smem:[#allocation4 + $0x3]]
    %v448 = vstv %s447
    %v449 = vmul.f32 %v172, %v448
    %v450 = vmul.f32 %v173, %v448
    %v451 = vmul.f32 %v174, %v448
    %vm455 = vcmask 1046528
    %v456 = vrot.slane %v449, 1
    %v457 = vrot.slane %v450, 1
    %v458 = vsel %vm455, %v456, %v457
    %v459 = vrot.slane %v451, 1
    %v460 = vsel %vm455, %v457, %v459
    %v463 = vadd.f32 %v347, %v458
    %v464 = vadd.f32 %v348, %v460
    %s465 = sld [smem:[#allocation4 + $0x27]]
    %v466 = vstv %s465
    %v467 = vmul.f32 %v172, %v466
    %v468 = vmul.f32 %v173, %v466
    %v469 = vmul.f32 %v174, %v466
    %v473 = vrot.slane %v467, 1
    %v474 = vrot.slane %v468, 1
    %v475 = vsel %vm455, %v473, %v474
    %v476 = vrot.slane %v469, 1
    %v477 = vsel %vm455, %v474, %v476
    %v480 = vadd.f32 %v361, %v475
    %v481 = vadd.f32 %v362, %v477
    %s482 = sld [smem:[#allocation4 + $0x4b]]
    %v483 = vstv %s482
    %v484 = vmul.f32 %v172, %v483
    %v485 = vmul.f32 %v173, %v483
    %v486 = vmul.f32 %v174, %v483
    %v490 = vrot.slane %v484, 1
    %v491 = vrot.slane %v485, 1
    %v492 = vsel %vm455, %v490, %v491
    %v493 = vrot.slane %v486, 1
    %v494 = vsel %vm455, %v491, %v493
    %v497 = vadd.f32 %v375, %v492
    %v498 = vadd.f32 %v376, %v494
    %s499 = sld [smem:[#allocation4 + $0x6f]]
    %v500 = vstv %s499
    %v501 = vmul.f32 %v172, %v500
    %v502 = vmul.f32 %v173, %v500
    %v503 = vmul.f32 %v174, %v500
    %v507 = vrot.slane %v501, 1
    %v508 = vrot.slane %v502, 1
    %v509 = vsel %vm455, %v507, %v508
    %v510 = vrot.slane %v503, 1
    %v511 = vsel %vm455, %v508, %v510
    %v514 = vadd.f32 %v389, %v509
    %v515 = vadd.f32 %v390, %v511
    %s516 = sld [smem:[#allocation4 + $0x93]]
    %v517 = vstv %s516
    %v518 = vmul.f32 %v172, %v517
    %v519 = vmul.f32 %v173, %v517
    %v520 = vmul.f32 %v174, %v517
    %v524 = vrot.slane %v518, 1
    %v525 = vrot.slane %v519, 1
    %v526 = vsel %vm455, %v524, %v525
    %v527 = vrot.slane %v520, 1
    %v528 = vsel %vm455, %v525, %v527
    %v531 = vadd.f32 %v403, %v526
    %v532 = vadd.f32 %v404, %v528
    %s533 = sld [smem:[#allocation4 + $0xb7]]
    %v534 = vstv %s533
    %v535 = vmul.f32 %v172, %v534
    %v536 = vmul.f32 %v173, %v534
    %v537 = vmul.f32 %v174, %v534
    %v541 = vrot.slane %v535, 1
    %v542 = vrot.slane %v536, 1
    %v543 = vsel %vm455, %v541, %v542
    %v544 = vrot.slane %v537, 1
    %v545 = vsel %vm455, %v542, %v544
    %v548 = vadd.f32 %v417, %v543
    %v549 = vadd.f32 %v418, %v545
    %s550 = sld [smem:[#allocation4 + $0xdb]]
    %v551 = vstv %s550
    %v552 = vmul.f32 %v172, %v551
    %v553 = vmul.f32 %v173, %v551
    %v554 = vmul.f32 %v174, %v551
    %v558 = vrot.slane %v552, 1
    %v559 = vrot.slane %v553, 1
    %v560 = vsel %vm455, %v558, %v559
    %v561 = vrot.slane %v554, 1
    %v562 = vsel %vm455, %v559, %v561
    %v565 = vadd.f32 %v431, %v560
    %v566 = vadd.f32 %v432, %v562
    %s567 = sld [smem:[#allocation4 + $0xff]]
    %v568 = vstv %s567
    %v569 = vmul.f32 %v172, %v568
    %v570 = vmul.f32 %v173, %v568
    %v571 = vmul.f32 %v174, %v568
    %v575 = vrot.slane %v569, 1
    %v576 = vrot.slane %v570, 1
    %v577 = vsel %vm455, %v575, %v576
    %v578 = vrot.slane %v571, 1
    %v579 = vsel %vm455, %v576, %v578
    %v582 = vadd.f32 %v445, %v577
    %v583 = vadd.f32 %v446, %v579
    %s584 = sld [smem:[#allocation4 + $0x4]]
    %v585 = vstv %s584
    %v586 = vmul.f32 %v172, %v585
    %v587 = vmul.f32 %v173, %v585
    %v588 = vmul.f32 %v174, %v585
    %v592 = vrot.slane %v586, 1
    %v593 = vrot.slane %v587, 1
    %v594 = vsel %vm455, %v592, %v593
    %v595 = vrot.slane %v588, 1
    %v596 = vsel %vm455, %v593, %v595
    %597 = vrot.lane.b32.xlu0 %v594, 127
    %v598 = vpop.permute.xlu0 %597
    %599 = vrot.lane.b32.xlu0 %v596, 127
    %v600 = vpop.permute.xlu0 %599
    %v603 = vadd.f32 %v463, %v598
    %v604 = vadd.f32 %v464, %v600
    %s605 = sld [smem:[#allocation4 + $0x28]]
    %v606 = vstv %s605
    %v607 = vmul.f32 %v172, %v606
    %v608 = vmul.f32 %v173, %v606
    %v609 = vmul.f32 %v174, %v606
    %v613 = vrot.slane %v607, 1
    %v614 = vrot.slane %v608, 1
    %v615 = vsel %vm455, %v613, %v614
    %v616 = vrot.slane %v609, 1
    %v617 = vsel %vm455, %v614, %v616
    %618 = vrot.lane.b32.xlu0 %v615, 127
    %v619 = vpop.permute.xlu0 %618
    %620 = vrot.lane.b32.xlu0 %v617, 127
    %v621 = vpop.permute.xlu0 %620
    %v624 = vadd.f32 %v480, %v619
    %v625 = vadd.f32 %v481, %v621
    %s626 = sld [smem:[#allocation4 + $0x4c]]
    %v627 = vstv %s626
    %v628 = vmul.f32 %v172, %v627
    %v629 = vmul.f32 %v173, %v627
    %v630 = vmul.f32 %v174, %v627
    %v634 = vrot.slane %v628, 1
    %v635 = vrot.slane %v629, 1
    %v636 = vsel %vm455, %v634, %v635
    %v637 = vrot.slane %v630, 1
    %v638 = vsel %vm455, %v635, %v637
    %639 = vrot.lane.b32.xlu0 %v636, 127
    %v640 = vpop.permute.xlu0 %639
    %641 = vrot.lane.b32.xlu0 %v638, 127
    %v642 = vpop.permute.xlu0 %641
    %v645 = vadd.f32 %v497, %v640
    %v646 = vadd.f32 %v498, %v642
    %s647 = sld [smem:[#allocation4 + $0x70]]
    %v648 = vstv %s647
    %v649 = vmul.f32 %v172, %v648
    %v650 = vmul.f32 %v173, %v648
    %v651 = vmul.f32 %v174, %v648
    %v655 = vrot.slane %v649, 1
    %v656 = vrot.slane %v650, 1
    %v657 = vsel %vm455, %v655, %v656
    %v658 = vrot.slane %v651, 1
    %v659 = vsel %vm455, %v656, %v658
    %660 = vrot.lane.b32.xlu0 %v657, 127
    %v661 = vpop.permute.xlu0 %660
    %662 = vrot.lane.b32.xlu0 %v659, 127
    %v663 = vpop.permute.xlu0 %662
    %v666 = vadd.f32 %v514, %v661
    %v667 = vadd.f32 %v515, %v663
    %s668 = sld [smem:[#allocation4 + $0x94]]
    %v669 = vstv %s668
    %v670 = vmul.f32 %v172, %v669
    %v671 = vmul.f32 %v173, %v669
    %v672 = vmul.f32 %v174, %v669
    %v676 = vrot.slane %v670, 1
    %v677 = vrot.slane %v671, 1
    %v678 = vsel %vm455, %v676, %v677
    %v679 = vrot.slane %v672, 1
    %v680 = vsel %vm455, %v677, %v679
    %681 = vrot.lane.b32.xlu0 %v678, 127
    %v682 = vpop.permute.xlu0 %681
    %683 = vrot.lane.b32.xlu0 %v680, 127
    %v684 = vpop.permute.xlu0 %683
    %v687 = vadd.f32 %v531, %v682
    %v688 = vadd.f32 %v532, %v684
    %s689 = sld [smem:[#allocation4 + $0xb8]]
    %v690 = vstv %s689
    %v691 = vmul.f32 %v172, %v690
    %v692 = vmul.f32 %v173, %v690
    %v693 = vmul.f32 %v174, %v690
    %v697 = vrot.slane %v691, 1
    %v698 = vrot.slane %v692, 1
    %v699 = vsel %vm455, %v697, %v698
    %v700 = vrot.slane %v693, 1
    %v701 = vsel %vm455, %v698, %v700
    %702 = vrot.lane.b32.xlu0 %v699, 127
    %v703 = vpop.permute.xlu0 %702
    %704 = vrot.lane.b32.xlu0 %v701, 127
    %v705 = vpop.permute.xlu0 %704
    %v708 = vadd.f32 %v548, %v703
    %v709 = vadd.f32 %v549, %v705
    %s710 = sld [smem:[#allocation4 + $0xdc]]
    %v711 = vstv %s710
    %v712 = vmul.f32 %v172, %v711
    %v713 = vmul.f32 %v173, %v711
    %v714 = vmul.f32 %v174, %v711
    %v718 = vrot.slane %v712, 1
    %v719 = vrot.slane %v713, 1
    %v720 = vsel %vm455, %v718, %v719
    %v721 = vrot.slane %v714, 1
    %v722 = vsel %vm455, %v719, %v721
    %723 = vrot.lane.b32.xlu0 %v720, 127
    %v724 = vpop.permute.xlu0 %723
    %725 = vrot.lane.b32.xlu0 %v722, 127
    %v726 = vpop.permute.xlu0 %725
    %v729 = vadd.f32 %v565, %v724
    %v730 = vadd.f32 %v566, %v726
    %s731 = sld [smem:[#allocation4 + $0x100]]
    %v732 = vstv %s731
    %v733 = vmul.f32 %v172, %v732
    %v734 = vmul.f32 %v173, %v732
    %v735 = vmul.f32 %v174, %v732
    %v739 = vrot.slane %v733, 1
    %v740 = vrot.slane %v734, 1
    %v741 = vsel %vm455, %v739, %v740
    %v742 = vrot.slane %v735, 1
    %v743 = vsel %vm455, %v740, %v742
    %744 = vrot.lane.b32.xlu0 %v741, 127
    %v745 = vpop.permute.xlu0 %744
    %746 = vrot.lane.b32.xlu0 %v743, 127
    %v747 = vpop.permute.xlu0 %746
    %v750 = vadd.f32 %v582, %v745
    %v751 = vadd.f32 %v583, %v747
    %s752 = sld [smem:[#allocation4 + $0x5]]
    %v753 = vstv %s752
    %v754 = vmul.f32 %v172, %v753
    %v755 = vmul.f32 %v173, %v753
    %v756 = vmul.f32 %v174, %v753
    %v760 = vrot.slane %v754, 1
    %v761 = vrot.slane %v755, 1
    %v762 = vsel %vm455, %v760, %v761
    %v763 = vrot.slane %v756, 1
    %v764 = vsel %vm455, %v761, %v763
    %765 = vrot.lane.b32.xlu0 %v762, 126
    %v766 = vpop.permute.xlu0 %765
    %767 = vrot.lane.b32.xlu0 %v764, 126
    %v768 = vpop.permute.xlu0 %767
    %v771 = vadd.f32 %v603, %v766
    %v772 = vadd.f32 %v604, %v768
    %s773 = sld [smem:[#allocation4 + $0x29]]
    %v774 = vstv %s773
    %v775 = vmul.f32 %v172, %v774
    %v776 = vmul.f32 %v173, %v774
    %v777 = vmul.f32 %v174, %v774
    %v781 = vrot.slane %v775, 1
    %v782 = vrot.slane %v776, 1
    %v783 = vsel %vm455, %v781, %v782
    %v784 = vrot.slane %v777, 1
    %v785 = vsel %vm455, %v782, %v784
    %786 = vrot.lane.b32.xlu0 %v783, 126
    %v787 = vpop.permute.xlu0 %786
    %788 = vrot.lane.b32.xlu0 %v785, 126
    %v789 = vpop.permute.xlu0 %788
    %v792 = vadd.f32 %v624, %v787
    %v793 = vadd.f32 %v625, %v789
    %s794 = sld [smem:[#allocation4 + $0x4d]]
    %v795 = vstv %s794
    %v796 = vmul.f32 %v172, %v795
    %v797 = vmul.f32 %v173, %v795
    %v798 = vmul.f32 %v174, %v795
    %v802 = vrot.slane %v796, 1
    %v803 = vrot.slane %v797, 1
    %v804 = vsel %vm455, %v802, %v803
    %v805 = vrot.slane %v798, 1
    %v806 = vsel %vm455, %v803, %v805
    %807 = vrot.lane.b32.xlu0 %v804, 126
    %v808 = vpop.permute.xlu0 %807
    %809 = vrot.lane.b32.xlu0 %v806, 126
    %v810 = vpop.permute.xlu0 %809
    %v813 = vadd.f32 %v645, %v808
    %v814 = vadd.f32 %v646, %v810
    %s815 = sld [smem:[#allocation4 + $0x71]]
    %v816 = vstv %s815
    %v817 = vmul.f32 %v172, %v816
    %v818 = vmul.f32 %v173, %v816
    %v819 = vmul.f32 %v174, %v816
    %v823 = vrot.slane %v817, 1
    %v824 = vrot.slane %v818, 1
    %v825 = vsel %vm455, %v823, %v824
    %v826 = vrot.slane %v819, 1
    %v827 = vsel %vm455, %v824, %v826
    %828 = vrot.lane.b32.xlu0 %v825, 126
    %v829 = vpop.permute.xlu0 %828
    %830 = vrot.lane.b32.xlu0 %v827, 126
    %v831 = vpop.permute.xlu0 %830
    %v834 = vadd.f32 %v666, %v829
    %v835 = vadd.f32 %v667, %v831
    %s836 = sld [smem:[#allocation4 + $0x95]]
    %v837 = vstv %s836
    %v838 = vmul.f32 %v172, %v837
    %v839 = vmul.f32 %v173, %v837
    %v840 = vmul.f32 %v174, %v837
    %v844 = vrot.slane %v838, 1
    %v845 = vrot.slane %v839, 1
    %v846 = vsel %vm455, %v844, %v845
    %v847 = vrot.slane %v840, 1
    %v848 = vsel %vm455, %v845, %v847
    %849 = vrot.lane.b32.xlu0 %v846, 126
    %v850 = vpop.permute.xlu0 %849
    %851 = vrot.lane.b32.xlu0 %v848, 126
    %v852 = vpop.permute.xlu0 %851
    %v855 = vadd.f32 %v687, %v850
    %v856 = vadd.f32 %v688, %v852
    %s857 = sld [smem:[#allocation4 + $0xb9]]
    %v858 = vstv %s857
    %v859 = vmul.f32 %v172, %v858
    %v860 = vmul.f32 %v173, %v858
    %v861 = vmul.f32 %v174, %v858
    %v865 = vrot.slane %v859, 1
    %v866 = vrot.slane %v860, 1
    %v867 = vsel %vm455, %v865, %v866
    %v868 = vrot.slane %v861, 1
    %v869 = vsel %vm455, %v866, %v868
    %870 = vrot.lane.b32.xlu0 %v867, 126
    %v871 = vpop.permute.xlu0 %870
    %872 = vrot.lane.b32.xlu0 %v869, 126
    %v873 = vpop.permute.xlu0 %872
    %v876 = vadd.f32 %v708, %v871
    %v877 = vadd.f32 %v709, %v873
    %s878 = sld [smem:[#allocation4 + $0xdd]]
    %v879 = vstv %s878
    %v880 = vmul.f32 %v172, %v879
    %v881 = vmul.f32 %v173, %v879
    %v882 = vmul.f32 %v174, %v879
    %v886 = vrot.slane %v880, 1
    %v887 = vrot.slane %v881, 1
    %v888 = vsel %vm455, %v886, %v887
    %v889 = vrot.slane %v882, 1
    %v890 = vsel %vm455, %v887, %v889
    %891 = vrot.lane.b32.xlu0 %v888, 126
    %v892 = vpop.permute.xlu0 %891
    %893 = vrot.lane.b32.xlu0 %v890, 126
    %v894 = vpop.permute.xlu0 %893
    %v897 = vadd.f32 %v729, %v892
    %v898 = vadd.f32 %v730, %v894
    %s899 = sld [smem:[#allocation4 + $0x101]]
    %v900 = vstv %s899
    %v901 = vmul.f32 %v172, %v900
    %v902 = vmul.f32 %v173, %v900
    %v903 = vmul.f32 %v174, %v900
    %v907 = vrot.slane %v901, 1
    %v908 = vrot.slane %v902, 1
    %v909 = vsel %vm455, %v907, %v908
    %v910 = vrot.slane %v903, 1
    %v911 = vsel %vm455, %v908, %v910
    %912 = vrot.lane.b32.xlu0 %v909, 126
    %v913 = vpop.permute.xlu0 %912
    %914 = vrot.lane.b32.xlu0 %v911, 126
    %v915 = vpop.permute.xlu0 %914
    %v918 = vadd.f32 %v750, %v913
    %v919 = vadd.f32 %v751, %v915
    %s920 = sld [smem:[#allocation4 + $0x6]]
    %v921 = vstv %s920
    %v922 = vmul.f32 %v172, %v921
    %v923 = vmul.f32 %v173, %v921
    %v924 = vmul.f32 %v174, %v921
    %vm928 = vcmask 1045504
    %v929 = vrot.slane %v922, 2
    %v930 = vrot.slane %v923, 2
    %v931 = vsel %vm928, %v929, %v930
    %v932 = vrot.slane %v924, 2
    %v933 = vsel %vm928, %v930, %v932
    %v936 = vadd.f32 %v771, %v931
    %v937 = vadd.f32 %v772, %v933
    %s938 = sld [smem:[#allocation4 + $0x2a]]
    %v939 = vstv %s938
    %v940 = vmul.f32 %v172, %v939
    %v941 = vmul.f32 %v173, %v939
    %v942 = vmul.f32 %v174, %v939
    %v946 = vrot.slane %v940, 2
    %v947 = vrot.slane %v941, 2
    %v948 = vsel %vm928, %v946, %v947
    %v949 = vrot.slane %v942, 2
    %v950 = vsel %vm928, %v947, %v949
    %v953 = vadd.f32 %v792, %v948
    %v954 = vadd.f32 %v793, %v950
    %s955 = sld [smem:[#allocation4 + $0x4e]]
    %v956 = vstv %s955
    %v957 = vmul.f32 %v172, %v956
    %v958 = vmul.f32 %v173, %v956
    %v959 = vmul.f32 %v174, %v956
    %v963 = vrot.slane %v957, 2
    %v964 = vrot.slane %v958, 2
    %v965 = vsel %vm928, %v963, %v964
    %v966 = vrot.slane %v959, 2
    %v967 = vsel %vm928, %v964, %v966
    %v970 = vadd.f32 %v813, %v965
    %v971 = vadd.f32 %v814, %v967
    %s972 = sld [smem:[#allocation4 + $0x72]]
    %v973 = vstv %s972
    %v974 = vmul.f32 %v172, %v973
    %v975 = vmul.f32 %v173, %v973
    %v976 = vmul.f32 %v174, %v973
    %v980 = vrot.slane %v974, 2
    %v981 = vrot.slane %v975, 2
    %v982 = vsel %vm928, %v980, %v981
    %v983 = vrot.slane %v976, 2
    %v984 = vsel %vm928, %v981, %v983
    %v987 = vadd.f32 %v834, %v982
    %v988 = vadd.f32 %v835, %v984
    %s989 = sld [smem:[#allocation4 + $0x96]]
    %v990 = vstv %s989
    %v991 = vmul.f32 %v172, %v990
    %v992 = vmul.f32 %v173, %v990
    %v993 = vmul.f32 %v174, %v990
    %v997 = vrot.slane %v991, 2
    %v998 = vrot.slane %v992, 2
    %v999 = vsel %vm928, %v997, %v998
    %v1000 = vrot.slane %v993, 2
    %v1001 = vsel %vm928, %v998, %v1000
    %v1004 = vadd.f32 %v855, %v999
    %v1005 = vadd.f32 %v856, %v1001
    %s1006 = sld [smem:[#allocation4 + $0xba]]
    %v1007 = vstv %s1006
    %v1008 = vmul.f32 %v172, %v1007
    %v1009 = vmul.f32 %v173, %v1007
    %v1010 = vmul.f32 %v174, %v1007
    %v1014 = vrot.slane %v1008, 2
    %v1015 = vrot.slane %v1009, 2
    %v1016 = vsel %vm928, %v1014, %v1015
    %v1017 = vrot.slane %v1010, 2
    %v1018 = vsel %vm928, %v1015, %v1017
    %v1021 = vadd.f32 %v876, %v1016
    %v1022 = vadd.f32 %v877, %v1018
    %s1023 = sld [smem:[#allocation4 + $0xde]]
    %v1024 = vstv %s1023
    %v1025 = vmul.f32 %v172, %v1024
    %v1026 = vmul.f32 %v173, %v1024
    %v1027 = vmul.f32 %v174, %v1024
    %v1031 = vrot.slane %v1025, 2
    %v1032 = vrot.slane %v1026, 2
    %v1033 = vsel %vm928, %v1031, %v1032
    %v1034 = vrot.slane %v1027, 2
    %v1035 = vsel %vm928, %v1032, %v1034
    %v1038 = vadd.f32 %v897, %v1033
    %v1039 = vadd.f32 %v898, %v1035
    %s1040 = sld [smem:[#allocation4 + $0x102]]
    %v1041 = vstv %s1040
    %v1042 = vmul.f32 %v172, %v1041
    %v1043 = vmul.f32 %v173, %v1041
    %v1044 = vmul.f32 %v174, %v1041
    %v1048 = vrot.slane %v1042, 2
    %v1049 = vrot.slane %v1043, 2
    %v1050 = vsel %vm928, %v1048, %v1049
    %v1051 = vrot.slane %v1044, 2
    %v1052 = vsel %vm928, %v1049, %v1051
    %v1055 = vadd.f32 %v918, %v1050
    %v1056 = vadd.f32 %v919, %v1052
    %s1057 = sld [smem:[#allocation4 + $0x7]]
    %v1058 = vstv %s1057
    %v1059 = vmul.f32 %v172, %v1058
    %v1060 = vmul.f32 %v173, %v1058
    %v1061 = vmul.f32 %v174, %v1058
    %v1065 = vrot.slane %v1059, 2
    %v1066 = vrot.slane %v1060, 2
    %v1067 = vsel %vm928, %v1065, %v1066
    %v1068 = vrot.slane %v1061, 2
    %v1069 = vsel %vm928, %v1066, %v1068
    %1070 = vrot.lane.b32.xlu0 %v1067, 127
    %v1071 = vpop.permute.xlu0 %1070
    %1072 = vrot.lane.b32.xlu0 %v1069, 127
    %v1073 = vpop.permute.xlu0 %1072
    %v1076 = vadd.f32 %v936, %v1071
    %v1077 = vadd.f32 %v937, %v1073
    %s1078 = sld [smem:[#allocation4 + $0x2b]]
    %v1079 = vstv %s1078
    %v1080 = vmul.f32 %v172, %v1079
    %v1081 = vmul.f32 %v173, %v1079
    %v1082 = vmul.f32 %v174, %v1079
    %v1086 = vrot.slane %v1080, 2
    %v1087 = vrot.slane %v1081, 2
    %v1088 = vsel %vm928, %v1086, %v1087
    %v1089 = vrot.slane %v1082, 2
    %v1090 = vsel %vm928, %v1087, %v1089
    %1091 = vrot.lane.b32.xlu0 %v1088, 127
    %v1092 = vpop.permute.xlu0 %1091
    %1093 = vrot.lane.b32.xlu0 %v1090, 127
    %v1094 = vpop.permute.xlu0 %1093
    %v1097 = vadd.f32 %v953, %v1092
    %v1098 = vadd.f32 %v954, %v1094
    %s1099 = sld [smem:[#allocation4 + $0x4f]]
    %v1100 = vstv %s1099
    %v1101 = vmul.f32 %v172, %v1100
    %v1102 = vmul.f32 %v173, %v1100
    %v1103 = vmul.f32 %v174, %v1100
    %v1107 = vrot.slane %v1101, 2
    %v1108 = vrot.slane %v1102, 2
    %v1109 = vsel %vm928, %v1107, %v1108
    %v1110 = vrot.slane %v1103, 2
    %v1111 = vsel %vm928, %v1108, %v1110
    %1112 = vrot.lane.b32.xlu0 %v1109, 127
    %v1113 = vpop.permute.xlu0 %1112
    %1114 = vrot.lane.b32.xlu0 %v1111, 127
    %v1115 = vpop.permute.xlu0 %1114
    %v1118 = vadd.f32 %v970, %v1113
    %v1119 = vadd.f32 %v971, %v1115
    %s1120 = sld [smem:[#allocation4 + $0x73]]
    %v1121 = vstv %s1120
    %v1122 = vmul.f32 %v172, %v1121
    %v1123 = vmul.f32 %v173, %v1121
    %v1124 = vmul.f32 %v174, %v1121
    %v1128 = vrot.slane %v1122, 2
    %v1129 = vrot.slane %v1123, 2
    %v1130 = vsel %vm928, %v1128, %v1129
    %v1131 = vrot.slane %v1124, 2
    %v1132 = vsel %vm928, %v1129, %v1131
    %1133 = vrot.lane.b32.xlu0 %v1130, 127
    %v1134 = vpop.permute.xlu0 %1133
    %1135 = vrot.lane.b32.xlu0 %v1132, 127
    %v1136 = vpop.permute.xlu0 %1135
    %v1139 = vadd.f32 %v987, %v1134
    %v1140 = vadd.f32 %v988, %v1136
    %s1141 = sld [smem:[#allocation4 + $0x97]]
    %v1142 = vstv %s1141
    %v1143 = vmul.f32 %v172, %v1142
    %v1144 = vmul.f32 %v173, %v1142
    %v1145 = vmul.f32 %v174, %v1142
    %v1149 = vrot.slane %v1143, 2
    %v1150 = vrot.slane %v1144, 2
    %v1151 = vsel %vm928, %v1149, %v1150
    %v1152 = vrot.slane %v1145, 2
    %v1153 = vsel %vm928, %v1150, %v1152
    %1154 = vrot.lane.b32.xlu0 %v1151, 127
    %v1155 = vpop.permute.xlu0 %1154
    %1156 = vrot.lane.b32.xlu0 %v1153, 127
    %v1157 = vpop.permute.xlu0 %1156
    %v1160 = vadd.f32 %v1004, %v1155
    %v1161 = vadd.f32 %v1005, %v1157
    %s1162 = sld [smem:[#allocation4 + $0xbb]]
    %v1163 = vstv %s1162
    %v1164 = vmul.f32 %v172, %v1163
    %v1165 = vmul.f32 %v173, %v1163
    %v1166 = vmul.f32 %v174, %v1163
    %v1170 = vrot.slane %v1164, 2
    %v1171 = vrot.slane %v1165, 2
    %v1172 = vsel %vm928, %v1170, %v1171
    %v1173 = vrot.slane %v1166, 2
    %v1174 = vsel %vm928, %v1171, %v1173
    %1175 = vrot.lane.b32.xlu0 %v1172, 127
    %v1176 = vpop.permute.xlu0 %1175
    %1177 = vrot.lane.b32.xlu0 %v1174, 127
    %v1178 = vpop.permute.xlu0 %1177
    %v1181 = vadd.f32 %v1021, %v1176
    %v1182 = vadd.f32 %v1022, %v1178
    %s1183 = sld [smem:[#allocation4 + $0xdf]]
    %v1184 = vstv %s1183
    %v1185 = vmul.f32 %v172, %v1184
    %v1186 = vmul.f32 %v173, %v1184
    %v1187 = vmul.f32 %v174, %v1184
    %v1191 = vrot.slane %v1185, 2
    %v1192 = vrot.slane %v1186, 2
    %v1193 = vsel %vm928, %v1191, %v1192
    %v1194 = vrot.slane %v1187, 2
    %v1195 = vsel %vm928, %v1192, %v1194
    %1196 = vrot.lane.b32.xlu0 %v1193, 127
    %v1197 = vpop.permute.xlu0 %1196
    %1198 = vrot.lane.b32.xlu0 %v1195, 127
    %v1199 = vpop.permute.xlu0 %1198
    %v1202 = vadd.f32 %v1038, %v1197
    %v1203 = vadd.f32 %v1039, %v1199
    %s1204 = sld [smem:[#allocation4 + $0x103]]
    %v1205 = vstv %s1204
    %v1206 = vmul.f32 %v172, %v1205
    %v1207 = vmul.f32 %v173, %v1205
    %v1208 = vmul.f32 %v174, %v1205
    %v1212 = vrot.slane %v1206, 2
    %v1213 = vrot.slane %v1207, 2
    %v1214 = vsel %vm928, %v1212, %v1213
    %v1215 = vrot.slane %v1208, 2
    %v1216 = vsel %vm928, %v1213, %v1215
    %1217 = vrot.lane.b32.xlu0 %v1214, 127
    %v1218 = vpop.permute.xlu0 %1217
    %1219 = vrot.lane.b32.xlu0 %v1216, 127
    %v1220 = vpop.permute.xlu0 %1219
    %v1223 = vadd.f32 %v1055, %v1218
    %v1224 = vadd.f32 %v1056, %v1220
    %s1225 = sld [smem:[#allocation4 + $0x8]]
    %v1226 = vstv %s1225
    %v1227 = vmul.f32 %v172, %v1226
    %v1228 = vmul.f32 %v173, %v1226
    %v1229 = vmul.f32 %v174, %v1226
    %v1233 = vrot.slane %v1227, 2
    %v1234 = vrot.slane %v1228, 2
    %v1235 = vsel %vm928, %v1233, %v1234
    %v1236 = vrot.slane %v1229, 2
    %v1237 = vsel %vm928, %v1234, %v1236
    %1238 = vrot.lane.b32.xlu0 %v1235, 126
    %v1239 = vpop.permute.xlu0 %1238
    %1240 = vrot.lane.b32.xlu0 %v1237, 126
    %v1241 = vpop.permute.xlu0 %1240
    %v1244 = vadd.f32 %v1076, %v1239
    %v1245 = vadd.f32 %v1077, %v1241
    %s1246 = sld [smem:[#allocation4 + $0x2c]]
    %v1247 = vstv %s1246
    %v1248 = vmul.f32 %v172, %v1247
    %v1249 = vmul.f32 %v173, %v1247
    %v1250 = vmul.f32 %v174, %v1247
    %v1254 = vrot.slane %v1248, 2
    %v1255 = vrot.slane %v1249, 2
    %v1256 = vsel %vm928, %v1254, %v1255
    %v1257 = vrot.slane %v1250, 2
    %v1258 = vsel %vm928, %v1255, %v1257
    %1259 = vrot.lane.b32.xlu0 %v1256, 126
    %v1260 = vpop.permute.xlu0 %1259
    %1261 = vrot.lane.b32.xlu0 %v1258, 126
    %v1262 = vpop.permute.xlu0 %1261
    %v1265 = vadd.f32 %v1097, %v1260
    %v1266 = vadd.f32 %v1098, %v1262
    %s1267 = sld [smem:[#allocation4 + $0x50]]
    %v1268 = vstv %s1267
    %v1269 = vmul.f32 %v172, %v1268
    %v1270 = vmul.f32 %v173, %v1268
    %v1271 = vmul.f32 %v174, %v1268
    %v1275 = vrot.slane %v1269, 2
    %v1276 = vrot.slane %v1270, 2
    %v1277 = vsel %vm928, %v1275, %v1276
    %v1278 = vrot.slane %v1271, 2
    %v1279 = vsel %vm928, %v1276, %v1278
    %1280 = vrot.lane.b32.xlu0 %v1277, 126
    %v1281 = vpop.permute.xlu0 %1280
    %1282 = vrot.lane.b32.xlu0 %v1279, 126
    %v1283 = vpop.permute.xlu0 %1282
    %v1286 = vadd.f32 %v1118, %v1281
    %v1287 = vadd.f32 %v1119, %v1283
    %s1288 = sld [smem:[#allocation4 + $0x74]]
    %v1289 = vstv %s1288
    %v1290 = vmul.f32 %v172, %v1289
    %v1291 = vmul.f32 %v173, %v1289
    %v1292 = vmul.f32 %v174, %v1289
    %v1296 = vrot.slane %v1290, 2
    %v1297 = vrot.slane %v1291, 2
    %v1298 = vsel %vm928, %v1296, %v1297
    %v1299 = vrot.slane %v1292, 2
    %v1300 = vsel %vm928, %v1297, %v1299
    %1301 = vrot.lane.b32.xlu0 %v1298, 126
    %v1302 = vpop.permute.xlu0 %1301
    %1303 = vrot.lane.b32.xlu0 %v1300, 126
    %v1304 = vpop.permute.xlu0 %1303
    %v1307 = vadd.f32 %v1139, %v1302
    %v1308 = vadd.f32 %v1140, %v1304
    %s1309 = sld [smem:[#allocation4 + $0x98]]
    %v1310 = vstv %s1309
    %v1311 = vmul.f32 %v172, %v1310
    %v1312 = vmul.f32 %v173, %v1310
    %v1313 = vmul.f32 %v174, %v1310
    %v1317 = vrot.slane %v1311, 2
    %v1318 = vrot.slane %v1312, 2
    %v1319 = vsel %vm928, %v1317, %v1318
    %v1320 = vrot.slane %v1313, 2
    %v1321 = vsel %vm928, %v1318, %v1320
    %1322 = vrot.lane.b32.xlu0 %v1319, 126
    %v1323 = vpop.permute.xlu0 %1322
    %1324 = vrot.lane.b32.xlu0 %v1321, 126
    %v1325 = vpop.permute.xlu0 %1324
    %v1328 = vadd.f32 %v1160, %v1323
    %v1329 = vadd.f32 %v1161, %v1325
    %s1330 = sld [smem:[#allocation4 + $0xbc]]
    %v1331 = vstv %s1330
    %v1332 = vmul.f32 %v172, %v1331
    %v1333 = vmul.f32 %v173, %v1331
    %v1334 = vmul.f32 %v174, %v1331
    %v1338 = vrot.slane %v1332, 2
    %v1339 = vrot.slane %v1333, 2
    %v1340 = vsel %vm928, %v1338, %v1339
    %v1341 = vrot.slane %v1334, 2
    %v1342 = vsel %vm928, %v1339, %v1341
    %1343 = vrot.lane.b32.xlu0 %v1340, 126
    %v1344 = vpop.permute.xlu0 %1343
    %1345 = vrot.lane.b32.xlu0 %v1342, 126
    %v1346 = vpop.permute.xlu0 %1345
    %v1349 = vadd.f32 %v1181, %v1344
    %v1350 = vadd.f32 %v1182, %v1346
    %s1351 = sld [smem:[#allocation4 + $0xe0]]
    %v1352 = vstv %s1351
    %v1353 = vmul.f32 %v172, %v1352
    %v1354 = vmul.f32 %v173, %v1352
    %v1355 = vmul.f32 %v174, %v1352
    %v1359 = vrot.slane %v1353, 2
    %v1360 = vrot.slane %v1354, 2
    %v1361 = vsel %vm928, %v1359, %v1360
    %v1362 = vrot.slane %v1355, 2
    %v1363 = vsel %vm928, %v1360, %v1362
    %1364 = vrot.lane.b32.xlu0 %v1361, 126
    %v1365 = vpop.permute.xlu0 %1364
    %1366 = vrot.lane.b32.xlu0 %v1363, 126
    %v1367 = vpop.permute.xlu0 %1366
    %v1370 = vadd.f32 %v1202, %v1365
    %v1371 = vadd.f32 %v1203, %v1367
    %s1372 = sld [smem:[#allocation4 + $0x104]]
    %v1373 = vstv %s1372
    %v1374 = vmul.f32 %v172, %v1373
    %v1375 = vmul.f32 %v173, %v1373
    %v1376 = vmul.f32 %v174, %v1373
    %v1380 = vrot.slane %v1374, 2
    %v1381 = vrot.slane %v1375, 2
    %v1382 = vsel %vm928, %v1380, %v1381
    %v1383 = vrot.slane %v1376, 2
    %v1384 = vsel %vm928, %v1381, %v1383
    %1385 = vrot.lane.b32.xlu0 %v1382, 126
    %v1386 = vpop.permute.xlu0 %1385
    %1387 = vrot.lane.b32.xlu0 %v1384, 126
    %v1388 = vpop.permute.xlu0 %1387
    %v1391 = vadd.f32 %v1223, %v1386
    %v1392 = vadd.f32 %v1224, %v1388
    %s1393 = scalar_lea.vmem [#allocation2], 24
    %v1394 = vld [vmem:[%s1393] sm:$0xff]
    %v1395 = vld [vmem:[%s1393 + $0x8] sm:$0xff]
    %v1396 = vld [vmem:[%s1393 + $0x10] sm:$0x3]
    %s1397 = sld [smem:[#allocation4 + $0x9]]
    %v1398 = vstv %s1397
    %v1399 = vmul.f32 %v1394, %v1398
    %v1400 = vmul.f32 %v1395, %v1398
    %v1401 = vadd.f32 %v1244, %v1399
    %v1402 = vadd.f32 %v1245, %v1400
    %s1403 = sld [smem:[#allocation4 + $0x2d]]
    %v1404 = vstv %s1403
    %v1405 = vmul.f32 %v1394, %v1404
    %v1406 = vmul.f32 %v1395, %v1404
    %v1407 = vadd.f32 %v1265, %v1405
    %v1408 = vadd.f32 %v1266, %v1406
    %s1409 = sld [smem:[#allocation4 + $0x51]]
    %v1410 = vstv %s1409
    %v1411 = vmul.f32 %v1394, %v1410
    %v1412 = vmul.f32 %v1395, %v1410
    %v1413 = vadd.f32 %v1286, %v1411
    %v1414 = vadd.f32 %v1287, %v1412
    %s1415 = sld [smem:[#allocation4 + $0x75]]
    %v1416 = vstv %s1415
    %v1417 = vmul.f32 %v1394, %v1416
    %v1418 = vmul.f32 %v1395, %v1416
    %v1419 = vadd.f32 %v1307, %v1417
    %v1420 = vadd.f32 %v1308, %v1418
    %s1421 = sld [smem:[#allocation4 + $0x99]]
    %v1422 = vstv %s1421
    %v1423 = vmul.f32 %v1394, %v1422
    %v1424 = vmul.f32 %v1395, %v1422
    %v1425 = vadd.f32 %v1328, %v1423
    %v1426 = vadd.f32 %v1329, %v1424
    %s1427 = sld [smem:[#allocation4 + $0xbd]]
    %v1428 = vstv %s1427
    %v1429 = vmul.f32 %v1394, %v1428
    %v1430 = vmul.f32 %v1395, %v1428
    %v1431 = vadd.f32 %v1349, %v1429
    %v1432 = vadd.f32 %v1350, %v1430
    %s1433 = sld [smem:[#allocation4 + $0xe1]]
    %v1434 = vstv %s1433
    %v1435 = vmul.f32 %v1394, %v1434
    %v1436 = vmul.f32 %v1395, %v1434
    %v1437 = vadd.f32 %v1370, %v1435
    %v1438 = vadd.f32 %v1371, %v1436
    %s1439 = sld [smem:[#allocation4 + $0x105]]
    %v1440 = vstv %s1439
    %v1441 = vmul.f32 %v1394, %v1440
    %v1442 = vmul.f32 %v1395, %v1440
    %v1443 = vadd.f32 %v1391, %v1441
    %v1444 = vadd.f32 %v1392, %v1442
    %s1445 = sld [smem:[#allocation4 + $0xa]]
    %v1446 = vstv %s1445
    %v1447 = vmul.f32 %v1394, %v1446
    %v1448 = vmul.f32 %v1395, %v1446
    %1451 = vrot.lane.b32.xlu0 %v1447, 127
    %v1452 = vpop.permute.xlu0 %1451
    %1453 = vrot.lane.b32.xlu0 %v1448, 127
    %v1454 = vpop.permute.xlu0 %1453
    %v1457 = vadd.f32 %v1401, %v1452
    %v1458 = vadd.f32 %v1402, %v1454
    %s1459 = sld [smem:[#allocation4 + $0x2e]]
    %v1460 = vstv %s1459
    %v1461 = vmul.f32 %v1394, %v1460
    %v1462 = vmul.f32 %v1395, %v1460
    %1465 = vrot.lane.b32.xlu0 %v1461, 127
    %v1466 = vpop.permute.xlu0 %1465
    %1467 = vrot.lane.b32.xlu0 %v1462, 127
    %v1468 = vpop.permute.xlu0 %1467
    %v1471 = vadd.f32 %v1407, %v1466
    %v1472 = vadd.f32 %v1408, %v1468
    %s1473 = sld [smem:[#allocation4 + $0x52]]
    %v1474 = vstv %s1473
    %v1475 = vmul.f32 %v1394, %v1474
    %v1476 = vmul.f32 %v1395, %v1474
    %1479 = vrot.lane.b32.xlu0 %v1475, 127
    %v1480 = vpop.permute.xlu0 %1479
    %1481 = vrot.lane.b32.xlu0 %v1476, 127
    %v1482 = vpop.permute.xlu0 %1481
    %v1485 = vadd.f32 %v1413, %v1480
    %v1486 = vadd.f32 %v1414, %v1482
    %s1487 = sld [smem:[#allocation4 + $0x76]]
    %v1488 = vstv %s1487
    %v1489 = vmul.f32 %v1394, %v1488
    %v1490 = vmul.f32 %v1395, %v1488
    %1493 = vrot.lane.b32.xlu0 %v1489, 127
    %v1494 = vpop.permute.xlu0 %1493
    %1495 = vrot.lane.b32.xlu0 %v1490, 127
    %v1496 = vpop.permute.xlu0 %1495
    %v1499 = vadd.f32 %v1419, %v1494
    %v1500 = vadd.f32 %v1420, %v1496
    %s1501 = sld [smem:[#allocation4 + $0x9a]]
    %v1502 = vstv %s1501
    %v1503 = vmul.f32 %v1394, %v1502
    %v1504 = vmul.f32 %v1395, %v1502
    %1507 = vrot.lane.b32.xlu0 %v1503, 127
    %v1508 = vpop.permute.xlu0 %1507
    %1509 = vrot.lane.b32.xlu0 %v1504, 127
    %v1510 = vpop.permute.xlu0 %1509
    %v1513 = vadd.f32 %v1425, %v1508
    %v1514 = vadd.f32 %v1426, %v1510
    %s1515 = sld [smem:[#allocation4 + $0xbe]]
    %v1516 = vstv %s1515
    %v1517 = vmul.f32 %v1394, %v1516
    %v1518 = vmul.f32 %v1395, %v1516
    %1521 = vrot.lane.b32.xlu0 %v1517, 127
    %v1522 = vpop.permute.xlu0 %1521
    %1523 = vrot.lane.b32.xlu0 %v1518, 127
    %v1524 = vpop.permute.xlu0 %1523
    %v1527 = vadd.f32 %v1431, %v1522
    %v1528 = vadd.f32 %v1432, %v1524
    %s1529 = sld [smem:[#allocation4 + $0xe2]]
    %v1530 = vstv %s1529
    %v1531 = vmul.f32 %v1394, %v1530
    %v1532 = vmul.f32 %v1395, %v1530
    %1535 = vrot.lane.b32.xlu0 %v1531, 127
    %v1536 = vpop.permute.xlu0 %1535
    %1537 = vrot.lane.b32.xlu0 %v1532, 127
    %v1538 = vpop.permute.xlu0 %1537
    %v1541 = vadd.f32 %v1437, %v1536
    %v1542 = vadd.f32 %v1438, %v1538
    %s1543 = sld [smem:[#allocation4 + $0x106]]
    %v1544 = vstv %s1543
    %v1545 = vmul.f32 %v1394, %v1544
    %v1546 = vmul.f32 %v1395, %v1544
    %1549 = vrot.lane.b32.xlu0 %v1545, 127
    %v1550 = vpop.permute.xlu0 %1549
    %1551 = vrot.lane.b32.xlu0 %v1546, 127
    %v1552 = vpop.permute.xlu0 %1551
    %v1555 = vadd.f32 %v1443, %v1550
    %v1556 = vadd.f32 %v1444, %v1552
    %s1557 = sld [smem:[#allocation4 + $0xb]]
    %v1558 = vstv %s1557
    %v1559 = vmul.f32 %v1394, %v1558
    %v1560 = vmul.f32 %v1395, %v1558
    %1563 = vrot.lane.b32.xlu0 %v1559, 126
    %v1564 = vpop.permute.xlu0 %1563
    %1565 = vrot.lane.b32.xlu0 %v1560, 126
    %v1566 = vpop.permute.xlu0 %1565
    %v1569 = vadd.f32 %v1457, %v1564
    %v1570 = vadd.f32 %v1458, %v1566
    %s1571 = sld [smem:[#allocation4 + $0x2f]]
    %v1572 = vstv %s1571
    %v1573 = vmul.f32 %v1394, %v1572
    %v1574 = vmul.f32 %v1395, %v1572
    %1577 = vrot.lane.b32.xlu0 %v1573, 126
    %v1578 = vpop.permute.xlu0 %1577
    %1579 = vrot.lane.b32.xlu0 %v1574, 126
    %v1580 = vpop.permute.xlu0 %1579
    %v1583 = vadd.f32 %v1471, %v1578
    %v1584 = vadd.f32 %v1472, %v1580
    %s1585 = sld [smem:[#allocation4 + $0x53]]
    %v1586 = vstv %s1585
    %v1587 = vmul.f32 %v1394, %v1586
    %v1588 = vmul.f32 %v1395, %v1586
    %1591 = vrot.lane.b32.xlu0 %v1587, 126
    %v1592 = vpop.permute.xlu0 %1591
    %1593 = vrot.lane.b32.xlu0 %v1588, 126
    %v1594 = vpop.permute.xlu0 %1593
    %v1597 = vadd.f32 %v1485, %v1592
    %v1598 = vadd.f32 %v1486, %v1594
    %s1599 = sld [smem:[#allocation4 + $0x77]]
    %v1600 = vstv %s1599
    %v1601 = vmul.f32 %v1394, %v1600
    %v1602 = vmul.f32 %v1395, %v1600
    %1605 = vrot.lane.b32.xlu0 %v1601, 126
    %v1606 = vpop.permute.xlu0 %1605
    %1607 = vrot.lane.b32.xlu0 %v1602, 126
    %v1608 = vpop.permute.xlu0 %1607
    %v1611 = vadd.f32 %v1499, %v1606
    %v1612 = vadd.f32 %v1500, %v1608
    %s1613 = sld [smem:[#allocation4 + $0x9b]]
    %v1614 = vstv %s1613
    %v1615 = vmul.f32 %v1394, %v1614
    %v1616 = vmul.f32 %v1395, %v1614
    %1619 = vrot.lane.b32.xlu0 %v1615, 126
    %v1620 = vpop.permute.xlu0 %1619
    %1621 = vrot.lane.b32.xlu0 %v1616, 126
    %v1622 = vpop.permute.xlu0 %1621
    %v1625 = vadd.f32 %v1513, %v1620
    %v1626 = vadd.f32 %v1514, %v1622
    %s1627 = sld [smem:[#allocation4 + $0xbf]]
    %v1628 = vstv %s1627
    %v1629 = vmul.f32 %v1394, %v1628
    %v1630 = vmul.f32 %v1395, %v1628
    %1633 = vrot.lane.b32.xlu0 %v1629, 126
    %v1634 = vpop.permute.xlu0 %1633
    %1635 = vrot.lane.b32.xlu0 %v1630, 126
    %v1636 = vpop.permute.xlu0 %1635
    %v1639 = vadd.f32 %v1527, %v1634
    %v1640 = vadd.f32 %v1528, %v1636
    %s1641 = sld [smem:[#allocation4 + $0xe3]]
    %v1642 = vstv %s1641
    %v1643 = vmul.f32 %v1394, %v1642
    %v1644 = vmul.f32 %v1395, %v1642
    %1647 = vrot.lane.b32.xlu0 %v1643, 126
    %v1648 = vpop.permute.xlu0 %1647
    %1649 = vrot.lane.b32.xlu0 %v1644, 126
    %v1650 = vpop.permute.xlu0 %1649
    %v1653 = vadd.f32 %v1541, %v1648
    %v1654 = vadd.f32 %v1542, %v1650
    %s1655 = sld [smem:[#allocation4 + $0x107]]
    %v1656 = vstv %s1655
    %v1657 = vmul.f32 %v1394, %v1656
    %v1658 = vmul.f32 %v1395, %v1656
    %1661 = vrot.lane.b32.xlu0 %v1657, 126
    %v1662 = vpop.permute.xlu0 %1661
    %1663 = vrot.lane.b32.xlu0 %v1658, 126
    %v1664 = vpop.permute.xlu0 %1663
    %v1667 = vadd.f32 %v1555, %v1662
    %v1668 = vadd.f32 %v1556, %v1664
    %s1669 = sld [smem:[#allocation4 + $0xc]]
    %v1670 = vstv %s1669
    %v1671 = vmul.f32 %v1394, %v1670
    %v1672 = vmul.f32 %v1395, %v1670
    %v1673 = vmul.f32 %v1396, %v1670
    %v1677 = vrot.slane %v1671, 1
    %v1678 = vrot.slane %v1672, 1
    %v1679 = vsel %vm455, %v1677, %v1678
    %v1680 = vrot.slane %v1673, 1
    %v1681 = vsel %vm455, %v1678, %v1680
    %v1684 = vadd.f32 %v1569, %v1679
    %v1685 = vadd.f32 %v1570, %v1681
    %s1686 = sld [smem:[#allocation4 + $0x30]]
    %v1687 = vstv %s1686
    %v1688 = vmul.f32 %v1394, %v1687
    %v1689 = vmul.f32 %v1395, %v1687
    %v1690 = vmul.f32 %v1396, %v1687
    %v1694 = vrot.slane %v1688, 1
    %v1695 = vrot.slane %v1689, 1
    %v1696 = vsel %vm455, %v1694, %v1695
    %v1697 = vrot.slane %v1690, 1
    %v1698 = vsel %vm455, %v1695, %v1697
    %v1701 = vadd.f32 %v1583, %v1696
    %v1702 = vadd.f32 %v1584, %v1698
    %s1703 = sld [smem:[#allocation4 + $0x54]]
    %v1704 = vstv %s1703
    %v1705 = vmul.f32 %v1394, %v1704
    %v1706 = vmul.f32 %v1395, %v1704
    %v1707 = vmul.f32 %v1396, %v1704
    %v1711 = vrot.slane %v1705, 1
    %v1712 = vrot.slane %v1706, 1
    %v1713 = vsel %vm455, %v1711, %v1712
    %v1714 = vrot.slane %v1707, 1
    %v1715 = vsel %vm455, %v1712, %v1714
    %v1718 = vadd.f32 %v1597, %v1713
    %v1719 = vadd.f32 %v1598, %v1715
    %s1720 = sld [smem:[#allocation4 + $0x78]]
    %v1721 = vstv %s1720
    %v1722 = vmul.f32 %v1394, %v1721
    %v1723 = vmul.f32 %v1395, %v1721
    %v1724 = vmul.f32 %v1396, %v1721
    %v1728 = vrot.slane %v1722, 1
    %v1729 = vrot.slane %v1723, 1
    %v1730 = vsel %vm455, %v1728, %v1729
    %v1731 = vrot.slane %v1724, 1
    %v1732 = vsel %vm455, %v1729, %v1731
    %v1735 = vadd.f32 %v1611, %v1730
    %v1736 = vadd.f32 %v1612, %v1732
    %s1737 = sld [smem:[#allocation4 + $0x9c]]
    %v1738 = vstv %s1737
    %v1739 = vmul.f32 %v1394, %v1738
    %v1740 = vmul.f32 %v1395, %v1738
    %v1741 = vmul.f32 %v1396, %v1738
    %v1745 = vrot.slane %v1739, 1
    %v1746 = vrot.slane %v1740, 1
    %v1747 = vsel %vm455, %v1745, %v1746
    %v1748 = vrot.slane %v1741, 1
    %v1749 = vsel %vm455, %v1746, %v1748
    %v1752 = vadd.f32 %v1625, %v1747
    %v1753 = vadd.f32 %v1626, %v1749
    %s1754 = sld [smem:[#allocation4 + $0xc0]]
    %v1755 = vstv %s1754
    %v1756 = vmul.f32 %v1394, %v1755
    %v1757 = vmul.f32 %v1395, %v1755
    %v1758 = vmul.f32 %v1396, %v1755
    %v1762 = vrot.slane %v1756, 1
    %v1763 = vrot.slane %v1757, 1
    %v1764 = vsel %vm455, %v1762, %v1763
    %v1765 = vrot.slane %v1758, 1
    %v1766 = vsel %vm455, %v1763, %v1765
    %v1769 = vadd.f32 %v1639, %v1764
    %v1770 = vadd.f32 %v1640, %v1766
    %s1771 = sld [smem:[#allocation4 + $0xe4]]
    %v1772 = vstv %s1771
    %v1773 = vmul.f32 %v1394, %v1772
    %v1774 = vmul.f32 %v1395, %v1772
    %v1775 = vmul.f32 %v1396, %v1772
    %v1779 = vrot.slane %v1773, 1
    %v1780 = vrot.slane %v1774, 1
    %v1781 = vsel %vm455, %v1779, %v1780
    %v1782 = vrot.slane %v1775, 1
    %v1783 = vsel %vm455, %v1780, %v1782
    %v1786 = vadd.f32 %v1653, %v1781
    %v1787 = vadd.f32 %v1654, %v1783
    %s1788 = sld [smem:[#allocation4 + $0x108]]
    %v1789 = vstv %s1788
    %v1790 = vmul.f32 %v1394, %v1789
    %v1791 = vmul.f32 %v1395, %v1789
    %v1792 = vmul.f32 %v1396, %v1789
    %v1796 = vrot.slane %v1790, 1
    %v1797 = vrot.slane %v1791, 1
    %v1798 = vsel %vm455, %v1796, %v1797
    %v1799 = vrot.slane %v1792, 1
    %v1800 = vsel %vm455, %v1797, %v1799
    %v1803 = vadd.f32 %v1667, %v1798
    %v1804 = vadd.f32 %v1668, %v1800
    %s1805 = sld [smem:[#allocation4 + $0xd]]
    %v1806 = vstv %s1805
    %v1807 = vmul.f32 %v1394, %v1806
    %v1808 = vmul.f32 %v1395, %v1806
    %v1809 = vmul.f32 %v1396, %v1806
    %v1813 = vrot.slane %v1807, 1
    %v1814 = vrot.slane %v1808, 1
    %v1815 = vsel %vm455, %v1813, %v1814
    %v1816 = vrot.slane %v1809, 1
    %v1817 = vsel %vm455, %v1814, %v1816
    %1818 = vrot.lane.b32.xlu0 %v1815, 127
    %v1819 = vpop.permute.xlu0 %1818
    %1820 = vrot.lane.b32.xlu0 %v1817, 127
    %v1821 = vpop.permute.xlu0 %1820
    %v1824 = vadd.f32 %v1684, %v1819
    %v1825 = vadd.f32 %v1685, %v1821
    %s1826 = sld [smem:[#allocation4 + $0x31]]
    %v1827 = vstv %s1826
    %v1828 = vmul.f32 %v1394, %v1827
    %v1829 = vmul.f32 %v1395, %v1827
    %v1830 = vmul.f32 %v1396, %v1827
    %v1834 = vrot.slane %v1828, 1
    %v1835 = vrot.slane %v1829, 1
    %v1836 = vsel %vm455, %v1834, %v1835
    %v1837 = vrot.slane %v1830, 1
    %v1838 = vsel %vm455, %v1835, %v1837
    %1839 = vrot.lane.b32.xlu0 %v1836, 127
    %v1840 = vpop.permute.xlu0 %1839
    %1841 = vrot.lane.b32.xlu0 %v1838, 127
    %v1842 = vpop.permute.xlu0 %1841
    %v1845 = vadd.f32 %v1701, %v1840
    %v1846 = vadd.f32 %v1702, %v1842
    %s1847 = sld [smem:[#allocation4 + $0x55]]
    %v1848 = vstv %s1847
    %v1849 = vmul.f32 %v1394, %v1848
    %v1850 = vmul.f32 %v1395, %v1848
    %v1851 = vmul.f32 %v1396, %v1848
    %v1855 = vrot.slane %v1849, 1
    %v1856 = vrot.slane %v1850, 1
    %v1857 = vsel %vm455, %v1855, %v1856
    %v1858 = vrot.slane %v1851, 1
    %v1859 = vsel %vm455, %v1856, %v1858
    %1860 = vrot.lane.b32.xlu0 %v1857, 127
    %v1861 = vpop.permute.xlu0 %1860
    %1862 = vrot.lane.b32.xlu0 %v1859, 127
    %v1863 = vpop.permute.xlu0 %1862
    %v1866 = vadd.f32 %v1718, %v1861
    %v1867 = vadd.f32 %v1719, %v1863
    %s1868 = sld [smem:[#allocation4 + $0x79]]
    %v1869 = vstv %s1868
    %v1870 = vmul.f32 %v1394, %v1869
    %v1871 = vmul.f32 %v1395, %v1869
    %v1872 = vmul.f32 %v1396, %v1869
    %v1876 = vrot.slane %v1870, 1
    %v1877 = vrot.slane %v1871, 1
    %v1878 = vsel %vm455, %v1876, %v1877
    %v1879 = vrot.slane %v1872, 1
    %v1880 = vsel %vm455, %v1877, %v1879
    %1881 = vrot.lane.b32.xlu0 %v1878, 127
    %v1882 = vpop.permute.xlu0 %1881
    %1883 = vrot.lane.b32.xlu0 %v1880, 127
    %v1884 = vpop.permute.xlu0 %1883
    %v1887 = vadd.f32 %v1735, %v1882
    %v1888 = vadd.f32 %v1736, %v1884
    %s1889 = sld [smem:[#allocation4 + $0x9d]]
    %v1890 = vstv %s1889
    %v1891 = vmul.f32 %v1394, %v1890
    %v1892 = vmul.f32 %v1395, %v1890
    %v1893 = vmul.f32 %v1396, %v1890
    %v1897 = vrot.slane %v1891, 1
    %v1898 = vrot.slane %v1892, 1
    %v1899 = vsel %vm455, %v1897, %v1898
    %v1900 = vrot.slane %v1893, 1
    %v1901 = vsel %vm455, %v1898, %v1900
    %1902 = vrot.lane.b32.xlu0 %v1899, 127
    %v1903 = vpop.permute.xlu0 %1902
    %1904 = vrot.lane.b32.xlu0 %v1901, 127
    %v1905 = vpop.permute.xlu0 %1904
    %v1908 = vadd.f32 %v1752, %v1903
    %v1909 = vadd.f32 %v1753, %v1905
    %s1910 = sld [smem:[#allocation4 + $0xc1]]
    %v1911 = vstv %s1910
    %v1912 = vmul.f32 %v1394, %v1911
    %v1913 = vmul.f32 %v1395, %v1911
    %v1914 = vmul.f32 %v1396, %v1911
    %v1918 = vrot.slane %v1912, 1
    %v1919 = vrot.slane %v1913, 1
    %v1920 = vsel %vm455, %v1918, %v1919
    %v1921 = vrot.slane %v1914, 1
    %v1922 = vsel %vm455, %v1919, %v1921
    %1923 = vrot.lane.b32.xlu0 %v1920, 127
    %v1924 = vpop.permute.xlu0 %1923
    %1925 = vrot.lane.b32.xlu0 %v1922, 127
    %v1926 = vpop.permute.xlu0 %1925
    %v1929 = vadd.f32 %v1769, %v1924
    %v1930 = vadd.f32 %v1770, %v1926
    %s1931 = sld [smem:[#allocation4 + $0xe5]]
    %v1932 = vstv %s1931
    %v1933 = vmul.f32 %v1394, %v1932
    %v1934 = vmul.f32 %v1395, %v1932
    %v1935 = vmul.f32 %v1396, %v1932
    %v1939 = vrot.slane %v1933, 1
    %v1940 = vrot.slane %v1934, 1
    %v1941 = vsel %vm455, %v1939, %v1940
    %v1942 = vrot.slane %v1935, 1
    %v1943 = vsel %vm455, %v1940, %v1942
    %1944 = vrot.lane.b32.xlu0 %v1941, 127
    %v1945 = vpop.permute.xlu0 %1944
    %1946 = vrot.lane.b32.xlu0 %v1943, 127
    %v1947 = vpop.permute.xlu0 %1946
    %v1950 = vadd.f32 %v1786, %v1945
    %v1951 = vadd.f32 %v1787, %v1947
    %s1952 = sld [smem:[#allocation4 + $0x109]]
    %v1953 = vstv %s1952
    %v1954 = vmul.f32 %v1394, %v1953
    %v1955 = vmul.f32 %v1395, %v1953
    %v1956 = vmul.f32 %v1396, %v1953
    %v1960 = vrot.slane %v1954, 1
    %v1961 = vrot.slane %v1955, 1
    %v1962 = vsel %vm455, %v1960, %v1961
    %v1963 = vrot.slane %v1956, 1
    %v1964 = vsel %vm455, %v1961, %v1963
    %1965 = vrot.lane.b32.xlu0 %v1962, 127
    %v1966 = vpop.permute.xlu0 %1965
    %1967 = vrot.lane.b32.xlu0 %v1964, 127
    %v1968 = vpop.permute.xlu0 %1967
    %v1971 = vadd.f32 %v1803, %v1966
    %v1972 = vadd.f32 %v1804, %v1968
    %s1973 = sld [smem:[#allocation4 + $0xe]]
    %v1974 = vstv %s1973
    %v1975 = vmul.f32 %v1394, %v1974
    %v1976 = vmul.f32 %v1395, %v1974
    %v1977 = vmul.f32 %v1396, %v1974
    %v1981 = vrot.slane %v1975, 1
    %v1982 = vrot.slane %v1976, 1
    %v1983 = vsel %vm455, %v1981, %v1982
    %v1984 = vrot.slane %v1977, 1
    %v1985 = vsel %vm455, %v1982, %v1984
    %1986 = vrot.lane.b32.xlu0 %v1983, 126
    %v1987 = vpop.permute.xlu0 %1986
    %1988 = vrot.lane.b32.xlu0 %v1985, 126
    %v1989 = vpop.permute.xlu0 %1988
    %v1992 = vadd.f32 %v1824, %v1987
    %v1993 = vadd.f32 %v1825, %v1989
    %s1994 = sld [smem:[#allocation4 + $0x32]]
    %v1995 = vstv %s1994
    %v1996 = vmul.f32 %v1394, %v1995
    %v1997 = vmul.f32 %v1395, %v1995
    %v1998 = vmul.f32 %v1396, %v1995
    %v2002 = vrot.slane %v1996, 1
    %v2003 = vrot.slane %v1997, 1
    %v2004 = vsel %vm455, %v2002, %v2003
    %v2005 = vrot.slane %v1998, 1
    %v2006 = vsel %vm455, %v2003, %v2005
    %2007 = vrot.lane.b32.xlu0 %v2004, 126
    %v2008 = vpop.permute.xlu0 %2007
    %2009 = vrot.lane.b32.xlu0 %v2006, 126
    %v2010 = vpop.permute.xlu0 %2009
    %v2013 = vadd.f32 %v1845, %v2008
    %v2014 = vadd.f32 %v1846, %v2010
    %s2015 = sld [smem:[#allocation4 + $0x56]]
    %v2016 = vstv %s2015
    %v2017 = vmul.f32 %v1394, %v2016
    %v2018 = vmul.f32 %v1395, %v2016
    %v2019 = vmul.f32 %v1396, %v2016
    %v2023 = vrot.slane %v2017, 1
    %v2024 = vrot.slane %v2018, 1
    %v2025 = vsel %vm455, %v2023, %v2024
    %v2026 = vrot.slane %v2019, 1
    %v2027 = vsel %vm455, %v2024, %v2026
    %2028 = vrot.lane.b32.xlu0 %v2025, 126
    %v2029 = vpop.permute.xlu0 %2028
    %2030 = vrot.lane.b32.xlu0 %v2027, 126
    %v2031 = vpop.permute.xlu0 %2030
    %v2034 = vadd.f32 %v1866, %v2029
    %v2035 = vadd.f32 %v1867, %v2031
    %s2036 = sld [smem:[#allocation4 + $0x7a]]
    %v2037 = vstv %s2036
    %v2038 = vmul.f32 %v1394, %v2037
    %v2039 = vmul.f32 %v1395, %v2037
    %v2040 = vmul.f32 %v1396, %v2037
    %v2044 = vrot.slane %v2038, 1
    %v2045 = vrot.slane %v2039, 1
    %v2046 = vsel %vm455, %v2044, %v2045
    %v2047 = vrot.slane %v2040, 1
    %v2048 = vsel %vm455, %v2045, %v2047
    %2049 = vrot.lane.b32.xlu0 %v2046, 126
    %v2050 = vpop.permute.xlu0 %2049
    %2051 = vrot.lane.b32.xlu0 %v2048, 126
    %v2052 = vpop.permute.xlu0 %2051
    %v2055 = vadd.f32 %v1887, %v2050
    %v2056 = vadd.f32 %v1888, %v2052
    %s2057 = sld [smem:[#allocation4 + $0x9e]]
    %v2058 = vstv %s2057
    %v2059 = vmul.f32 %v1394, %v2058
    %v2060 = vmul.f32 %v1395, %v2058
    %v2061 = vmul.f32 %v1396, %v2058
    %v2065 = vrot.slane %v2059, 1
    %v2066 = vrot.slane %v2060, 1
    %v2067 = vsel %vm455, %v2065, %v2066
    %v2068 = vrot.slane %v2061, 1
    %v2069 = vsel %vm455, %v2066, %v2068
    %2070 = vrot.lane.b32.xlu0 %v2067, 126
    %v2071 = vpop.permute.xlu0 %2070
    %2072 = vrot.lane.b32.xlu0 %v2069, 126
    %v2073 = vpop.permute.xlu0 %2072
    %v2076 = vadd.f32 %v1908, %v2071
    %v2077 = vadd.f32 %v1909, %v2073
    %s2078 = sld [smem:[#allocation4 + $0xc2]]
    %v2079 = vstv %s2078
    %v2080 = vmul.f32 %v1394, %v2079
    %v2081 = vmul.f32 %v1395, %v2079
    %v2082 = vmul.f32 %v1396, %v2079
    %v2086 = vrot.slane %v2080, 1
    %v2087 = vrot.slane %v2081, 1
    %v2088 = vsel %vm455, %v2086, %v2087
    %v2089 = vrot.slane %v2082, 1
    %v2090 = vsel %vm455, %v2087, %v2089
    %2091 = vrot.lane.b32.xlu0 %v2088, 126
    %v2092 = vpop.permute.xlu0 %2091
    %2093 = vrot.lane.b32.xlu0 %v2090, 126
    %v2094 = vpop.permute.xlu0 %2093
    %v2097 = vadd.f32 %v1929, %v2092
    %v2098 = vadd.f32 %v1930, %v2094
    %s2099 = sld [smem:[#allocation4 + $0xe6]]
    %v2100 = vstv %s2099
    %v2101 = vmul.f32 %v1394, %v2100
    %v2102 = vmul.f32 %v1395, %v2100
    %v2103 = vmul.f32 %v1396, %v2100
    %v2107 = vrot.slane %v2101, 1
    %v2108 = vrot.slane %v2102, 1
    %v2109 = vsel %vm455, %v2107, %v2108
    %v2110 = vrot.slane %v2103, 1
    %v2111 = vsel %vm455, %v2108, %v2110
    %2112 = vrot.lane.b32.xlu0 %v2109, 126
    %v2113 = vpop.permute.xlu0 %2112
    %2114 = vrot.lane.b32.xlu0 %v2111, 126
    %v2115 = vpop.permute.xlu0 %2114
    %v2118 = vadd.f32 %v1950, %v2113
    %v2119 = vadd.f32 %v1951, %v2115
    %s2120 = sld [smem:[#allocation4 + $0x10a]]
    %v2121 = vstv %s2120
    %v2122 = vmul.f32 %v1394, %v2121
    %v2123 = vmul.f32 %v1395, %v2121
    %v2124 = vmul.f32 %v1396, %v2121
    %v2128 = vrot.slane %v2122, 1
    %v2129 = vrot.slane %v2123, 1
    %v2130 = vsel %vm455, %v2128, %v2129
    %v2131 = vrot.slane %v2124, 1
    %v2132 = vsel %vm455, %v2129, %v2131
    %2133 = vrot.lane.b32.xlu0 %v2130, 126
    %v2134 = vpop.permute.xlu0 %2133
    %2135 = vrot.lane.b32.xlu0 %v2132, 126
    %v2136 = vpop.permute.xlu0 %2135
    %v2139 = vadd.f32 %v1971, %v2134
    %v2140 = vadd.f32 %v1972, %v2136
    %s2141 = sld [smem:[#allocation4 + $0xf]]
    %v2142 = vstv %s2141
    %v2143 = vmul.f32 %v1394, %v2142
    %v2144 = vmul.f32 %v1395, %v2142
    %v2145 = vmul.f32 %v1396, %v2142
    %v2149 = vrot.slane %v2143, 2
    %v2150 = vrot.slane %v2144, 2
    %v2151 = vsel %vm928, %v2149, %v2150
    %v2152 = vrot.slane %v2145, 2
    %v2153 = vsel %vm928, %v2150, %v2152
    %v2156 = vadd.f32 %v1992, %v2151
    %v2157 = vadd.f32 %v1993, %v2153
    %s2158 = sld [smem:[#allocation4 + $0x33]]
    %v2159 = vstv %s2158
    %v2160 = vmul.f32 %v1394, %v2159
    %v2161 = vmul.f32 %v1395, %v2159
    %v2162 = vmul.f32 %v1396, %v2159
    %v2166 = vrot.slane %v2160, 2
    %v2167 = vrot.slane %v2161, 2
    %v2168 = vsel %vm928, %v2166, %v2167
    %v2169 = vrot.slane %v2162, 2
    %v2170 = vsel %vm928, %v2167, %v2169
    %v2173 = vadd.f32 %v2013, %v2168
    %v2174 = vadd.f32 %v2014, %v2170
    %s2175 = sld [smem:[#allocation4 + $0x57]]
    %v2176 = vstv %s2175
    %v2177 = vmul.f32 %v1394, %v2176
    %v2178 = vmul.f32 %v1395, %v2176
    %v2179 = vmul.f32 %v1396, %v2176
    %v2183 = vrot.slane %v2177, 2
    %v2184 = vrot.slane %v2178, 2
    %v2185 = vsel %vm928, %v2183, %v2184
    %v2186 = vrot.slane %v2179, 2
    %v2187 = vsel %vm928, %v2184, %v2186
    %v2190 = vadd.f32 %v2034, %v2185
    %v2191 = vadd.f32 %v2035, %v2187
    %s2192 = sld [smem:[#allocation4 + $0x7b]]
    %v2193 = vstv %s2192
    %v2194 = vmul.f32 %v1394, %v2193
    %v2195 = vmul.f32 %v1395, %v2193
    %v2196 = vmul.f32 %v1396, %v2193
    %v2200 = vrot.slane %v2194, 2
    %v2201 = vrot.slane %v2195, 2
    %v2202 = vsel %vm928, %v2200, %v2201
    %v2203 = vrot.slane %v2196, 2
    %v2204 = vsel %vm928, %v2201, %v2203
    %v2207 = vadd.f32 %v2055, %v2202
    %v2208 = vadd.f32 %v2056, %v2204
    %s2209 = sld [smem:[#allocation4 + $0x9f]]
    %v2210 = vstv %s2209
    %v2211 = vmul.f32 %v1394, %v2210
    %v2212 = vmul.f32 %v1395, %v2210
    %v2213 = vmul.f32 %v1396, %v2210
    %v2217 = vrot.slane %v2211, 2
    %v2218 = vrot.slane %v2212, 2
    %v2219 = vsel %vm928, %v2217, %v2218
    %v2220 = vrot.slane %v2213, 2
    %v2221 = vsel %vm928, %v2218, %v2220
    %v2224 = vadd.f32 %v2076, %v2219
    %v2225 = vadd.f32 %v2077, %v2221
    %s2226 = sld [smem:[#allocation4 + $0xc3]]
    %v2227 = vstv %s2226
    %v2228 = vmul.f32 %v1394, %v2227
    %v2229 = vmul.f32 %v1395, %v2227
    %v2230 = vmul.f32 %v1396, %v2227
    %v2234 = vrot.slane %v2228, 2
    %v2235 = vrot.slane %v2229, 2
    %v2236 = vsel %vm928, %v2234, %v2235
    %v2237 = vrot.slane %v2230, 2
    %v2238 = vsel %vm928, %v2235, %v2237
    %v2241 = vadd.f32 %v2097, %v2236
    %v2242 = vadd.f32 %v2098, %v2238
    %s2243 = sld [smem:[#allocation4 + $0xe7]]
    %v2244 = vstv %s2243
    %v2245 = vmul.f32 %v1394, %v2244
    %v2246 = vmul.f32 %v1395, %v2244
    %v2247 = vmul.f32 %v1396, %v2244
    %v2251 = vrot.slane %v2245, 2
    %v2252 = vrot.slane %v2246, 2
    %v2253 = vsel %vm928, %v2251, %v2252
    %v2254 = vrot.slane %v2247, 2
    %v2255 = vsel %vm928, %v2252, %v2254
    %v2258 = vadd.f32 %v2118, %v2253
    %v2259 = vadd.f32 %v2119, %v2255
    %s2260 = sld [smem:[#allocation4 + $0x10b]]
    %v2261 = vstv %s2260
    %v2262 = vmul.f32 %v1394, %v2261
    %v2263 = vmul.f32 %v1395, %v2261
    %v2264 = vmul.f32 %v1396, %v2261
    %v2268 = vrot.slane %v2262, 2
    %v2269 = vrot.slane %v2263, 2
    %v2270 = vsel %vm928, %v2268, %v2269
    %v2271 = vrot.slane %v2264, 2
    %v2272 = vsel %vm928, %v2269, %v2271
    %v2275 = vadd.f32 %v2139, %v2270
    %v2276 = vadd.f32 %v2140, %v2272
    %s2277 = sld [smem:[#allocation4 + $0x10]]
    %v2278 = vstv %s2277
    %v2279 = vmul.f32 %v1394, %v2278
    %v2280 = vmul.f32 %v1395, %v2278
    %v2281 = vmul.f32 %v1396, %v2278
    %v2285 = vrot.slane %v2279, 2
    %v2286 = vrot.slane %v2280, 2
    %v2287 = vsel %vm928, %v2285, %v2286
    %v2288 = vrot.slane %v2281, 2
    %v2289 = vsel %vm928, %v2286, %v2288
    %2290 = vrot.lane.b32.xlu0 %v2287, 127
    %v2291 = vpop.permute.xlu0 %2290
    %2292 = vrot.lane.b32.xlu0 %v2289, 127
    %v2293 = vpop.permute.xlu0 %2292
    %v2296 = vadd.f32 %v2156, %v2291
    %v2297 = vadd.f32 %v2157, %v2293
    %s2298 = sld [smem:[#allocation4 + $0x34]]
    %v2299 = vstv %s2298
    %v2300 = vmul.f32 %v1394, %v2299
    %v2301 = vmul.f32 %v1395, %v2299
    %v2302 = vmul.f32 %v1396, %v2299
    %v2306 = vrot.slane %v2300, 2
    %v2307 = vrot.slane %v2301, 2
    %v2308 = vsel %vm928, %v2306, %v2307
    %v2309 = vrot.slane %v2302, 2
    %v2310 = vsel %vm928, %v2307, %v2309
    %2311 = vrot.lane.b32.xlu0 %v2308, 127
    %v2312 = vpop.permute.xlu0 %2311
    %2313 = vrot.lane.b32.xlu0 %v2310, 127
    %v2314 = vpop.permute.xlu0 %2313
    %v2317 = vadd.f32 %v2173, %v2312
    %v2318 = vadd.f32 %v2174, %v2314
    %s2319 = sld [smem:[#allocation4 + $0x58]]
    %v2320 = vstv %s2319
    %v2321 = vmul.f32 %v1394, %v2320
    %v2322 = vmul.f32 %v1395, %v2320
    %v2323 = vmul.f32 %v1396, %v2320
    %v2327 = vrot.slane %v2321, 2
    %v2328 = vrot.slane %v2322, 2
    %v2329 = vsel %vm928, %v2327, %v2328
    %v2330 = vrot.slane %v2323, 2
    %v2331 = vsel %vm928, %v2328, %v2330
    %2332 = vrot.lane.b32.xlu0 %v2329, 127
    %v2333 = vpop.permute.xlu0 %2332
    %2334 = vrot.lane.b32.xlu0 %v2331, 127
    %v2335 = vpop.permute.xlu0 %2334
    %v2338 = vadd.f32 %v2190, %v2333
    %v2339 = vadd.f32 %v2191, %v2335
    %s2340 = sld [smem:[#allocation4 + $0x7c]]
    %v2341 = vstv %s2340
    %v2342 = vmul.f32 %v1394, %v2341
    %v2343 = vmul.f32 %v1395, %v2341
    %v2344 = vmul.f32 %v1396, %v2341
    %v2348 = vrot.slane %v2342, 2
    %v2349 = vrot.slane %v2343, 2
    %v2350 = vsel %vm928, %v2348, %v2349
    %v2351 = vrot.slane %v2344, 2
    %v2352 = vsel %vm928, %v2349, %v2351
    %2353 = vrot.lane.b32.xlu0 %v2350, 127
    %v2354 = vpop.permute.xlu0 %2353
    %2355 = vrot.lane.b32.xlu0 %v2352, 127
    %v2356 = vpop.permute.xlu0 %2355
    %v2359 = vadd.f32 %v2207, %v2354
    %v2360 = vadd.f32 %v2208, %v2356
    %s2361 = sld [smem:[#allocation4 + $0xa0]]
    %v2362 = vstv %s2361
    %v2363 = vmul.f32 %v1394, %v2362
    %v2364 = vmul.f32 %v1395, %v2362
    %v2365 = vmul.f32 %v1396, %v2362
    %v2369 = vrot.slane %v2363, 2
    %v2370 = vrot.slane %v2364, 2
    %v2371 = vsel %vm928, %v2369, %v2370
    %v2372 = vrot.slane %v2365, 2
    %v2373 = vsel %vm928, %v2370, %v2372
    %2374 = vrot.lane.b32.xlu0 %v2371, 127
    %v2375 = vpop.permute.xlu0 %2374
    %2376 = vrot.lane.b32.xlu0 %v2373, 127
    %v2377 = vpop.permute.xlu0 %2376
    %v2380 = vadd.f32 %v2224, %v2375
    %v2381 = vadd.f32 %v2225, %v2377
    %s2382 = sld [smem:[#allocation4 + $0xc4]]
    %v2383 = vstv %s2382
    %v2384 = vmul.f32 %v1394, %v2383
    %v2385 = vmul.f32 %v1395, %v2383
    %v2386 = vmul.f32 %v1396, %v2383
    %v2390 = vrot.slane %v2384, 2
    %v2391 = vrot.slane %v2385, 2
    %v2392 = vsel %vm928, %v2390, %v2391
    %v2393 = vrot.slane %v2386, 2
    %v2394 = vsel %vm928, %v2391, %v2393
    %2395 = vrot.lane.b32.xlu0 %v2392, 127
    %v2396 = vpop.permute.xlu0 %2395
    %2397 = vrot.lane.b32.xlu0 %v2394, 127
    %v2398 = vpop.permute.xlu0 %2397
    %v2401 = vadd.f32 %v2241, %v2396
    %v2402 = vadd.f32 %v2242, %v2398
    %s2403 = sld [smem:[#allocation4 + $0xe8]]
    %v2404 = vstv %s2403
    %v2405 = vmul.f32 %v1394, %v2404
    %v2406 = vmul.f32 %v1395, %v2404
    %v2407 = vmul.f32 %v1396, %v2404
    %v2411 = vrot.slane %v2405, 2
    %v2412 = vrot.slane %v2406, 2
    %v2413 = vsel %vm928, %v2411, %v2412
    %v2414 = vrot.slane %v2407, 2
    %v2415 = vsel %vm928, %v2412, %v2414
    %2416 = vrot.lane.b32.xlu0 %v2413, 127
    %v2417 = vpop.permute.xlu0 %2416
    %2418 = vrot.lane.b32.xlu0 %v2415, 127
    %v2419 = vpop.permute.xlu0 %2418
    %v2422 = vadd.f32 %v2258, %v2417
    %v2423 = vadd.f32 %v2259, %v2419
    %s2424 = sld [smem:[#allocation4 + $0x10c]]
    %v2425 = vstv %s2424
    %v2426 = vmul.f32 %v1394, %v2425
    %v2427 = vmul.f32 %v1395, %v2425
    %v2428 = vmul.f32 %v1396, %v2425
    %v2432 = vrot.slane %v2426, 2
    %v2433 = vrot.slane %v2427, 2
    %v2434 = vsel %vm928, %v2432, %v2433
    %v2435 = vrot.slane %v2428, 2
    %v2436 = vsel %vm928, %v2433, %v2435
    %2437 = vrot.lane.b32.xlu0 %v2434, 127
    %v2438 = vpop.permute.xlu0 %2437
    %2439 = vrot.lane.b32.xlu0 %v2436, 127
    %v2440 = vpop.permute.xlu0 %2439
    %v2443 = vadd.f32 %v2275, %v2438
    %v2444 = vadd.f32 %v2276, %v2440
    %s2445 = sld [smem:[#allocation4 + $0x11]]
    %v2446 = vstv %s2445
    %v2447 = vmul.f32 %v1394, %v2446
    %v2448 = vmul.f32 %v1395, %v2446
    %v2449 = vmul.f32 %v1396, %v2446
    %v2453 = vrot.slane %v2447, 2
    %v2454 = vrot.slane %v2448, 2
    %v2455 = vsel %vm928, %v2453, %v2454
    %v2456 = vrot.slane %v2449, 2
    %v2457 = vsel %vm928, %v2454, %v2456
    %2458 = vrot.lane.b32.xlu0 %v2455, 126
    %v2459 = vpop.permute.xlu0 %2458
    %2460 = vrot.lane.b32.xlu0 %v2457, 126
    %v2461 = vpop.permute.xlu0 %2460
    %v2464 = vadd.f32 %v2296, %v2459
    %v2465 = vadd.f32 %v2297, %v2461
    %s2466 = sld [smem:[#allocation4 + $0x35]]
    %v2467 = vstv %s2466
    %v2468 = vmul.f32 %v1394, %v2467
    %v2469 = vmul.f32 %v1395, %v2467
    %v2470 = vmul.f32 %v1396, %v2467
    %v2474 = vrot.slane %v2468, 2
    %v2475 = vrot.slane %v2469, 2
    %v2476 = vsel %vm928, %v2474, %v2475
    %v2477 = vrot.slane %v2470, 2
    %v2478 = vsel %vm928, %v2475, %v2477
    %2479 = vrot.lane.b32.xlu0 %v2476, 126
    %v2480 = vpop.permute.xlu0 %2479
    %2481 = vrot.lane.b32.xlu0 %v2478, 126
    %v2482 = vpop.permute.xlu0 %2481
    %v2485 = vadd.f32 %v2317, %v2480
    %v2486 = vadd.f32 %v2318, %v2482
    %s2487 = sld [smem:[#allocation4 + $0x59]]
    %v2488 = vstv %s2487
    %v2489 = vmul.f32 %v1394, %v2488
    %v2490 = vmul.f32 %v1395, %v2488
    %v2491 = vmul.f32 %v1396, %v2488
    %v2495 = vrot.slane %v2489, 2
    %v2496 = vrot.slane %v2490, 2
    %v2497 = vsel %vm928, %v2495, %v2496
    %v2498 = vrot.slane %v2491, 2
    %v2499 = vsel %vm928, %v2496, %v2498
    %2500 = vrot.lane.b32.xlu0 %v2497, 126
    %v2501 = vpop.permute.xlu0 %2500
    %2502 = vrot.lane.b32.xlu0 %v2499, 126
    %v2503 = vpop.permute.xlu0 %2502
    %v2506 = vadd.f32 %v2338, %v2501
    %v2507 = vadd.f32 %v2339, %v2503
    %s2508 = sld [smem:[#allocation4 + $0x7d]]
    %v2509 = vstv %s2508
    %v2510 = vmul.f32 %v1394, %v2509
    %v2511 = vmul.f32 %v1395, %v2509
    %v2512 = vmul.f32 %v1396, %v2509
    %v2516 = vrot.slane %v2510, 2
    %v2517 = vrot.slane %v2511, 2
    %v2518 = vsel %vm928, %v2516, %v2517
    %v2519 = vrot.slane %v2512, 2
    %v2520 = vsel %vm928, %v2517, %v2519
    %2521 = vrot.lane.b32.xlu0 %v2518, 126
    %v2522 = vpop.permute.xlu0 %2521
    %2523 = vrot.lane.b32.xlu0 %v2520, 126
    %v2524 = vpop.permute.xlu0 %2523
    %v2527 = vadd.f32 %v2359, %v2522
    %v2528 = vadd.f32 %v2360, %v2524
    %s2529 = sld [smem:[#allocation4 + $0xa1]]
    %v2530 = vstv %s2529
    %v2531 = vmul.f32 %v1394, %v2530
    %v2532 = vmul.f32 %v1395, %v2530
    %v2533 = vmul.f32 %v1396, %v2530
    %v2537 = vrot.slane %v2531, 2
    %v2538 = vrot.slane %v2532, 2
    %v2539 = vsel %vm928, %v2537, %v2538
    %v2540 = vrot.slane %v2533, 2
    %v2541 = vsel %vm928, %v2538, %v2540
    %2542 = vrot.lane.b32.xlu0 %v2539, 126
    %v2543 = vpop.permute.xlu0 %2542
    %2544 = vrot.lane.b32.xlu0 %v2541, 126
    %v2545 = vpop.permute.xlu0 %2544
    %v2548 = vadd.f32 %v2380, %v2543
    %v2549 = vadd.f32 %v2381, %v2545
    %s2550 = sld [smem:[#allocation4 + $0xc5]]
    %v2551 = vstv %s2550
    %v2552 = vmul.f32 %v1394, %v2551
    %v2553 = vmul.f32 %v1395, %v2551
    %v2554 = vmul.f32 %v1396, %v2551
    %v2558 = vrot.slane %v2552, 2
    %v2559 = vrot.slane %v2553, 2
    %v2560 = vsel %vm928, %v2558, %v2559
    %v2561 = vrot.slane %v2554, 2
    %v2562 = vsel %vm928, %v2559, %v2561
    %2563 = vrot.lane.b32.xlu0 %v2560, 126
    %v2564 = vpop.permute.xlu0 %2563
    %2565 = vrot.lane.b32.xlu0 %v2562, 126
    %v2566 = vpop.permute.xlu0 %2565
    %v2569 = vadd.f32 %v2401, %v2564
    %v2570 = vadd.f32 %v2402, %v2566
    %s2571 = sld [smem:[#allocation4 + $0xe9]]
    %v2572 = vstv %s2571
    %v2573 = vmul.f32 %v1394, %v2572
    %v2574 = vmul.f32 %v1395, %v2572
    %v2575 = vmul.f32 %v1396, %v2572
    %v2579 = vrot.slane %v2573, 2
    %v2580 = vrot.slane %v2574, 2
    %v2581 = vsel %vm928, %v2579, %v2580
    %v2582 = vrot.slane %v2575, 2
    %v2583 = vsel %vm928, %v2580, %v2582
    %2584 = vrot.lane.b32.xlu0 %v2581, 126
    %v2585 = vpop.permute.xlu0 %2584
    %2586 = vrot.lane.b32.xlu0 %v2583, 126
    %v2587 = vpop.permute.xlu0 %2586
    %v2590 = vadd.f32 %v2422, %v2585
    %v2591 = vadd.f32 %v2423, %v2587
    %s2592 = sld [smem:[#allocation4 + $0x10d]]
    %v2593 = vstv %s2592
    %v2594 = vmul.f32 %v1394, %v2593
    %v2595 = vmul.f32 %v1395, %v2593
    %v2596 = vmul.f32 %v1396, %v2593
    %v2600 = vrot.slane %v2594, 2
    %v2601 = vrot.slane %v2595, 2
    %v2602 = vsel %vm928, %v2600, %v2601
    %v2603 = vrot.slane %v2596, 2
    %v2604 = vsel %vm928, %v2601, %v2603
    %2605 = vrot.lane.b32.xlu0 %v2602, 126
    %v2606 = vpop.permute.xlu0 %2605
    %2607 = vrot.lane.b32.xlu0 %v2604, 126
    %v2608 = vpop.permute.xlu0 %2607
    %v2611 = vadd.f32 %v2443, %v2606
    %v2612 = vadd.f32 %v2444, %v2608
    %s2613 = scalar_lea.vmem [#allocation2], 48
    %v2614 = vld [vmem:[%s2613] sm:$0xff]
    %v2615 = vld [vmem:[%s2613 + $0x8] sm:$0xff]
    %v2616 = vld [vmem:[%s2613 + $0x10] sm:$0x3]
    %s2617 = sld [smem:[#allocation4 + $0x12]]
    %v2618 = vstv %s2617
    %v2619 = vmul.f32 %v2614, %v2618
    %v2620 = vmul.f32 %v2615, %v2618
    %v2621 = vadd.f32 %v2464, %v2619
    %v2622 = vadd.f32 %v2465, %v2620
    %s2623 = sld [smem:[#allocation4 + $0x36]]
    %v2624 = vstv %s2623
    %v2625 = vmul.f32 %v2614, %v2624
    %v2626 = vmul.f32 %v2615, %v2624
    %v2627 = vadd.f32 %v2485, %v2625
    %v2628 = vadd.f32 %v2486, %v2626
    %s2629 = sld [smem:[#allocation4 + $0x5a]]
    %v2630 = vstv %s2629
    %v2631 = vmul.f32 %v2614, %v2630
    %v2632 = vmul.f32 %v2615, %v2630
    %v2633 = vadd.f32 %v2506, %v2631
    %v2634 = vadd.f32 %v2507, %v2632
    %s2635 = sld [smem:[#allocation4 + $0x7e]]
    %v2636 = vstv %s2635
    %v2637 = vmul.f32 %v2614, %v2636
    %v2638 = vmul.f32 %v2615, %v2636
    %v2639 = vadd.f32 %v2527, %v2637
    %v2640 = vadd.f32 %v2528, %v2638
    %s2641 = sld [smem:[#allocation4 + $0xa2]]
    %v2642 = vstv %s2641
    %v2643 = vmul.f32 %v2614, %v2642
    %v2644 = vmul.f32 %v2615, %v2642
    %v2645 = vadd.f32 %v2548, %v2643
    %v2646 = vadd.f32 %v2549, %v2644
    %s2647 = sld [smem:[#allocation4 + $0xc6]]
    %v2648 = vstv %s2647
    %v2649 = vmul.f32 %v2614, %v2648
    %v2650 = vmul.f32 %v2615, %v2648
    %v2651 = vadd.f32 %v2569, %v2649
    %v2652 = vadd.f32 %v2570, %v2650
    %s2653 = sld [smem:[#allocation4 + $0xea]]
    %v2654 = vstv %s2653
    %v2655 = vmul.f32 %v2614, %v2654
    %v2656 = vmul.f32 %v2615, %v2654
    %v2657 = vadd.f32 %v2590, %v2655
    %v2658 = vadd.f32 %v2591, %v2656
    %s2659 = sld [smem:[#allocation4 + $0x10e]]
    %v2660 = vstv %s2659
    %v2661 = vmul.f32 %v2614, %v2660
    %v2662 = vmul.f32 %v2615, %v2660
    %v2663 = vadd.f32 %v2611, %v2661
    %v2664 = vadd.f32 %v2612, %v2662
    %s2665 = sld [smem:[#allocation4 + $0x13]]
    %v2666 = vstv %s2665
    %v2667 = vmul.f32 %v2614, %v2666
    %v2668 = vmul.f32 %v2615, %v2666
    %2671 = vrot.lane.b32.xlu0 %v2667, 127
    %v2672 = vpop.permute.xlu0 %2671
    %2673 = vrot.lane.b32.xlu0 %v2668, 127
    %v2674 = vpop.permute.xlu0 %2673
    %v2677 = vadd.f32 %v2621, %v2672
    %v2678 = vadd.f32 %v2622, %v2674
    %s2679 = sld [smem:[#allocation4 + $0x37]]
    %v2680 = vstv %s2679
    %v2681 = vmul.f32 %v2614, %v2680
    %v2682 = vmul.f32 %v2615, %v2680
    %2685 = vrot.lane.b32.xlu0 %v2681, 127
    %v2686 = vpop.permute.xlu0 %2685
    %2687 = vrot.lane.b32.xlu0 %v2682, 127
    %v2688 = vpop.permute.xlu0 %2687
    %v2691 = vadd.f32 %v2627, %v2686
    %v2692 = vadd.f32 %v2628, %v2688
    %s2693 = sld [smem:[#allocation4 + $0x5b]]
    %v2694 = vstv %s2693
    %v2695 = vmul.f32 %v2614, %v2694
    %v2696 = vmul.f32 %v2615, %v2694
    %2699 = vrot.lane.b32.xlu0 %v2695, 127
    %v2700 = vpop.permute.xlu0 %2699
    %2701 = vrot.lane.b32.xlu0 %v2696, 127
    %v2702 = vpop.permute.xlu0 %2701
    %v2705 = vadd.f32 %v2633, %v2700
    %v2706 = vadd.f32 %v2634, %v2702
    %s2707 = sld [smem:[#allocation4 + $0x7f]]
    %v2708 = vstv %s2707
    %v2709 = vmul.f32 %v2614, %v2708
    %v2710 = vmul.f32 %v2615, %v2708
    %2713 = vrot.lane.b32.xlu0 %v2709, 127
    %v2714 = vpop.permute.xlu0 %2713
    %2715 = vrot.lane.b32.xlu0 %v2710, 127
    %v2716 = vpop.permute.xlu0 %2715
    %v2719 = vadd.f32 %v2639, %v2714
    %v2720 = vadd.f32 %v2640, %v2716
    %s2721 = sld [smem:[#allocation4 + $0xa3]]
    %v2722 = vstv %s2721
    %v2723 = vmul.f32 %v2614, %v2722
    %v2724 = vmul.f32 %v2615, %v2722
    %2727 = vrot.lane.b32.xlu0 %v2723, 127
    %v2728 = vpop.permute.xlu0 %2727
    %2729 = vrot.lane.b32.xlu0 %v2724, 127
    %v2730 = vpop.permute.xlu0 %2729
    %v2733 = vadd.f32 %v2645, %v2728
    %v2734 = vadd.f32 %v2646, %v2730
    %s2735 = sld [smem:[#allocation4 + $0xc7]]
    %v2736 = vstv %s2735
    %v2737 = vmul.f32 %v2614, %v2736
    %v2738 = vmul.f32 %v2615, %v2736
    %2741 = vrot.lane.b32.xlu0 %v2737, 127
    %v2742 = vpop.permute.xlu0 %2741
    %2743 = vrot.lane.b32.xlu0 %v2738, 127
    %v2744 = vpop.permute.xlu0 %2743
    %v2747 = vadd.f32 %v2651, %v2742
    %v2748 = vadd.f32 %v2652, %v2744
    %s2749 = sld [smem:[#allocation4 + $0xeb]]
    %v2750 = vstv %s2749
    %v2751 = vmul.f32 %v2614, %v2750
    %v2752 = vmul.f32 %v2615, %v2750
    %2755 = vrot.lane.b32.xlu0 %v2751, 127
    %v2756 = vpop.permute.xlu0 %2755
    %2757 = vrot.lane.b32.xlu0 %v2752, 127
    %v2758 = vpop.permute.xlu0 %2757
    %v2761 = vadd.f32 %v2657, %v2756
    %v2762 = vadd.f32 %v2658, %v2758
    %s2763 = sld [smem:[#allocation4 + $0x10f]]
    %v2764 = vstv %s2763
    %v2765 = vmul.f32 %v2614, %v2764
    %v2766 = vmul.f32 %v2615, %v2764
    %2769 = vrot.lane.b32.xlu0 %v2765, 127
    %v2770 = vpop.permute.xlu0 %2769
    %2771 = vrot.lane.b32.xlu0 %v2766, 127
    %v2772 = vpop.permute.xlu0 %2771
    %v2775 = vadd.f32 %v2663, %v2770
    %v2776 = vadd.f32 %v2664, %v2772
    %s2777 = sld [smem:[#allocation4 + $0x14]]
    %v2778 = vstv %s2777
    %v2779 = vmul.f32 %v2614, %v2778
    %v2780 = vmul.f32 %v2615, %v2778
    %2783 = vrot.lane.b32.xlu0 %v2779, 126
    %v2784 = vpop.permute.xlu0 %2783
    %2785 = vrot.lane.b32.xlu0 %v2780, 126
    %v2786 = vpop.permute.xlu0 %2785
    %v2789 = vadd.f32 %v2677, %v2784
    %v2790 = vadd.f32 %v2678, %v2786
    %s2791 = sld [smem:[#allocation4 + $0x38]]
    %v2792 = vstv %s2791
    %v2793 = vmul.f32 %v2614, %v2792
    %v2794 = vmul.f32 %v2615, %v2792
    %2797 = vrot.lane.b32.xlu0 %v2793, 126
    %v2798 = vpop.permute.xlu0 %2797
    %2799 = vrot.lane.b32.xlu0 %v2794, 126
    %v2800 = vpop.permute.xlu0 %2799
    %v2803 = vadd.f32 %v2691, %v2798
    %v2804 = vadd.f32 %v2692, %v2800
    %s2805 = sld [smem:[#allocation4 + $0x5c]]
    %v2806 = vstv %s2805
    %v2807 = vmul.f32 %v2614, %v2806
    %v2808 = vmul.f32 %v2615, %v2806
    %2811 = vrot.lane.b32.xlu0 %v2807, 126
    %v2812 = vpop.permute.xlu0 %2811
    %2813 = vrot.lane.b32.xlu0 %v2808, 126
    %v2814 = vpop.permute.xlu0 %2813
    %v2817 = vadd.f32 %v2705, %v2812
    %v2818 = vadd.f32 %v2706, %v2814
    %s2819 = sld [smem:[#allocation4 + $0x80]]
    %v2820 = vstv %s2819
    %v2821 = vmul.f32 %v2614, %v2820
    %v2822 = vmul.f32 %v2615, %v2820
    %2825 = vrot.lane.b32.xlu0 %v2821, 126
    %v2826 = vpop.permute.xlu0 %2825
    %2827 = vrot.lane.b32.xlu0 %v2822, 126
    %v2828 = vpop.permute.xlu0 %2827
    %v2831 = vadd.f32 %v2719, %v2826
    %v2832 = vadd.f32 %v2720, %v2828
    %s2833 = sld [smem:[#allocation4 + $0xa4]]
    %v2834 = vstv %s2833
    %v2835 = vmul.f32 %v2614, %v2834
    %v2836 = vmul.f32 %v2615, %v2834
    %2839 = vrot.lane.b32.xlu0 %v2835, 126
    %v2840 = vpop.permute.xlu0 %2839
    %2841 = vrot.lane.b32.xlu0 %v2836, 126
    %v2842 = vpop.permute.xlu0 %2841
    %v2845 = vadd.f32 %v2733, %v2840
    %v2846 = vadd.f32 %v2734, %v2842
    %s2847 = sld [smem:[#allocation4 + $0xc8]]
    %v2848 = vstv %s2847
    %v2849 = vmul.f32 %v2614, %v2848
    %v2850 = vmul.f32 %v2615, %v2848
    %2853 = vrot.lane.b32.xlu0 %v2849, 126
    %v2854 = vpop.permute.xlu0 %2853
    %2855 = vrot.lane.b32.xlu0 %v2850, 126
    %v2856 = vpop.permute.xlu0 %2855
    %v2859 = vadd.f32 %v2747, %v2854
    %v2860 = vadd.f32 %v2748, %v2856
    %s2861 = sld [smem:[#allocation4 + $0xec]]
    %v2862 = vstv %s2861
    %v2863 = vmul.f32 %v2614, %v2862
    %v2864 = vmul.f32 %v2615, %v2862
    %2867 = vrot.lane.b32.xlu0 %v2863, 126
    %v2868 = vpop.permute.xlu0 %2867
    %2869 = vrot.lane.b32.xlu0 %v2864, 126
    %v2870 = vpop.permute.xlu0 %2869
    %v2873 = vadd.f32 %v2761, %v2868
    %v2874 = vadd.f32 %v2762, %v2870
    %s2875 = sld [smem:[#allocation4 + $0x110]]
    %v2876 = vstv %s2875
    %v2877 = vmul.f32 %v2614, %v2876
    %v2878 = vmul.f32 %v2615, %v2876
    %2881 = vrot.lane.b32.xlu0 %v2877, 126
    %v2882 = vpop.permute.xlu0 %2881
    %2883 = vrot.lane.b32.xlu0 %v2878, 126
    %v2884 = vpop.permute.xlu0 %2883
    %v2887 = vadd.f32 %v2775, %v2882
    %v2888 = vadd.f32 %v2776, %v2884
    %s2889 = sld [smem:[#allocation4 + $0x15]]
    %v2890 = vstv %s2889
    %v2891 = vmul.f32 %v2614, %v2890
    %v2892 = vmul.f32 %v2615, %v2890
    %v2893 = vmul.f32 %v2616, %v2890
    %v2897 = vrot.slane %v2891, 1
    %v2898 = vrot.slane %v2892, 1
    %v2899 = vsel %vm455, %v2897, %v2898
    %v2900 = vrot.slane %v2893, 1
    %v2901 = vsel %vm455, %v2898, %v2900
    %v2904 = vadd.f32 %v2789, %v2899
    %v2905 = vadd.f32 %v2790, %v2901
    %s2906 = sld [smem:[#allocation4 + $0x39]]
    %v2907 = vstv %s2906
    %v2908 = vmul.f32 %v2614, %v2907
    %v2909 = vmul.f32 %v2615, %v2907
    %v2910 = vmul.f32 %v2616, %v2907
    %v2914 = vrot.slane %v2908, 1
    %v2915 = vrot.slane %v2909, 1
    %v2916 = vsel %vm455, %v2914, %v2915
    %v2917 = vrot.slane %v2910, 1
    %v2918 = vsel %vm455, %v2915, %v2917
    %v2921 = vadd.f32 %v2803, %v2916
    %v2922 = vadd.f32 %v2804, %v2918
    %s2923 = sld [smem:[#allocation4 + $0x5d]]
    %v2924 = vstv %s2923
    %v2925 = vmul.f32 %v2614, %v2924
    %v2926 = vmul.f32 %v2615, %v2924
    %v2927 = vmul.f32 %v2616, %v2924
    %v2931 = vrot.slane %v2925, 1
    %v2932 = vrot.slane %v2926, 1
    %v2933 = vsel %vm455, %v2931, %v2932
    %v2934 = vrot.slane %v2927, 1
    %v2935 = vsel %vm455, %v2932, %v2934
    %v2938 = vadd.f32 %v2817, %v2933
    %v2939 = vadd.f32 %v2818, %v2935
    %s2940 = sld [smem:[#allocation4 + $0x81]]
    %v2941 = vstv %s2940
    %v2942 = vmul.f32 %v2614, %v2941
    %v2943 = vmul.f32 %v2615, %v2941
    %v2944 = vmul.f32 %v2616, %v2941
    %v2948 = vrot.slane %v2942, 1
    %v2949 = vrot.slane %v2943, 1
    %v2950 = vsel %vm455, %v2948, %v2949
    %v2951 = vrot.slane %v2944, 1
    %v2952 = vsel %vm455, %v2949, %v2951
    %v2955 = vadd.f32 %v2831, %v2950
    %v2956 = vadd.f32 %v2832, %v2952
    %s2957 = sld [smem:[#allocation4 + $0xa5]]
    %v2958 = vstv %s2957
    %v2959 = vmul.f32 %v2614, %v2958
    %v2960 = vmul.f32 %v2615, %v2958
    %v2961 = vmul.f32 %v2616, %v2958
    %v2965 = vrot.slane %v2959, 1
    %v2966 = vrot.slane %v2960, 1
    %v2967 = vsel %vm455, %v2965, %v2966
    %v2968 = vrot.slane %v2961, 1
    %v2969 = vsel %vm455, %v2966, %v2968
    %v2972 = vadd.f32 %v2845, %v2967
    %v2973 = vadd.f32 %v2846, %v2969
    %s2974 = sld [smem:[#allocation4 + $0xc9]]
    %v2975 = vstv %s2974
    %v2976 = vmul.f32 %v2614, %v2975
    %v2977 = vmul.f32 %v2615, %v2975
    %v2978 = vmul.f32 %v2616, %v2975
    %v2982 = vrot.slane %v2976, 1
    %v2983 = vrot.slane %v2977, 1
    %v2984 = vsel %vm455, %v2982, %v2983
    %v2985 = vrot.slane %v2978, 1
    %v2986 = vsel %vm455, %v2983, %v2985
    %v2989 = vadd.f32 %v2859, %v2984
    %v2990 = vadd.f32 %v2860, %v2986
    %s2991 = sld [smem:[#allocation4 + $0xed]]
    %v2992 = vstv %s2991
    %v2993 = vmul.f32 %v2614, %v2992
    %v2994 = vmul.f32 %v2615, %v2992
    %v2995 = vmul.f32 %v2616, %v2992
    %v2999 = vrot.slane %v2993, 1
    %v3000 = vrot.slane %v2994, 1
    %v3001 = vsel %vm455, %v2999, %v3000
    %v3002 = vrot.slane %v2995, 1
    %v3003 = vsel %vm455, %v3000, %v3002
    %v3006 = vadd.f32 %v2873, %v3001
    %v3007 = vadd.f32 %v2874, %v3003
    %s3008 = sld [smem:[#allocation4 + $0x111]]
    %v3009 = vstv %s3008
    %v3010 = vmul.f32 %v2614, %v3009
    %v3011 = vmul.f32 %v2615, %v3009
    %v3012 = vmul.f32 %v2616, %v3009
    %v3016 = vrot.slane %v3010, 1
    %v3017 = vrot.slane %v3011, 1
    %v3018 = vsel %vm455, %v3016, %v3017
    %v3019 = vrot.slane %v3012, 1
    %v3020 = vsel %vm455, %v3017, %v3019
    %v3023 = vadd.f32 %v2887, %v3018
    %v3024 = vadd.f32 %v2888, %v3020
    %s3025 = sld [smem:[#allocation4 + $0x16]]
    %v3026 = vstv %s3025
    %v3027 = vmul.f32 %v2614, %v3026
    %v3028 = vmul.f32 %v2615, %v3026
    %v3029 = vmul.f32 %v2616, %v3026
    %v3033 = vrot.slane %v3027, 1
    %v3034 = vrot.slane %v3028, 1
    %v3035 = vsel %vm455, %v3033, %v3034
    %v3036 = vrot.slane %v3029, 1
    %v3037 = vsel %vm455, %v3034, %v3036
    %3038 = vrot.lane.b32.xlu0 %v3035, 127
    %v3039 = vpop.permute.xlu0 %3038
    %3040 = vrot.lane.b32.xlu0 %v3037, 127
    %v3041 = vpop.permute.xlu0 %3040
    %v3044 = vadd.f32 %v2904, %v3039
    %v3045 = vadd.f32 %v2905, %v3041
    %s3046 = sld [smem:[#allocation4 + $0x3a]]
    %v3047 = vstv %s3046
    %v3048 = vmul.f32 %v2614, %v3047
    %v3049 = vmul.f32 %v2615, %v3047
    %v3050 = vmul.f32 %v2616, %v3047
    %v3054 = vrot.slane %v3048, 1
    %v3055 = vrot.slane %v3049, 1
    %v3056 = vsel %vm455, %v3054, %v3055
    %v3057 = vrot.slane %v3050, 1
    %v3058 = vsel %vm455, %v3055, %v3057
    %3059 = vrot.lane.b32.xlu0 %v3056, 127
    %v3060 = vpop.permute.xlu0 %3059
    %3061 = vrot.lane.b32.xlu0 %v3058, 127
    %v3062 = vpop.permute.xlu0 %3061
    %v3065 = vadd.f32 %v2921, %v3060
    %v3066 = vadd.f32 %v2922, %v3062
    %s3067 = sld [smem:[#allocation4 + $0x5e]]
    %v3068 = vstv %s3067
    %v3069 = vmul.f32 %v2614, %v3068
    %v3070 = vmul.f32 %v2615, %v3068
    %v3071 = vmul.f32 %v2616, %v3068
    %v3075 = vrot.slane %v3069, 1
    %v3076 = vrot.slane %v3070, 1
    %v3077 = vsel %vm455, %v3075, %v3076
    %v3078 = vrot.slane %v3071, 1
    %v3079 = vsel %vm455, %v3076, %v3078
    %3080 = vrot.lane.b32.xlu0 %v3077, 127
    %v3081 = vpop.permute.xlu0 %3080
    %3082 = vrot.lane.b32.xlu0 %v3079, 127
    %v3083 = vpop.permute.xlu0 %3082
    %v3086 = vadd.f32 %v2938, %v3081
    %v3087 = vadd.f32 %v2939, %v3083
    %s3088 = sld [smem:[#allocation4 + $0x82]]
    %v3089 = vstv %s3088
    %v3090 = vmul.f32 %v2614, %v3089
    %v3091 = vmul.f32 %v2615, %v3089
    %v3092 = vmul.f32 %v2616, %v3089
    %v3096 = vrot.slane %v3090, 1
    %v3097 = vrot.slane %v3091, 1
    %v3098 = vsel %vm455, %v3096, %v3097
    %v3099 = vrot.slane %v3092, 1
    %v3100 = vsel %vm455, %v3097, %v3099
    %3101 = vrot.lane.b32.xlu0 %v3098, 127
    %v3102 = vpop.permute.xlu0 %3101
    %3103 = vrot.lane.b32.xlu0 %v3100, 127
    %v3104 = vpop.permute.xlu0 %3103
    %v3107 = vadd.f32 %v2955, %v3102
    %v3108 = vadd.f32 %v2956, %v3104
    %s3109 = sld [smem:[#allocation4 + $0xa6]]
    %v3110 = vstv %s3109
    %v3111 = vmul.f32 %v2614, %v3110
    %v3112 = vmul.f32 %v2615, %v3110
    %v3113 = vmul.f32 %v2616, %v3110
    %v3117 = vrot.slane %v3111, 1
    %v3118 = vrot.slane %v3112, 1
    %v3119 = vsel %vm455, %v3117, %v3118
    %v3120 = vrot.slane %v3113, 1
    %v3121 = vsel %vm455, %v3118, %v3120
    %3122 = vrot.lane.b32.xlu0 %v3119, 127
    %v3123 = vpop.permute.xlu0 %3122
    %3124 = vrot.lane.b32.xlu0 %v3121, 127
    %v3125 = vpop.permute.xlu0 %3124
    %v3128 = vadd.f32 %v2972, %v3123
    %v3129 = vadd.f32 %v2973, %v3125
    %s3130 = sld [smem:[#allocation4 + $0xca]]
    %v3131 = vstv %s3130
    %v3132 = vmul.f32 %v2614, %v3131
    %v3133 = vmul.f32 %v2615, %v3131
    %v3134 = vmul.f32 %v2616, %v3131
    %v3138 = vrot.slane %v3132, 1
    %v3139 = vrot.slane %v3133, 1
    %v3140 = vsel %vm455, %v3138, %v3139
    %v3141 = vrot.slane %v3134, 1
    %v3142 = vsel %vm455, %v3139, %v3141
    %3143 = vrot.lane.b32.xlu0 %v3140, 127
    %v3144 = vpop.permute.xlu0 %3143
    %3145 = vrot.lane.b32.xlu0 %v3142, 127
    %v3146 = vpop.permute.xlu0 %3145
    %v3149 = vadd.f32 %v2989, %v3144
    %v3150 = vadd.f32 %v2990, %v3146
    %s3151 = sld [smem:[#allocation4 + $0xee]]
    %v3152 = vstv %s3151
    %v3153 = vmul.f32 %v2614, %v3152
    %v3154 = vmul.f32 %v2615, %v3152
    %v3155 = vmul.f32 %v2616, %v3152
    %v3159 = vrot.slane %v3153, 1
    %v3160 = vrot.slane %v3154, 1
    %v3161 = vsel %vm455, %v3159, %v3160
    %v3162 = vrot.slane %v3155, 1
    %v3163 = vsel %vm455, %v3160, %v3162
    %3164 = vrot.lane.b32.xlu0 %v3161, 127
    %v3165 = vpop.permute.xlu0 %3164
    %3166 = vrot.lane.b32.xlu0 %v3163, 127
    %v3167 = vpop.permute.xlu0 %3166
    %v3170 = vadd.f32 %v3006, %v3165
    %v3171 = vadd.f32 %v3007, %v3167
    %s3172 = sld [smem:[#allocation4 + $0x112]]
    %v3173 = vstv %s3172
    %v3174 = vmul.f32 %v2614, %v3173
    %v3175 = vmul.f32 %v2615, %v3173
    %v3176 = vmul.f32 %v2616, %v3173
    %v3180 = vrot.slane %v3174, 1
    %v3181 = vrot.slane %v3175, 1
    %v3182 = vsel %vm455, %v3180, %v3181
    %v3183 = vrot.slane %v3176, 1
    %v3184 = vsel %vm455, %v3181, %v3183
    %3185 = vrot.lane.b32.xlu0 %v3182, 127
    %v3186 = vpop.permute.xlu0 %3185
    %3187 = vrot.lane.b32.xlu0 %v3184, 127
    %v3188 = vpop.permute.xlu0 %3187
    %v3191 = vadd.f32 %v3023, %v3186
    %v3192 = vadd.f32 %v3024, %v3188
    %s3193 = sld [smem:[#allocation4 + $0x17]]
    %v3194 = vstv %s3193
    %v3195 = vmul.f32 %v2614, %v3194
    %v3196 = vmul.f32 %v2615, %v3194
    %v3197 = vmul.f32 %v2616, %v3194
    %v3201 = vrot.slane %v3195, 1
    %v3202 = vrot.slane %v3196, 1
    %v3203 = vsel %vm455, %v3201, %v3202
    %v3204 = vrot.slane %v3197, 1
    %v3205 = vsel %vm455, %v3202, %v3204
    %3206 = vrot.lane.b32.xlu0 %v3203, 126
    %v3207 = vpop.permute.xlu0 %3206
    %3208 = vrot.lane.b32.xlu0 %v3205, 126
    %v3209 = vpop.permute.xlu0 %3208
    %v3212 = vadd.f32 %v3044, %v3207
    %v3213 = vadd.f32 %v3045, %v3209
    %s3214 = sld [smem:[#allocation4 + $0x3b]]
    %v3215 = vstv %s3214
    %v3216 = vmul.f32 %v2614, %v3215
    %v3217 = vmul.f32 %v2615, %v3215
    %v3218 = vmul.f32 %v2616, %v3215
    %v3222 = vrot.slane %v3216, 1
    %v3223 = vrot.slane %v3217, 1
    %v3224 = vsel %vm455, %v3222, %v3223
    %v3225 = vrot.slane %v3218, 1
    %v3226 = vsel %vm455, %v3223, %v3225
    %3227 = vrot.lane.b32.xlu0 %v3224, 126
    %v3228 = vpop.permute.xlu0 %3227
    %3229 = vrot.lane.b32.xlu0 %v3226, 126
    %v3230 = vpop.permute.xlu0 %3229
    %v3233 = vadd.f32 %v3065, %v3228
    %v3234 = vadd.f32 %v3066, %v3230
    %s3235 = sld [smem:[#allocation4 + $0x5f]]
    %v3236 = vstv %s3235
    %v3237 = vmul.f32 %v2614, %v3236
    %v3238 = vmul.f32 %v2615, %v3236
    %v3239 = vmul.f32 %v2616, %v3236
    %v3243 = vrot.slane %v3237, 1
    %v3244 = vrot.slane %v3238, 1
    %v3245 = vsel %vm455, %v3243, %v3244
    %v3246 = vrot.slane %v3239, 1
    %v3247 = vsel %vm455, %v3244, %v3246
    %3248 = vrot.lane.b32.xlu0 %v3245, 126
    %v3249 = vpop.permute.xlu0 %3248
    %3250 = vrot.lane.b32.xlu0 %v3247, 126
    %v3251 = vpop.permute.xlu0 %3250
    %v3254 = vadd.f32 %v3086, %v3249
    %v3255 = vadd.f32 %v3087, %v3251
    %s3256 = sld [smem:[#allocation4 + $0x83]]
    %v3257 = vstv %s3256
    %v3258 = vmul.f32 %v2614, %v3257
    %v3259 = vmul.f32 %v2615, %v3257
    %v3260 = vmul.f32 %v2616, %v3257
    %v3264 = vrot.slane %v3258, 1
    %v3265 = vrot.slane %v3259, 1
    %v3266 = vsel %vm455, %v3264, %v3265
    %v3267 = vrot.slane %v3260, 1
    %v3268 = vsel %vm455, %v3265, %v3267
    %3269 = vrot.lane.b32.xlu0 %v3266, 126
    %v3270 = vpop.permute.xlu0 %3269
    %3271 = vrot.lane.b32.xlu0 %v3268, 126
    %v3272 = vpop.permute.xlu0 %3271
    %v3275 = vadd.f32 %v3107, %v3270
    %v3276 = vadd.f32 %v3108, %v3272
    %s3277 = sld [smem:[#allocation4 + $0xa7]]
    %v3278 = vstv %s3277
    %v3279 = vmul.f32 %v2614, %v3278
    %v3280 = vmul.f32 %v2615, %v3278
    %v3281 = vmul.f32 %v2616, %v3278
    %v3285 = vrot.slane %v3279, 1
    %v3286 = vrot.slane %v3280, 1
    %v3287 = vsel %vm455, %v3285, %v3286
    %v3288 = vrot.slane %v3281, 1
    %v3289 = vsel %vm455, %v3286, %v3288
    %3290 = vrot.lane.b32.xlu0 %v3287, 126
    %v3291 = vpop.permute.xlu0 %3290
    %3292 = vrot.lane.b32.xlu0 %v3289, 126
    %v3293 = vpop.permute.xlu0 %3292
    %v3296 = vadd.f32 %v3128, %v3291
    %v3297 = vadd.f32 %v3129, %v3293
    %s3298 = sld [smem:[#allocation4 + $0xcb]]
    %v3299 = vstv %s3298
    %v3300 = vmul.f32 %v2614, %v3299
    %v3301 = vmul.f32 %v2615, %v3299
    %v3302 = vmul.f32 %v2616, %v3299
    %v3306 = vrot.slane %v3300, 1
    %v3307 = vrot.slane %v3301, 1
    %v3308 = vsel %vm455, %v3306, %v3307
    %v3309 = vrot.slane %v3302, 1
    %v3310 = vsel %vm455, %v3307, %v3309
    %3311 = vrot.lane.b32.xlu0 %v3308, 126
    %v3312 = vpop.permute.xlu0 %3311
    %3313 = vrot.lane.b32.xlu0 %v3310, 126
    %v3314 = vpop.permute.xlu0 %3313
    %v3317 = vadd.f32 %v3149, %v3312
    %v3318 = vadd.f32 %v3150, %v3314
    %s3319 = sld [smem:[#allocation4 + $0xef]]
    %v3320 = vstv %s3319
    %v3321 = vmul.f32 %v2614, %v3320
    %v3322 = vmul.f32 %v2615, %v3320
    %v3323 = vmul.f32 %v2616, %v3320
    %v3327 = vrot.slane %v3321, 1
    %v3328 = vrot.slane %v3322, 1
    %v3329 = vsel %vm455, %v3327, %v3328
    %v3330 = vrot.slane %v3323, 1
    %v3331 = vsel %vm455, %v3328, %v3330
    %3332 = vrot.lane.b32.xlu0 %v3329, 126
    %v3333 = vpop.permute.xlu0 %3332
    %3334 = vrot.lane.b32.xlu0 %v3331, 126
    %v3335 = vpop.permute.xlu0 %3334
    %v3338 = vadd.f32 %v3170, %v3333
    %v3339 = vadd.f32 %v3171, %v3335
    %s3340 = sld [smem:[#allocation4 + $0x113]]
    %v3341 = vstv %s3340
    %v3342 = vmul.f32 %v2614, %v3341
    %v3343 = vmul.f32 %v2615, %v3341
    %v3344 = vmul.f32 %v2616, %v3341
    %v3348 = vrot.slane %v3342, 1
    %v3349 = vrot.slane %v3343, 1
    %v3350 = vsel %vm455, %v3348, %v3349
    %v3351 = vrot.slane %v3344, 1
    %v3352 = vsel %vm455, %v3349, %v3351
    %3353 = vrot.lane.b32.xlu0 %v3350, 126
    %v3354 = vpop.permute.xlu0 %3353
    %3355 = vrot.lane.b32.xlu0 %v3352, 126
    %v3356 = vpop.permute.xlu0 %3355
    %v3359 = vadd.f32 %v3191, %v3354
    %v3360 = vadd.f32 %v3192, %v3356
    %s3361 = sld [smem:[#allocation4 + $0x18]]
    %v3362 = vstv %s3361
    %v3363 = vmul.f32 %v2614, %v3362
    %v3364 = vmul.f32 %v2615, %v3362
    %v3365 = vmul.f32 %v2616, %v3362
    %v3369 = vrot.slane %v3363, 2
    %v3370 = vrot.slane %v3364, 2
    %v3371 = vsel %vm928, %v3369, %v3370
    %v3372 = vrot.slane %v3365, 2
    %v3373 = vsel %vm928, %v3370, %v3372
    %v3376 = vadd.f32 %v3212, %v3371
    %v3377 = vadd.f32 %v3213, %v3373
    %s3378 = sld [smem:[#allocation4 + $0x3c]]
    %v3379 = vstv %s3378
    %v3380 = vmul.f32 %v2614, %v3379
    %v3381 = vmul.f32 %v2615, %v3379
    %v3382 = vmul.f32 %v2616, %v3379
    %v3386 = vrot.slane %v3380, 2
    %v3387 = vrot.slane %v3381, 2
    %v3388 = vsel %vm928, %v3386, %v3387
    %v3389 = vrot.slane %v3382, 2
    %v3390 = vsel %vm928, %v3387, %v3389
    %v3393 = vadd.f32 %v3233, %v3388
    %v3394 = vadd.f32 %v3234, %v3390
    %s3395 = sld [smem:[#allocation4 + $0x60]]
    %v3396 = vstv %s3395
    %v3397 = vmul.f32 %v2614, %v3396
    %v3398 = vmul.f32 %v2615, %v3396
    %v3399 = vmul.f32 %v2616, %v3396
    %v3403 = vrot.slane %v3397, 2
    %v3404 = vrot.slane %v3398, 2
    %v3405 = vsel %vm928, %v3403, %v3404
    %v3406 = vrot.slane %v3399, 2
    %v3407 = vsel %vm928, %v3404, %v3406
    %v3410 = vadd.f32 %v3254, %v3405
    %v3411 = vadd.f32 %v3255, %v3407
    %s3412 = sld [smem:[#allocation4 + $0x84]]
    %v3413 = vstv %s3412
    %v3414 = vmul.f32 %v2614, %v3413
    %v3415 = vmul.f32 %v2615, %v3413
    %v3416 = vmul.f32 %v2616, %v3413
    %v3420 = vrot.slane %v3414, 2
    %v3421 = vrot.slane %v3415, 2
    %v3422 = vsel %vm928, %v3420, %v3421
    %v3423 = vrot.slane %v3416, 2
    %v3424 = vsel %vm928, %v3421, %v3423
    %v3427 = vadd.f32 %v3275, %v3422
    %v3428 = vadd.f32 %v3276, %v3424
    %s3429 = sld [smem:[#allocation4 + $0xa8]]
    %v3430 = vstv %s3429
    %v3431 = vmul.f32 %v2614, %v3430
    %v3432 = vmul.f32 %v2615, %v3430
    %v3433 = vmul.f32 %v2616, %v3430
    %v3437 = vrot.slane %v3431, 2
    %v3438 = vrot.slane %v3432, 2
    %v3439 = vsel %vm928, %v3437, %v3438
    %v3440 = vrot.slane %v3433, 2
    %v3441 = vsel %vm928, %v3438, %v3440
    %v3444 = vadd.f32 %v3296, %v3439
    %v3445 = vadd.f32 %v3297, %v3441
    %s3446 = sld [smem:[#allocation4 + $0xcc]]
    %v3447 = vstv %s3446
    %v3448 = vmul.f32 %v2614, %v3447
    %v3449 = vmul.f32 %v2615, %v3447
    %v3450 = vmul.f32 %v2616, %v3447
    %v3454 = vrot.slane %v3448, 2
    %v3455 = vrot.slane %v3449, 2
    %v3456 = vsel %vm928, %v3454, %v3455
    %v3457 = vrot.slane %v3450, 2
    %v3458 = vsel %vm928, %v3455, %v3457
    %v3461 = vadd.f32 %v3317, %v3456
    %v3462 = vadd.f32 %v3318, %v3458
    %s3463 = sld [smem:[#allocation4 + $0xf0]]
    %v3464 = vstv %s3463
    %v3465 = vmul.f32 %v2614, %v3464
    %v3466 = vmul.f32 %v2615, %v3464
    %v3467 = vmul.f32 %v2616, %v3464
    %v3471 = vrot.slane %v3465, 2
    %v3472 = vrot.slane %v3466, 2
    %v3473 = vsel %vm928, %v3471, %v3472
    %v3474 = vrot.slane %v3467, 2
    %v3475 = vsel %vm928, %v3472, %v3474
    %v3478 = vadd.f32 %v3338, %v3473
    %v3479 = vadd.f32 %v3339, %v3475
    %s3480 = sld [smem:[#allocation4 + $0x114]]
    %v3481 = vstv %s3480
    %v3482 = vmul.f32 %v2614, %v3481
    %v3483 = vmul.f32 %v2615, %v3481
    %v3484 = vmul.f32 %v2616, %v3481
    %v3488 = vrot.slane %v3482, 2
    %v3489 = vrot.slane %v3483, 2
    %v3490 = vsel %vm928, %v3488, %v3489
    %v3491 = vrot.slane %v3484, 2
    %v3492 = vsel %vm928, %v3489, %v3491
    %v3495 = vadd.f32 %v3359, %v3490
    %v3496 = vadd.f32 %v3360, %v3492
    %s3497 = sld [smem:[#allocation4 + $0x19]]
    %v3498 = vstv %s3497
    %v3499 = vmul.f32 %v2614, %v3498
    %v3500 = vmul.f32 %v2615, %v3498
    %v3501 = vmul.f32 %v2616, %v3498
    %v3505 = vrot.slane %v3499, 2
    %v3506 = vrot.slane %v3500, 2
    %v3507 = vsel %vm928, %v3505, %v3506
    %v3508 = vrot.slane %v3501, 2
    %v3509 = vsel %vm928, %v3506, %v3508
    %3510 = vrot.lane.b32.xlu0 %v3507, 127
    %v3511 = vpop.permute.xlu0 %3510
    %3512 = vrot.lane.b32.xlu0 %v3509, 127
    %v3513 = vpop.permute.xlu0 %3512
    %v3516 = vadd.f32 %v3376, %v3511
    %v3517 = vadd.f32 %v3377, %v3513
    %s3518 = sld [smem:[#allocation4 + $0x3d]]
    %v3519 = vstv %s3518
    %v3520 = vmul.f32 %v2614, %v3519
    %v3521 = vmul.f32 %v2615, %v3519
    %v3522 = vmul.f32 %v2616, %v3519
    %v3526 = vrot.slane %v3520, 2
    %v3527 = vrot.slane %v3521, 2
    %v3528 = vsel %vm928, %v3526, %v3527
    %v3529 = vrot.slane %v3522, 2
    %v3530 = vsel %vm928, %v3527, %v3529
    %3531 = vrot.lane.b32.xlu0 %v3528, 127
    %v3532 = vpop.permute.xlu0 %3531
    %3533 = vrot.lane.b32.xlu0 %v3530, 127
    %v3534 = vpop.permute.xlu0 %3533
    %v3537 = vadd.f32 %v3393, %v3532
    %v3538 = vadd.f32 %v3394, %v3534
    %s3539 = sld [smem:[#allocation4 + $0x61]]
    %v3540 = vstv %s3539
    %v3541 = vmul.f32 %v2614, %v3540
    %v3542 = vmul.f32 %v2615, %v3540
    %v3543 = vmul.f32 %v2616, %v3540
    %v3547 = vrot.slane %v3541, 2
    %v3548 = vrot.slane %v3542, 2
    %v3549 = vsel %vm928, %v3547, %v3548
    %v3550 = vrot.slane %v3543, 2
    %v3551 = vsel %vm928, %v3548, %v3550
    %3552 = vrot.lane.b32.xlu0 %v3549, 127
    %v3553 = vpop.permute.xlu0 %3552
    %3554 = vrot.lane.b32.xlu0 %v3551, 127
    %v3555 = vpop.permute.xlu0 %3554
    %v3558 = vadd.f32 %v3410, %v3553
    %v3559 = vadd.f32 %v3411, %v3555
    %s3560 = sld [smem:[#allocation4 + $0x85]]
    %v3561 = vstv %s3560
    %v3562 = vmul.f32 %v2614, %v3561
    %v3563 = vmul.f32 %v2615, %v3561
    %v3564 = vmul.f32 %v2616, %v3561
    %v3568 = vrot.slane %v3562, 2
    %v3569 = vrot.slane %v3563, 2
    %v3570 = vsel %vm928, %v3568, %v3569
    %v3571 = vrot.slane %v3564, 2
    %v3572 = vsel %vm928, %v3569, %v3571
    %3573 = vrot.lane.b32.xlu0 %v3570, 127
    %v3574 = vpop.permute.xlu0 %3573
    %3575 = vrot.lane.b32.xlu0 %v3572, 127
    %v3576 = vpop.permute.xlu0 %3575
    %v3579 = vadd.f32 %v3427, %v3574
    %v3580 = vadd.f32 %v3428, %v3576
    %s3581 = sld [smem:[#allocation4 + $0xa9]]
    %v3582 = vstv %s3581
    %v3583 = vmul.f32 %v2614, %v3582
    %v3584 = vmul.f32 %v2615, %v3582
    %v3585 = vmul.f32 %v2616, %v3582
    %v3589 = vrot.slane %v3583, 2
    %v3590 = vrot.slane %v3584, 2
    %v3591 = vsel %vm928, %v3589, %v3590
    %v3592 = vrot.slane %v3585, 2
    %v3593 = vsel %vm928, %v3590, %v3592
    %3594 = vrot.lane.b32.xlu0 %v3591, 127
    %v3595 = vpop.permute.xlu0 %3594
    %3596 = vrot.lane.b32.xlu0 %v3593, 127
    %v3597 = vpop.permute.xlu0 %3596
    %v3600 = vadd.f32 %v3444, %v3595
    %v3601 = vadd.f32 %v3445, %v3597
    %s3602 = sld [smem:[#allocation4 + $0xcd]]
    %v3603 = vstv %s3602
    %v3604 = vmul.f32 %v2614, %v3603
    %v3605 = vmul.f32 %v2615, %v3603
    %v3606 = vmul.f32 %v2616, %v3603
    %v3610 = vrot.slane %v3604, 2
    %v3611 = vrot.slane %v3605, 2
    %v3612 = vsel %vm928, %v3610, %v3611
    %v3613 = vrot.slane %v3606, 2
    %v3614 = vsel %vm928, %v3611, %v3613
    %3615 = vrot.lane.b32.xlu0 %v3612, 127
    %v3616 = vpop.permute.xlu0 %3615
    %3617 = vrot.lane.b32.xlu0 %v3614, 127
    %v3618 = vpop.permute.xlu0 %3617
    %v3621 = vadd.f32 %v3461, %v3616
    %v3622 = vadd.f32 %v3462, %v3618
    %s3623 = sld [smem:[#allocation4 + $0xf1]]
    %v3624 = vstv %s3623
    %v3625 = vmul.f32 %v2614, %v3624
    %v3626 = vmul.f32 %v2615, %v3624
    %v3627 = vmul.f32 %v2616, %v3624
    %v3631 = vrot.slane %v3625, 2
    %v3632 = vrot.slane %v3626, 2
    %v3633 = vsel %vm928, %v3631, %v3632
    %v3634 = vrot.slane %v3627, 2
    %v3635 = vsel %vm928, %v3632, %v3634
    %3636 = vrot.lane.b32.xlu0 %v3633, 127
    %v3637 = vpop.permute.xlu0 %3636
    %3638 = vrot.lane.b32.xlu0 %v3635, 127
    %v3639 = vpop.permute.xlu0 %3638
    %v3642 = vadd.f32 %v3478, %v3637
    %v3643 = vadd.f32 %v3479, %v3639
    %s3644 = sld [smem:[#allocation4 + $0x115]]
    %v3645 = vstv %s3644
    %v3646 = vmul.f32 %v2614, %v3645
    %v3647 = vmul.f32 %v2615, %v3645
    %v3648 = vmul.f32 %v2616, %v3645
    %v3652 = vrot.slane %v3646, 2
    %v3653 = vrot.slane %v3647, 2
    %v3654 = vsel %vm928, %v3652, %v3653
    %v3655 = vrot.slane %v3648, 2
    %v3656 = vsel %vm928, %v3653, %v3655
    %3657 = vrot.lane.b32.xlu0 %v3654, 127
    %v3658 = vpop.permute.xlu0 %3657
    %3659 = vrot.lane.b32.xlu0 %v3656, 127
    %v3660 = vpop.permute.xlu0 %3659
    %v3663 = vadd.f32 %v3495, %v3658
    %v3664 = vadd.f32 %v3496, %v3660
    %s3665 = sld [smem:[#allocation4 + $0x1a]]
    %v3666 = vstv %s3665
    %v3667 = vmul.f32 %v2614, %v3666
    %v3668 = vmul.f32 %v2615, %v3666
    %v3669 = vmul.f32 %v2616, %v3666
    %v3673 = vrot.slane %v3667, 2
    %v3674 = vrot.slane %v3668, 2
    %v3675 = vsel %vm928, %v3673, %v3674
    %v3676 = vrot.slane %v3669, 2
    %v3677 = vsel %vm928, %v3674, %v3676
    %3678 = vrot.lane.b32.xlu0 %v3675, 126
    %v3679 = vpop.permute.xlu0 %3678
    %3680 = vrot.lane.b32.xlu0 %v3677, 126
    %v3681 = vpop.permute.xlu0 %3680
    %v3684 = vadd.f32 %v3516, %v3679
    %v3685 = vadd.f32 %v3517, %v3681
    %s3686 = sld [smem:[#allocation4 + $0x3e]]
    %v3687 = vstv %s3686
    %v3688 = vmul.f32 %v2614, %v3687
    %v3689 = vmul.f32 %v2615, %v3687
    %v3690 = vmul.f32 %v2616, %v3687
    %v3694 = vrot.slane %v3688, 2
    %v3695 = vrot.slane %v3689, 2
    %v3696 = vsel %vm928, %v3694, %v3695
    %v3697 = vrot.slane %v3690, 2
    %v3698 = vsel %vm928, %v3695, %v3697
    %3699 = vrot.lane.b32.xlu0 %v3696, 126
    %v3700 = vpop.permute.xlu0 %3699
    %3701 = vrot.lane.b32.xlu0 %v3698, 126
    %v3702 = vpop.permute.xlu0 %3701
    %v3705 = vadd.f32 %v3537, %v3700
    %v3706 = vadd.f32 %v3538, %v3702
    %s3707 = sld [smem:[#allocation4 + $0x62]]
    %v3708 = vstv %s3707
    %v3709 = vmul.f32 %v2614, %v3708
    %v3710 = vmul.f32 %v2615, %v3708
    %v3711 = vmul.f32 %v2616, %v3708
    %v3715 = vrot.slane %v3709, 2
    %v3716 = vrot.slane %v3710, 2
    %v3717 = vsel %vm928, %v3715, %v3716
    %v3718 = vrot.slane %v3711, 2
    %v3719 = vsel %vm928, %v3716, %v3718
    %3720 = vrot.lane.b32.xlu0 %v3717, 126
    %v3721 = vpop.permute.xlu0 %3720
    %3722 = vrot.lane.b32.xlu0 %v3719, 126
    %v3723 = vpop.permute.xlu0 %3722
    %v3726 = vadd.f32 %v3558, %v3721
    %v3727 = vadd.f32 %v3559, %v3723
    %s3728 = sld [smem:[#allocation4 + $0x86]]
    %v3729 = vstv %s3728
    %v3730 = vmul.f32 %v2614, %v3729
    %v3731 = vmul.f32 %v2615, %v3729
    %v3732 = vmul.f32 %v2616, %v3729
    %v3736 = vrot.slane %v3730, 2
    %v3737 = vrot.slane %v3731, 2
    %v3738 = vsel %vm928, %v3736, %v3737
    %v3739 = vrot.slane %v3732, 2
    %v3740 = vsel %vm928, %v3737, %v3739
    %3741 = vrot.lane.b32.xlu0 %v3738, 126
    %v3742 = vpop.permute.xlu0 %3741
    %3743 = vrot.lane.b32.xlu0 %v3740, 126
    %v3744 = vpop.permute.xlu0 %3743
    %v3747 = vadd.f32 %v3579, %v3742
    %v3748 = vadd.f32 %v3580, %v3744
    %s3749 = sld [smem:[#allocation4 + $0xaa]]
    %v3750 = vstv %s3749
    %v3751 = vmul.f32 %v2614, %v3750
    %v3752 = vmul.f32 %v2615, %v3750
    %v3753 = vmul.f32 %v2616, %v3750
    %v3757 = vrot.slane %v3751, 2
    %v3758 = vrot.slane %v3752, 2
    %v3759 = vsel %vm928, %v3757, %v3758
    %v3760 = vrot.slane %v3753, 2
    %v3761 = vsel %vm928, %v3758, %v3760
    %3762 = vrot.lane.b32.xlu0 %v3759, 126
    %v3763 = vpop.permute.xlu0 %3762
    %3764 = vrot.lane.b32.xlu0 %v3761, 126
    %v3765 = vpop.permute.xlu0 %3764
    %v3768 = vadd.f32 %v3600, %v3763
    %v3769 = vadd.f32 %v3601, %v3765
    %s3770 = sld [smem:[#allocation4 + $0xce]]
    %v3771 = vstv %s3770
    %v3772 = vmul.f32 %v2614, %v3771
    %v3773 = vmul.f32 %v2615, %v3771
    %v3774 = vmul.f32 %v2616, %v3771
    %v3778 = vrot.slane %v3772, 2
    %v3779 = vrot.slane %v3773, 2
    %v3780 = vsel %vm928, %v3778, %v3779
    %v3781 = vrot.slane %v3774, 2
    %v3782 = vsel %vm928, %v3779, %v3781
    %3783 = vrot.lane.b32.xlu0 %v3780, 126
    %v3784 = vpop.permute.xlu0 %3783
    %3785 = vrot.lane.b32.xlu0 %v3782, 126
    %v3786 = vpop.permute.xlu0 %3785
    %v3789 = vadd.f32 %v3621, %v3784
    %v3790 = vadd.f32 %v3622, %v3786
    %s3791 = sld [smem:[#allocation4 + $0xf2]]
    %v3792 = vstv %s3791
    %v3793 = vmul.f32 %v2614, %v3792
    %v3794 = vmul.f32 %v2615, %v3792
    %v3795 = vmul.f32 %v2616, %v3792
    %v3799 = vrot.slane %v3793, 2
    %v3800 = vrot.slane %v3794, 2
    %v3801 = vsel %vm928, %v3799, %v3800
    %v3802 = vrot.slane %v3795, 2
    %v3803 = vsel %vm928, %v3800, %v3802
    %3804 = vrot.lane.b32.xlu0 %v3801, 126
    %v3805 = vpop.permute.xlu0 %3804
    %3806 = vrot.lane.b32.xlu0 %v3803, 126
    %v3807 = vpop.permute.xlu0 %3806
    %v3810 = vadd.f32 %v3642, %v3805
    %v3811 = vadd.f32 %v3643, %v3807
    %s3812 = sld [smem:[#allocation4 + $0x116]]
    %v3813 = vstv %s3812
    %v3814 = vmul.f32 %v2614, %v3813
    %v3815 = vmul.f32 %v2615, %v3813
    %v3816 = vmul.f32 %v2616, %v3813
    %v3820 = vrot.slane %v3814, 2
    %v3821 = vrot.slane %v3815, 2
    %v3822 = vsel %vm928, %v3820, %v3821
    %v3823 = vrot.slane %v3816, 2
    %v3824 = vsel %vm928, %v3821, %v3823
    %3825 = vrot.lane.b32.xlu0 %v3822, 126
    %v3826 = vpop.permute.xlu0 %3825
    %3827 = vrot.lane.b32.xlu0 %v3824, 126
    %v3828 = vpop.permute.xlu0 %3827
    %v3831 = vadd.f32 %v3663, %v3826
    %v3832 = vadd.f32 %v3664, %v3828
    %s3833 = scalar_lea.vmem [#allocation2], 72
    %v3834 = vld [vmem:[%s3833] sm:$0xff]
    %v3835 = vld [vmem:[%s3833 + $0x8] sm:$0xff]
    %v3836 = vld [vmem:[%s3833 + $0x10] sm:$0x3]
    %s3837 = sld [smem:[#allocation4 + $0x1b]]
    %v3838 = vstv %s3837
    %v3839 = vmul.f32 %v3834, %v3838
    %v3840 = vmul.f32 %v3835, %v3838
    %v3841 = vadd.f32 %v3684, %v3839
    %v3842 = vadd.f32 %v3685, %v3840
    %s3843 = sld [smem:[#allocation4 + $0x3f]]
    %v3844 = vstv %s3843
    %v3845 = vmul.f32 %v3834, %v3844
    %v3846 = vmul.f32 %v3835, %v3844
    %v3847 = vadd.f32 %v3705, %v3845
    %v3848 = vadd.f32 %v3706, %v3846
    %s3849 = sld [smem:[#allocation4 + $0x63]]
    %v3850 = vstv %s3849
    %v3851 = vmul.f32 %v3834, %v3850
    %v3852 = vmul.f32 %v3835, %v3850
    %v3853 = vadd.f32 %v3726, %v3851
    %v3854 = vadd.f32 %v3727, %v3852
    %s3855 = sld [smem:[#allocation4 + $0x87]]
    %v3856 = vstv %s3855
    %v3857 = vmul.f32 %v3834, %v3856
    %v3858 = vmul.f32 %v3835, %v3856
    %v3859 = vadd.f32 %v3747, %v3857
    %v3860 = vadd.f32 %v3748, %v3858
    %s3861 = sld [smem:[#allocation4 + $0xab]]
    %v3862 = vstv %s3861
    %v3863 = vmul.f32 %v3834, %v3862
    %v3864 = vmul.f32 %v3835, %v3862
    %v3865 = vadd.f32 %v3768, %v3863
    %v3866 = vadd.f32 %v3769, %v3864
    %s3867 = sld [smem:[#allocation4 + $0xcf]]
    %v3868 = vstv %s3867
    %v3869 = vmul.f32 %v3834, %v3868
    %v3870 = vmul.f32 %v3835, %v3868
    %v3871 = vadd.f32 %v3789, %v3869
    %v3872 = vadd.f32 %v3790, %v3870
    %s3873 = sld [smem:[#allocation4 + $0xf3]]
    %v3874 = vstv %s3873
    %v3875 = vmul.f32 %v3834, %v3874
    %v3876 = vmul.f32 %v3835, %v3874
    %v3877 = vadd.f32 %v3810, %v3875
    %v3878 = vadd.f32 %v3811, %v3876
    %s3879 = sld [smem:[#allocation4 + $0x117]]
    %v3880 = vstv %s3879
    %v3881 = vmul.f32 %v3834, %v3880
    %v3882 = vmul.f32 %v3835, %v3880
    %v3883 = vadd.f32 %v3831, %v3881
    %v3884 = vadd.f32 %v3832, %v3882
    %s3885 = sld [smem:[#allocation4 + $0x1c]]
    %v3886 = vstv %s3885
    %v3887 = vmul.f32 %v3834, %v3886
    %v3888 = vmul.f32 %v3835, %v3886
    %3891 = vrot.lane.b32.xlu0 %v3887, 127
    %v3892 = vpop.permute.xlu0 %3891
    %3893 = vrot.lane.b32.xlu0 %v3888, 127
    %v3894 = vpop.permute.xlu0 %3893
    %v3897 = vadd.f32 %v3841, %v3892
    %v3898 = vadd.f32 %v3842, %v3894
    %s3899 = sld [smem:[#allocation4 + $0x40]]
    %v3900 = vstv %s3899
    %v3901 = vmul.f32 %v3834, %v3900
    %v3902 = vmul.f32 %v3835, %v3900
    %3905 = vrot.lane.b32.xlu0 %v3901, 127
    %v3906 = vpop.permute.xlu0 %3905
    %3907 = vrot.lane.b32.xlu0 %v3902, 127
    %v3908 = vpop.permute.xlu0 %3907
    %v3911 = vadd.f32 %v3847, %v3906
    %v3912 = vadd.f32 %v3848, %v3908
    %s3913 = sld [smem:[#allocation4 + $0x64]]
    %v3914 = vstv %s3913
    %v3915 = vmul.f32 %v3834, %v3914
    %v3916 = vmul.f32 %v3835, %v3914
    %3919 = vrot.lane.b32.xlu0 %v3915, 127
    %v3920 = vpop.permute.xlu0 %3919
    %3921 = vrot.lane.b32.xlu0 %v3916, 127
    %v3922 = vpop.permute.xlu0 %3921
    %v3925 = vadd.f32 %v3853, %v3920
    %v3926 = vadd.f32 %v3854, %v3922
    %s3927 = sld [smem:[#allocation4 + $0x88]]
    %v3928 = vstv %s3927
    %v3929 = vmul.f32 %v3834, %v3928
    %v3930 = vmul.f32 %v3835, %v3928
    %3933 = vrot.lane.b32.xlu0 %v3929, 127
    %v3934 = vpop.permute.xlu0 %3933
    %3935 = vrot.lane.b32.xlu0 %v3930, 127
    %v3936 = vpop.permute.xlu0 %3935
    %v3939 = vadd.f32 %v3859, %v3934
    %v3940 = vadd.f32 %v3860, %v3936
    %s3941 = sld [smem:[#allocation4 + $0xac]]
    %v3942 = vstv %s3941
    %v3943 = vmul.f32 %v3834, %v3942
    %v3944 = vmul.f32 %v3835, %v3942
    %3947 = vrot.lane.b32.xlu0 %v3943, 127
    %v3948 = vpop.permute.xlu0 %3947
    %3949 = vrot.lane.b32.xlu0 %v3944, 127
    %v3950 = vpop.permute.xlu0 %3949
    %v3953 = vadd.f32 %v3865, %v3948
    %v3954 = vadd.f32 %v3866, %v3950
    %s3955 = sld [smem:[#allocation4 + $0xd0]]
    %v3956 = vstv %s3955
    %v3957 = vmul.f32 %v3834, %v3956
    %v3958 = vmul.f32 %v3835, %v3956
    %3961 = vrot.lane.b32.xlu0 %v3957, 127
    %v3962 = vpop.permute.xlu0 %3961
    %3963 = vrot.lane.b32.xlu0 %v3958, 127
    %v3964 = vpop.permute.xlu0 %3963
    %v3967 = vadd.f32 %v3871, %v3962
    %v3968 = vadd.f32 %v3872, %v3964
    %s3969 = sld [smem:[#allocation4 + $0xf4]]
    %v3970 = vstv %s3969
    %v3971 = vmul.f32 %v3834, %v3970
    %v3972 = vmul.f32 %v3835, %v3970
    %3975 = vrot.lane.b32.xlu0 %v3971, 127
    %v3976 = vpop.permute.xlu0 %3975
    %3977 = vrot.lane.b32.xlu0 %v3972, 127
    %v3978 = vpop.permute.xlu0 %3977
    %v3981 = vadd.f32 %v3877, %v3976
    %v3982 = vadd.f32 %v3878, %v3978
    %s3983 = sld [smem:[#allocation4 + $0x118]]
    %v3984 = vstv %s3983
    %v3985 = vmul.f32 %v3834, %v3984
    %v3986 = vmul.f32 %v3835, %v3984
    %3989 = vrot.lane.b32.xlu0 %v3985, 127
    %v3990 = vpop.permute.xlu0 %3989
    %3991 = vrot.lane.b32.xlu0 %v3986, 127
    %v3992 = vpop.permute.xlu0 %3991
    %v3995 = vadd.f32 %v3883, %v3990
    %v3996 = vadd.f32 %v3884, %v3992
    %s3997 = sld [smem:[#allocation4 + $0x1d]]
    %v3998 = vstv %s3997
    %v3999 = vmul.f32 %v3834, %v3998
    %v4000 = vmul.f32 %v3835, %v3998
    %4003 = vrot.lane.b32.xlu0 %v3999, 126
    %v4004 = vpop.permute.xlu0 %4003
    %4005 = vrot.lane.b32.xlu0 %v4000, 126
    %v4006 = vpop.permute.xlu0 %4005
    %v4009 = vadd.f32 %v3897, %v4004
    %v4010 = vadd.f32 %v3898, %v4006
    %s4011 = sld [smem:[#allocation4 + $0x41]]
    %v4012 = vstv %s4011
    %v4013 = vmul.f32 %v3834, %v4012
    %v4014 = vmul.f32 %v3835, %v4012
    %4017 = vrot.lane.b32.xlu0 %v4013, 126
    %v4018 = vpop.permute.xlu0 %4017
    %4019 = vrot.lane.b32.xlu0 %v4014, 126
    %v4020 = vpop.permute.xlu0 %4019
    %v4023 = vadd.f32 %v3911, %v4018
    %v4024 = vadd.f32 %v3912, %v4020
    %s4025 = sld [smem:[#allocation4 + $0x65]]
    %v4026 = vstv %s4025
    %v4027 = vmul.f32 %v3834, %v4026
    %v4028 = vmul.f32 %v3835, %v4026
    %4031 = vrot.lane.b32.xlu0 %v4027, 126
    %v4032 = vpop.permute.xlu0 %4031
    %4033 = vrot.lane.b32.xlu0 %v4028, 126
    %v4034 = vpop.permute.xlu0 %4033
    %v4037 = vadd.f32 %v3925, %v4032
    %v4038 = vadd.f32 %v3926, %v4034
    %s4039 = sld [smem:[#allocation4 + $0x89]]
    %v4040 = vstv %s4039
    %v4041 = vmul.f32 %v3834, %v4040
    %v4042 = vmul.f32 %v3835, %v4040
    %4045 = vrot.lane.b32.xlu0 %v4041, 126
    %v4046 = vpop.permute.xlu0 %4045
    %4047 = vrot.lane.b32.xlu0 %v4042, 126
    %v4048 = vpop.permute.xlu0 %4047
    %v4051 = vadd.f32 %v3939, %v4046
    %v4052 = vadd.f32 %v3940, %v4048
    %s4053 = sld [smem:[#allocation4 + $0xad]]
    %v4054 = vstv %s4053
    %v4055 = vmul.f32 %v3834, %v4054
    %v4056 = vmul.f32 %v3835, %v4054
    %4059 = vrot.lane.b32.xlu0 %v4055, 126
    %v4060 = vpop.permute.xlu0 %4059
    %4061 = vrot.lane.b32.xlu0 %v4056, 126
    %v4062 = vpop.permute.xlu0 %4061
    %v4065 = vadd.f32 %v3953, %v4060
    %v4066 = vadd.f32 %v3954, %v4062
    %s4067 = sld [smem:[#allocation4 + $0xd1]]
    %v4068 = vstv %s4067
    %v4069 = vmul.f32 %v3834, %v4068
    %v4070 = vmul.f32 %v3835, %v4068
    %4073 = vrot.lane.b32.xlu0 %v4069, 126
    %v4074 = vpop.permute.xlu0 %4073
    %4075 = vrot.lane.b32.xlu0 %v4070, 126
    %v4076 = vpop.permute.xlu0 %4075
    %v4079 = vadd.f32 %v3967, %v4074
    %v4080 = vadd.f32 %v3968, %v4076
    %s4081 = sld [smem:[#allocation4 + $0xf5]]
    %v4082 = vstv %s4081
    %v4083 = vmul.f32 %v3834, %v4082
    %v4084 = vmul.f32 %v3835, %v4082
    %4087 = vrot.lane.b32.xlu0 %v4083, 126
    %v4088 = vpop.permute.xlu0 %4087
    %4089 = vrot.lane.b32.xlu0 %v4084, 126
    %v4090 = vpop.permute.xlu0 %4089
    %v4093 = vadd.f32 %v3981, %v4088
    %v4094 = vadd.f32 %v3982, %v4090
    %s4095 = sld [smem:[#allocation4 + $0x119]]
    %v4096 = vstv %s4095
    %v4097 = vmul.f32 %v3834, %v4096
    %v4098 = vmul.f32 %v3835, %v4096
    %4101 = vrot.lane.b32.xlu0 %v4097, 126
    %v4102 = vpop.permute.xlu0 %4101
    %4103 = vrot.lane.b32.xlu0 %v4098, 126
    %v4104 = vpop.permute.xlu0 %4103
    %v4107 = vadd.f32 %v3995, %v4102
    %v4108 = vadd.f32 %v3996, %v4104
    %s4109 = sld [smem:[#allocation4 + $0x1e]]
    %v4110 = vstv %s4109
    %v4111 = vmul.f32 %v3834, %v4110
    %v4112 = vmul.f32 %v3835, %v4110
    %v4113 = vmul.f32 %v3836, %v4110
    %v4117 = vrot.slane %v4111, 1
    %v4118 = vrot.slane %v4112, 1
    %v4119 = vsel %vm455, %v4117, %v4118
    %v4120 = vrot.slane %v4113, 1
    %v4121 = vsel %vm455, %v4118, %v4120
    %v4124 = vadd.f32 %v4009, %v4119
    %v4125 = vadd.f32 %v4010, %v4121
    %s4126 = sld [smem:[#allocation4 + $0x42]]
    %v4127 = vstv %s4126
    %v4128 = vmul.f32 %v3834, %v4127
    %v4129 = vmul.f32 %v3835, %v4127
    %v4130 = vmul.f32 %v3836, %v4127
    %v4134 = vrot.slane %v4128, 1
    %v4135 = vrot.slane %v4129, 1
    %v4136 = vsel %vm455, %v4134, %v4135
    %v4137 = vrot.slane %v4130, 1
    %v4138 = vsel %vm455, %v4135, %v4137
    %v4141 = vadd.f32 %v4023, %v4136
    %v4142 = vadd.f32 %v4024, %v4138
    %s4143 = sld [smem:[#allocation4 + $0x66]]
    %v4144 = vstv %s4143
    %v4145 = vmul.f32 %v3834, %v4144
    %v4146 = vmul.f32 %v3835, %v4144
    %v4147 = vmul.f32 %v3836, %v4144
    %v4151 = vrot.slane %v4145, 1
    %v4152 = vrot.slane %v4146, 1
    %v4153 = vsel %vm455, %v4151, %v4152
    %v4154 = vrot.slane %v4147, 1
    %v4155 = vsel %vm455, %v4152, %v4154
    %v4158 = vadd.f32 %v4037, %v4153
    %v4159 = vadd.f32 %v4038, %v4155
    %s4160 = sld [smem:[#allocation4 + $0x8a]]
    %v4161 = vstv %s4160
    %v4162 = vmul.f32 %v3834, %v4161
    %v4163 = vmul.f32 %v3835, %v4161
    %v4164 = vmul.f32 %v3836, %v4161
    %v4168 = vrot.slane %v4162, 1
    %v4169 = vrot.slane %v4163, 1
    %v4170 = vsel %vm455, %v4168, %v4169
    %v4171 = vrot.slane %v4164, 1
    %v4172 = vsel %vm455, %v4169, %v4171
    %v4175 = vadd.f32 %v4051, %v4170
    %v4176 = vadd.f32 %v4052, %v4172
    %s4177 = sld [smem:[#allocation4 + $0xae]]
    %v4178 = vstv %s4177
    %v4179 = vmul.f32 %v3834, %v4178
    %v4180 = vmul.f32 %v3835, %v4178
    %v4181 = vmul.f32 %v3836, %v4178
    %v4185 = vrot.slane %v4179, 1
    %v4186 = vrot.slane %v4180, 1
    %v4187 = vsel %vm455, %v4185, %v4186
    %v4188 = vrot.slane %v4181, 1
    %v4189 = vsel %vm455, %v4186, %v4188
    %v4192 = vadd.f32 %v4065, %v4187
    %v4193 = vadd.f32 %v4066, %v4189
    %s4194 = sld [smem:[#allocation4 + $0xd2]]
    %v4195 = vstv %s4194
    %v4196 = vmul.f32 %v3834, %v4195
    %v4197 = vmul.f32 %v3835, %v4195
    %v4198 = vmul.f32 %v3836, %v4195
    %v4202 = vrot.slane %v4196, 1
    %v4203 = vrot.slane %v4197, 1
    %v4204 = vsel %vm455, %v4202, %v4203
    %v4205 = vrot.slane %v4198, 1
    %v4206 = vsel %vm455, %v4203, %v4205
    %v4209 = vadd.f32 %v4079, %v4204
    %v4210 = vadd.f32 %v4080, %v4206
    %s4211 = sld [smem:[#allocation4 + $0xf6]]
    %v4212 = vstv %s4211
    %v4213 = vmul.f32 %v3834, %v4212
    %v4214 = vmul.f32 %v3835, %v4212
    %v4215 = vmul.f32 %v3836, %v4212
    %v4219 = vrot.slane %v4213, 1
    %v4220 = vrot.slane %v4214, 1
    %v4221 = vsel %vm455, %v4219, %v4220
    %v4222 = vrot.slane %v4215, 1
    %v4223 = vsel %vm455, %v4220, %v4222
    %v4226 = vadd.f32 %v4093, %v4221
    %v4227 = vadd.f32 %v4094, %v4223
    %s4228 = sld [smem:[#allocation4 + $0x11a]]
    %v4229 = vstv %s4228
    %v4230 = vmul.f32 %v3834, %v4229
    %v4231 = vmul.f32 %v3835, %v4229
    %v4232 = vmul.f32 %v3836, %v4229
    %v4236 = vrot.slane %v4230, 1
    %v4237 = vrot.slane %v4231, 1
    %v4238 = vsel %vm455, %v4236, %v4237
    %v4239 = vrot.slane %v4232, 1
    %v4240 = vsel %vm455, %v4237, %v4239
    %v4243 = vadd.f32 %v4107, %v4238
    %v4244 = vadd.f32 %v4108, %v4240
    %s4245 = sld [smem:[#allocation4 + $0x1f]]
    %v4246 = vstv %s4245
    %v4247 = vmul.f32 %v3834, %v4246
    %v4248 = vmul.f32 %v3835, %v4246
    %v4249 = vmul.f32 %v3836, %v4246
    %v4253 = vrot.slane %v4247, 1
    %v4254 = vrot.slane %v4248, 1
    %v4255 = vsel %vm455, %v4253, %v4254
    %v4256 = vrot.slane %v4249, 1
    %v4257 = vsel %vm455, %v4254, %v4256
    %4258 = vrot.lane.b32.xlu0 %v4255, 127
    %v4259 = vpop.permute.xlu0 %4258
    %4260 = vrot.lane.b32.xlu0 %v4257, 127
    %v4261 = vpop.permute.xlu0 %4260
    %v4264 = vadd.f32 %v4124, %v4259
    %v4265 = vadd.f32 %v4125, %v4261
    %s4266 = sld [smem:[#allocation4 + $0x43]]
    %v4267 = vstv %s4266
    %v4268 = vmul.f32 %v3834, %v4267
    %v4269 = vmul.f32 %v3835, %v4267
    %v4270 = vmul.f32 %v3836, %v4267
    %v4274 = vrot.slane %v4268, 1
    %v4275 = vrot.slane %v4269, 1
    %v4276 = vsel %vm455, %v4274, %v4275
    %v4277 = vrot.slane %v4270, 1
    %v4278 = vsel %vm455, %v4275, %v4277
    %4279 = vrot.lane.b32.xlu0 %v4276, 127
    %v4280 = vpop.permute.xlu0 %4279
    %4281 = vrot.lane.b32.xlu0 %v4278, 127
    %v4282 = vpop.permute.xlu0 %4281
    %v4285 = vadd.f32 %v4141, %v4280
    %v4286 = vadd.f32 %v4142, %v4282
    %s4287 = sld [smem:[#allocation4 + $0x67]]
    %v4288 = vstv %s4287
    %v4289 = vmul.f32 %v3834, %v4288
    %v4290 = vmul.f32 %v3835, %v4288
    %v4291 = vmul.f32 %v3836, %v4288
    %v4295 = vrot.slane %v4289, 1
    %v4296 = vrot.slane %v4290, 1
    %v4297 = vsel %vm455, %v4295, %v4296
    %v4298 = vrot.slane %v4291, 1
    %v4299 = vsel %vm455, %v4296, %v4298
    %4300 = vrot.lane.b32.xlu0 %v4297, 127
    %v4301 = vpop.permute.xlu0 %4300
    %4302 = vrot.lane.b32.xlu0 %v4299, 127
    %v4303 = vpop.permute.xlu0 %4302
    %v4306 = vadd.f32 %v4158, %v4301
    %v4307 = vadd.f32 %v4159, %v4303
    %s4308 = sld [smem:[#allocation4 + $0x8b]]
    %v4309 = vstv %s4308
    %v4310 = vmul.f32 %v3834, %v4309
    %v4311 = vmul.f32 %v3835, %v4309
    %v4312 = vmul.f32 %v3836, %v4309
    %v4316 = vrot.slane %v4310, 1
    %v4317 = vrot.slane %v4311, 1
    %v4318 = vsel %vm455, %v4316, %v4317
    %v4319 = vrot.slane %v4312, 1
    %v4320 = vsel %vm455, %v4317, %v4319
    %4321 = vrot.lane.b32.xlu0 %v4318, 127
    %v4322 = vpop.permute.xlu0 %4321
    %4323 = vrot.lane.b32.xlu0 %v4320, 127
    %v4324 = vpop.permute.xlu0 %4323
    %v4327 = vadd.f32 %v4175, %v4322
    %v4328 = vadd.f32 %v4176, %v4324
    %s4329 = sld [smem:[#allocation4 + $0xaf]]
    %v4330 = vstv %s4329
    %v4331 = vmul.f32 %v3834, %v4330
    %v4332 = vmul.f32 %v3835, %v4330
    %v4333 = vmul.f32 %v3836, %v4330
    %v4337 = vrot.slane %v4331, 1
    %v4338 = vrot.slane %v4332, 1
    %v4339 = vsel %vm455, %v4337, %v4338
    %v4340 = vrot.slane %v4333, 1
    %v4341 = vsel %vm455, %v4338, %v4340
    %4342 = vrot.lane.b32.xlu0 %v4339, 127
    %v4343 = vpop.permute.xlu0 %4342
    %4344 = vrot.lane.b32.xlu0 %v4341, 127
    %v4345 = vpop.permute.xlu0 %4344
    %v4348 = vadd.f32 %v4192, %v4343
    %v4349 = vadd.f32 %v4193, %v4345
    %s4350 = sld [smem:[#allocation4 + $0xd3]]
    %v4351 = vstv %s4350
    %v4352 = vmul.f32 %v3834, %v4351
    %v4353 = vmul.f32 %v3835, %v4351
    %v4354 = vmul.f32 %v3836, %v4351
    %v4358 = vrot.slane %v4352, 1
    %v4359 = vrot.slane %v4353, 1
    %v4360 = vsel %vm455, %v4358, %v4359
    %v4361 = vrot.slane %v4354, 1
    %v4362 = vsel %vm455, %v4359, %v4361
    %4363 = vrot.lane.b32.xlu0 %v4360, 127
    %v4364 = vpop.permute.xlu0 %4363
    %4365 = vrot.lane.b32.xlu0 %v4362, 127
    %v4366 = vpop.permute.xlu0 %4365
    %v4369 = vadd.f32 %v4209, %v4364
    %v4370 = vadd.f32 %v4210, %v4366
    %s4371 = sld [smem:[#allocation4 + $0xf7]]
    %v4372 = vstv %s4371
    %v4373 = vmul.f32 %v3834, %v4372
    %v4374 = vmul.f32 %v3835, %v4372
    %v4375 = vmul.f32 %v3836, %v4372
    %v4379 = vrot.slane %v4373, 1
    %v4380 = vrot.slane %v4374, 1
    %v4381 = vsel %vm455, %v4379, %v4380
    %v4382 = vrot.slane %v4375, 1
    %v4383 = vsel %vm455, %v4380, %v4382
    %4384 = vrot.lane.b32.xlu0 %v4381, 127
    %v4385 = vpop.permute.xlu0 %4384
    %4386 = vrot.lane.b32.xlu0 %v4383, 127
    %v4387 = vpop.permute.xlu0 %4386
    %v4390 = vadd.f32 %v4226, %v4385
    %v4391 = vadd.f32 %v4227, %v4387
    %s4392 = sld [smem:[#allocation4 + $0x11b]]
    %v4393 = vstv %s4392
    %v4394 = vmul.f32 %v3834, %v4393
    %v4395 = vmul.f32 %v3835, %v4393
    %v4396 = vmul.f32 %v3836, %v4393
    %v4400 = vrot.slane %v4394, 1
    %v4401 = vrot.slane %v4395, 1
    %v4402 = vsel %vm455, %v4400, %v4401
    %v4403 = vrot.slane %v4396, 1
    %v4404 = vsel %vm455, %v4401, %v4403
    %4405 = vrot.lane.b32.xlu0 %v4402, 127
    %v4406 = vpop.permute.xlu0 %4405
    %4407 = vrot.lane.b32.xlu0 %v4404, 127
    %v4408 = vpop.permute.xlu0 %4407
    %v4411 = vadd.f32 %v4243, %v4406
    %v4412 = vadd.f32 %v4244, %v4408
    %s4413 = sld [smem:[#allocation4 + $0x20]]
    %v4414 = vstv %s4413
    %v4415 = vmul.f32 %v3834, %v4414
    %v4416 = vmul.f32 %v3835, %v4414
    %v4417 = vmul.f32 %v3836, %v4414
    %v4421 = vrot.slane %v4415, 1
    %v4422 = vrot.slane %v4416, 1
    %v4423 = vsel %vm455, %v4421, %v4422
    %v4424 = vrot.slane %v4417, 1
    %v4425 = vsel %vm455, %v4422, %v4424
    %4426 = vrot.lane.b32.xlu0 %v4423, 126
    %v4427 = vpop.permute.xlu0 %4426
    %4428 = vrot.lane.b32.xlu0 %v4425, 126
    %v4429 = vpop.permute.xlu0 %4428
    %v4432 = vadd.f32 %v4264, %v4427
    %v4433 = vadd.f32 %v4265, %v4429
    %s4434 = sld [smem:[#allocation4 + $0x44]]
    %v4435 = vstv %s4434
    %v4436 = vmul.f32 %v3834, %v4435
    %v4437 = vmul.f32 %v3835, %v4435
    %v4438 = vmul.f32 %v3836, %v4435
    %v4442 = vrot.slane %v4436, 1
    %v4443 = vrot.slane %v4437, 1
    %v4444 = vsel %vm455, %v4442, %v4443
    %v4445 = vrot.slane %v4438, 1
    %v4446 = vsel %vm455, %v4443, %v4445
    %4447 = vrot.lane.b32.xlu0 %v4444, 126
    %v4448 = vpop.permute.xlu0 %4447
    %4449 = vrot.lane.b32.xlu0 %v4446, 126
    %v4450 = vpop.permute.xlu0 %4449
    %v4453 = vadd.f32 %v4285, %v4448
    %v4454 = vadd.f32 %v4286, %v4450
    %s4455 = sld [smem:[#allocation4 + $0x68]]
    %v4456 = vstv %s4455
    %v4457 = vmul.f32 %v3834, %v4456
    %v4458 = vmul.f32 %v3835, %v4456
    %v4459 = vmul.f32 %v3836, %v4456
    %v4463 = vrot.slane %v4457, 1
    %v4464 = vrot.slane %v4458, 1
    %v4465 = vsel %vm455, %v4463, %v4464
    %v4466 = vrot.slane %v4459, 1
    %v4467 = vsel %vm455, %v4464, %v4466
    %4468 = vrot.lane.b32.xlu0 %v4465, 126
    %v4469 = vpop.permute.xlu0 %4468
    %4470 = vrot.lane.b32.xlu0 %v4467, 126
    %v4471 = vpop.permute.xlu0 %4470
    %v4474 = vadd.f32 %v4306, %v4469
    %v4475 = vadd.f32 %v4307, %v4471
    %s4476 = sld [smem:[#allocation4 + $0x8c]]
    %v4477 = vstv %s4476
    %v4478 = vmul.f32 %v3834, %v4477
    %v4479 = vmul.f32 %v3835, %v4477
    %v4480 = vmul.f32 %v3836, %v4477
    %v4484 = vrot.slane %v4478, 1
    %v4485 = vrot.slane %v4479, 1
    %v4486 = vsel %vm455, %v4484, %v4485
    %v4487 = vrot.slane %v4480, 1
    %v4488 = vsel %vm455, %v4485, %v4487
    %4489 = vrot.lane.b32.xlu0 %v4486, 126
    %v4490 = vpop.permute.xlu0 %4489
    %4491 = vrot.lane.b32.xlu0 %v4488, 126
    %v4492 = vpop.permute.xlu0 %4491
    %v4495 = vadd.f32 %v4327, %v4490
    %v4496 = vadd.f32 %v4328, %v4492
    %s4497 = sld [smem:[#allocation4 + $0xb0]]
    %v4498 = vstv %s4497
    %v4499 = vmul.f32 %v3834, %v4498
    %v4500 = vmul.f32 %v3835, %v4498
    %v4501 = vmul.f32 %v3836, %v4498
    %v4505 = vrot.slane %v4499, 1
    %v4506 = vrot.slane %v4500, 1
    %v4507 = vsel %vm455, %v4505, %v4506
    %v4508 = vrot.slane %v4501, 1
    %v4509 = vsel %vm455, %v4506, %v4508
    %4510 = vrot.lane.b32.xlu0 %v4507, 126
    %v4511 = vpop.permute.xlu0 %4510
    %4512 = vrot.lane.b32.xlu0 %v4509, 126
    %v4513 = vpop.permute.xlu0 %4512
    %v4516 = vadd.f32 %v4348, %v4511
    %v4517 = vadd.f32 %v4349, %v4513
    %s4518 = sld [smem:[#allocation4 + $0xd4]]
    %v4519 = vstv %s4518
    %v4520 = vmul.f32 %v3834, %v4519
    %v4521 = vmul.f32 %v3835, %v4519
    %v4522 = vmul.f32 %v3836, %v4519
    %v4526 = vrot.slane %v4520, 1
    %v4527 = vrot.slane %v4521, 1
    %v4528 = vsel %vm455, %v4526, %v4527
    %v4529 = vrot.slane %v4522, 1
    %v4530 = vsel %vm455, %v4527, %v4529
    %4531 = vrot.lane.b32.xlu0 %v4528, 126
    %v4532 = vpop.permute.xlu0 %4531
    %4533 = vrot.lane.b32.xlu0 %v4530, 126
    %v4534 = vpop.permute.xlu0 %4533
    %v4537 = vadd.f32 %v4369, %v4532
    %v4538 = vadd.f32 %v4370, %v4534
    %s4539 = sld [smem:[#allocation4 + $0xf8]]
    %v4540 = vstv %s4539
    %v4541 = vmul.f32 %v3834, %v4540
    %v4542 = vmul.f32 %v3835, %v4540
    %v4543 = vmul.f32 %v3836, %v4540
    %v4547 = vrot.slane %v4541, 1
    %v4548 = vrot.slane %v4542, 1
    %v4549 = vsel %vm455, %v4547, %v4548
    %v4550 = vrot.slane %v4543, 1
    %v4551 = vsel %vm455, %v4548, %v4550
    %4552 = vrot.lane.b32.xlu0 %v4549, 126
    %v4553 = vpop.permute.xlu0 %4552
    %4554 = vrot.lane.b32.xlu0 %v4551, 126
    %v4555 = vpop.permute.xlu0 %4554
    %v4558 = vadd.f32 %v4390, %v4553
    %v4559 = vadd.f32 %v4391, %v4555
    %s4560 = sld [smem:[#allocation4 + $0x11c]]
    %v4561 = vstv %s4560
    %v4562 = vmul.f32 %v3834, %v4561
    %v4563 = vmul.f32 %v3835, %v4561
    %v4564 = vmul.f32 %v3836, %v4561
    %v4568 = vrot.slane %v4562, 1
    %v4569 = vrot.slane %v4563, 1
    %v4570 = vsel %vm455, %v4568, %v4569
    %v4571 = vrot.slane %v4564, 1
    %v4572 = vsel %vm455, %v4569, %v4571
    %4573 = vrot.lane.b32.xlu0 %v4570, 126
    %v4574 = vpop.permute.xlu0 %4573
    %4575 = vrot.lane.b32.xlu0 %v4572, 126
    %v4576 = vpop.permute.xlu0 %4575
    %v4579 = vadd.f32 %v4411, %v4574
    %v4580 = vadd.f32 %v4412, %v4576
    %s4581 = sld [smem:[#allocation4 + $0x21]]
    %v4582 = vstv %s4581
    %v4583 = vmul.f32 %v3834, %v4582
    %v4584 = vmul.f32 %v3835, %v4582
    %v4585 = vmul.f32 %v3836, %v4582
    %v4589 = vrot.slane %v4583, 2
    %v4590 = vrot.slane %v4584, 2
    %v4591 = vsel %vm928, %v4589, %v4590
    %v4592 = vrot.slane %v4585, 2
    %v4593 = vsel %vm928, %v4590, %v4592
    %v4596 = vadd.f32 %v4432, %v4591
    %v4597 = vadd.f32 %v4433, %v4593
    %s4598 = sld [smem:[#allocation4 + $0x45]]
    %v4599 = vstv %s4598
    %v4600 = vmul.f32 %v3834, %v4599
    %v4601 = vmul.f32 %v3835, %v4599
    %v4602 = vmul.f32 %v3836, %v4599
    %v4606 = vrot.slane %v4600, 2
    %v4607 = vrot.slane %v4601, 2
    %v4608 = vsel %vm928, %v4606, %v4607
    %v4609 = vrot.slane %v4602, 2
    %v4610 = vsel %vm928, %v4607, %v4609
    %v4613 = vadd.f32 %v4453, %v4608
    %v4614 = vadd.f32 %v4454, %v4610
    %s4615 = sld [smem:[#allocation4 + $0x69]]
    %v4616 = vstv %s4615
    %v4617 = vmul.f32 %v3834, %v4616
    %v4618 = vmul.f32 %v3835, %v4616
    %v4619 = vmul.f32 %v3836, %v4616
    %v4623 = vrot.slane %v4617, 2
    %v4624 = vrot.slane %v4618, 2
    %v4625 = vsel %vm928, %v4623, %v4624
    %v4626 = vrot.slane %v4619, 2
    %v4627 = vsel %vm928, %v4624, %v4626
    %v4630 = vadd.f32 %v4474, %v4625
    %v4631 = vadd.f32 %v4475, %v4627
    %s4632 = sld [smem:[#allocation4 + $0x8d]]
    %v4633 = vstv %s4632
    %v4634 = vmul.f32 %v3834, %v4633
    %v4635 = vmul.f32 %v3835, %v4633
    %v4636 = vmul.f32 %v3836, %v4633
    %v4640 = vrot.slane %v4634, 2
    %v4641 = vrot.slane %v4635, 2
    %v4642 = vsel %vm928, %v4640, %v4641
    %v4643 = vrot.slane %v4636, 2
    %v4644 = vsel %vm928, %v4641, %v4643
    %v4647 = vadd.f32 %v4495, %v4642
    %v4648 = vadd.f32 %v4496, %v4644
    %s4649 = sld [smem:[#allocation4 + $0xb1]]
    %v4650 = vstv %s4649
    %v4651 = vmul.f32 %v3834, %v4650
    %v4652 = vmul.f32 %v3835, %v4650
    %v4653 = vmul.f32 %v3836, %v4650
    %v4657 = vrot.slane %v4651, 2
    %v4658 = vrot.slane %v4652, 2
    %v4659 = vsel %vm928, %v4657, %v4658
    %v4660 = vrot.slane %v4653, 2
    %v4661 = vsel %vm928, %v4658, %v4660
    %v4664 = vadd.f32 %v4516, %v4659
    %v4665 = vadd.f32 %v4517, %v4661
    %s4666 = sld [smem:[#allocation4 + $0xd5]]
    %v4667 = vstv %s4666
    %v4668 = vmul.f32 %v3834, %v4667
    %v4669 = vmul.f32 %v3835, %v4667
    %v4670 = vmul.f32 %v3836, %v4667
    %v4674 = vrot.slane %v4668, 2
    %v4675 = vrot.slane %v4669, 2
    %v4676 = vsel %vm928, %v4674, %v4675
    %v4677 = vrot.slane %v4670, 2
    %v4678 = vsel %vm928, %v4675, %v4677
    %v4681 = vadd.f32 %v4537, %v4676
    %v4682 = vadd.f32 %v4538, %v4678
    %s4683 = sld [smem:[#allocation4 + $0xf9]]
    %v4684 = vstv %s4683
    %v4685 = vmul.f32 %v3834, %v4684
    %v4686 = vmul.f32 %v3835, %v4684
    %v4687 = vmul.f32 %v3836, %v4684
    %v4691 = vrot.slane %v4685, 2
    %v4692 = vrot.slane %v4686, 2
    %v4693 = vsel %vm928, %v4691, %v4692
    %v4694 = vrot.slane %v4687, 2
    %v4695 = vsel %vm928, %v4692, %v4694
    %v4698 = vadd.f32 %v4558, %v4693
    %v4699 = vadd.f32 %v4559, %v4695
    %s4700 = sld [smem:[#allocation4 + $0x11d]]
    %v4701 = vstv %s4700
    %v4702 = vmul.f32 %v3834, %v4701
    %v4703 = vmul.f32 %v3835, %v4701
    %v4704 = vmul.f32 %v3836, %v4701
    %v4708 = vrot.slane %v4702, 2
    %v4709 = vrot.slane %v4703, 2
    %v4710 = vsel %vm928, %v4708, %v4709
    %v4711 = vrot.slane %v4704, 2
    %v4712 = vsel %vm928, %v4709, %v4711
    %v4715 = vadd.f32 %v4579, %v4710
    %v4716 = vadd.f32 %v4580, %v4712
    %s4717 = sld [smem:[#allocation4 + $0x22]]
    %v4718 = vstv %s4717
    %v4719 = vmul.f32 %v3834, %v4718
    %v4720 = vmul.f32 %v3835, %v4718
    %v4721 = vmul.f32 %v3836, %v4718
    %v4725 = vrot.slane %v4719, 2
    %v4726 = vrot.slane %v4720, 2
    %v4727 = vsel %vm928, %v4725, %v4726
    %v4728 = vrot.slane %v4721, 2
    %v4729 = vsel %vm928, %v4726, %v4728
    %4730 = vrot.lane.b32.xlu0 %v4727, 127
    %v4731 = vpop.permute.xlu0 %4730
    %4732 = vrot.lane.b32.xlu0 %v4729, 127
    %v4733 = vpop.permute.xlu0 %4732
    %v4736 = vadd.f32 %v4596, %v4731
    %v4737 = vadd.f32 %v4597, %v4733
    %s4738 = sld [smem:[#allocation4 + $0x46]]
    %v4739 = vstv %s4738
    %v4740 = vmul.f32 %v3834, %v4739
    %v4741 = vmul.f32 %v3835, %v4739
    %v4742 = vmul.f32 %v3836, %v4739
    %v4746 = vrot.slane %v4740, 2
    %v4747 = vrot.slane %v4741, 2
    %v4748 = vsel %vm928, %v4746, %v4747
    %v4749 = vrot.slane %v4742, 2
    %v4750 = vsel %vm928, %v4747, %v4749
    %4751 = vrot.lane.b32.xlu0 %v4748, 127
    %v4752 = vpop.permute.xlu0 %4751
    %4753 = vrot.lane.b32.xlu0 %v4750, 127
    %v4754 = vpop.permute.xlu0 %4753
    %v4757 = vadd.f32 %v4613, %v4752
    %v4758 = vadd.f32 %v4614, %v4754
    %s4759 = sld [smem:[#allocation4 + $0x6a]]
    %v4760 = vstv %s4759
    %v4761 = vmul.f32 %v3834, %v4760
    %v4762 = vmul.f32 %v3835, %v4760
    %v4763 = vmul.f32 %v3836, %v4760
    %v4767 = vrot.slane %v4761, 2
    %v4768 = vrot.slane %v4762, 2
    %v4769 = vsel %vm928, %v4767, %v4768
    %v4770 = vrot.slane %v4763, 2
    %v4771 = vsel %vm928, %v4768, %v4770
    %4772 = vrot.lane.b32.xlu0 %v4769, 127
    %v4773 = vpop.permute.xlu0 %4772
    %4774 = vrot.lane.b32.xlu0 %v4771, 127
    %v4775 = vpop.permute.xlu0 %4774
    %v4778 = vadd.f32 %v4630, %v4773
    %v4779 = vadd.f32 %v4631, %v4775
    %s4780 = sld [smem:[#allocation4 + $0x8e]]
    %v4781 = vstv %s4780
    %v4782 = vmul.f32 %v3834, %v4781
    %v4783 = vmul.f32 %v3835, %v4781
    %v4784 = vmul.f32 %v3836, %v4781
    %v4788 = vrot.slane %v4782, 2
    %v4789 = vrot.slane %v4783, 2
    %v4790 = vsel %vm928, %v4788, %v4789
    %v4791 = vrot.slane %v4784, 2
    %v4792 = vsel %vm928, %v4789, %v4791
    %4793 = vrot.lane.b32.xlu0 %v4790, 127
    %v4794 = vpop.permute.xlu0 %4793
    %4795 = vrot.lane.b32.xlu0 %v4792, 127
    %v4796 = vpop.permute.xlu0 %4795
    %v4799 = vadd.f32 %v4647, %v4794
    %v4800 = vadd.f32 %v4648, %v4796
    %s4801 = sld [smem:[#allocation4 + $0xb2]]
    %v4802 = vstv %s4801
    %v4803 = vmul.f32 %v3834, %v4802
    %v4804 = vmul.f32 %v3835, %v4802
    %v4805 = vmul.f32 %v3836, %v4802
    %v4809 = vrot.slane %v4803, 2
    %v4810 = vrot.slane %v4804, 2
    %v4811 = vsel %vm928, %v4809, %v4810
    %v4812 = vrot.slane %v4805, 2
    %v4813 = vsel %vm928, %v4810, %v4812
    %4814 = vrot.lane.b32.xlu0 %v4811, 127
    %v4815 = vpop.permute.xlu0 %4814
    %4816 = vrot.lane.b32.xlu0 %v4813, 127
    %v4817 = vpop.permute.xlu0 %4816
    %v4820 = vadd.f32 %v4664, %v4815
    %v4821 = vadd.f32 %v4665, %v4817
    %s4822 = sld [smem:[#allocation4 + $0xd6]]
    %v4823 = vstv %s4822
    %v4824 = vmul.f32 %v3834, %v4823
    %v4825 = vmul.f32 %v3835, %v4823
    %v4826 = vmul.f32 %v3836, %v4823
    %v4830 = vrot.slane %v4824, 2
    %v4831 = vrot.slane %v4825, 2
    %v4832 = vsel %vm928, %v4830, %v4831
    %v4833 = vrot.slane %v4826, 2
    %v4834 = vsel %vm928, %v4831, %v4833
    %4835 = vrot.lane.b32.xlu0 %v4832, 127
    %v4836 = vpop.permute.xlu0 %4835
    %4837 = vrot.lane.b32.xlu0 %v4834, 127
    %v4838 = vpop.permute.xlu0 %4837
    %v4841 = vadd.f32 %v4681, %v4836
    %v4842 = vadd.f32 %v4682, %v4838
    %s4843 = sld [smem:[#allocation4 + $0xfa]]
    %v4844 = vstv %s4843
    %v4845 = vmul.f32 %v3834, %v4844
    %v4846 = vmul.f32 %v3835, %v4844
    %v4847 = vmul.f32 %v3836, %v4844
    %v4851 = vrot.slane %v4845, 2
    %v4852 = vrot.slane %v4846, 2
    %v4853 = vsel %vm928, %v4851, %v4852
    %v4854 = vrot.slane %v4847, 2
    %v4855 = vsel %vm928, %v4852, %v4854
    %4856 = vrot.lane.b32.xlu0 %v4853, 127
    %v4857 = vpop.permute.xlu0 %4856
    %4858 = vrot.lane.b32.xlu0 %v4855, 127
    %v4859 = vpop.permute.xlu0 %4858
    %v4862 = vadd.f32 %v4698, %v4857
    %v4863 = vadd.f32 %v4699, %v4859
    %s4864 = sld [smem:[#allocation4 + $0x11e]]
    %v4865 = vstv %s4864
    %v4866 = vmul.f32 %v3834, %v4865
    %v4867 = vmul.f32 %v3835, %v4865
    %v4868 = vmul.f32 %v3836, %v4865
    %v4872 = vrot.slane %v4866, 2
    %v4873 = vrot.slane %v4867, 2
    %v4874 = vsel %vm928, %v4872, %v4873
    %v4875 = vrot.slane %v4868, 2
    %v4876 = vsel %vm928, %v4873, %v4875
    %4877 = vrot.lane.b32.xlu0 %v4874, 127
    %v4878 = vpop.permute.xlu0 %4877
    %4879 = vrot.lane.b32.xlu0 %v4876, 127
    %v4880 = vpop.permute.xlu0 %4879
    %v4883 = vadd.f32 %v4715, %v4878
    %v4884 = vadd.f32 %v4716, %v4880
    %s4885 = sld [smem:[#allocation4 + $0x23]]
    %v4886 = vstv %s4885
    %v4887 = vmul.f32 %v3834, %v4886
    %v4888 = vmul.f32 %v3835, %v4886
    %v4889 = vmul.f32 %v3836, %v4886
    %v4893 = vrot.slane %v4887, 2
    %v4894 = vrot.slane %v4888, 2
    %v4895 = vsel %vm928, %v4893, %v4894
    %v4896 = vrot.slane %v4889, 2
    %v4897 = vsel %vm928, %v4894, %v4896
    %4898 = vrot.lane.b32.xlu0 %v4895, 126
    %v4899 = vpop.permute.xlu0 %4898
    %4900 = vrot.lane.b32.xlu0 %v4897, 126
    %v4901 = vpop.permute.xlu0 %4900
    %v4904 = vadd.f32 %v4736, %v4899
    %v4905 = vadd.f32 %v4737, %v4901
    %s4906 = sld [smem:[#allocation4 + $0x47]]
    %v4907 = vstv %s4906
    %v4908 = vmul.f32 %v3834, %v4907
    %v4909 = vmul.f32 %v3835, %v4907
    %v4910 = vmul.f32 %v3836, %v4907
    %v4914 = vrot.slane %v4908, 2
    %v4915 = vrot.slane %v4909, 2
    %v4916 = vsel %vm928, %v4914, %v4915
    %v4917 = vrot.slane %v4910, 2
    %v4918 = vsel %vm928, %v4915, %v4917
    %4919 = vrot.lane.b32.xlu0 %v4916, 126
    %v4920 = vpop.permute.xlu0 %4919
    %4921 = vrot.lane.b32.xlu0 %v4918, 126
    %v4922 = vpop.permute.xlu0 %4921
    %v4925 = vadd.f32 %v4757, %v4920
    %v4926 = vadd.f32 %v4758, %v4922
    %s4927 = sld [smem:[#allocation4 + $0x6b]]
    %v4928 = vstv %s4927
    %v4929 = vmul.f32 %v3834, %v4928
    %v4930 = vmul.f32 %v3835, %v4928
    %v4931 = vmul.f32 %v3836, %v4928
    %v4935 = vrot.slane %v4929, 2
    %v4936 = vrot.slane %v4930, 2
    %v4937 = vsel %vm928, %v4935, %v4936
    %v4938 = vrot.slane %v4931, 2
    %v4939 = vsel %vm928, %v4936, %v4938
    %4940 = vrot.lane.b32.xlu0 %v4937, 126
    %v4941 = vpop.permute.xlu0 %4940
    %4942 = vrot.lane.b32.xlu0 %v4939, 126
    %v4943 = vpop.permute.xlu0 %4942
    %v4946 = vadd.f32 %v4778, %v4941
    %v4947 = vadd.f32 %v4779, %v4943
    %s4948 = sld [smem:[#allocation4 + $0x8f]]
    %v4949 = vstv %s4948
    %v4950 = vmul.f32 %v3834, %v4949
    %v4951 = vmul.f32 %v3835, %v4949
    %v4952 = vmul.f32 %v3836, %v4949
    %v4956 = vrot.slane %v4950, 2
    %v4957 = vrot.slane %v4951, 2
    %v4958 = vsel %vm928, %v4956, %v4957
    %v4959 = vrot.slane %v4952, 2
    %v4960 = vsel %vm928, %v4957, %v4959
    %4961 = vrot.lane.b32.xlu0 %v4958, 126
    %v4962 = vpop.permute.xlu0 %4961
    %4963 = vrot.lane.b32.xlu0 %v4960, 126
    %v4964 = vpop.permute.xlu0 %4963
    %v4967 = vadd.f32 %v4799, %v4962
    %v4968 = vadd.f32 %v4800, %v4964
    %s4969 = sld [smem:[#allocation4 + $0xb3]]
    %v4970 = vstv %s4969
    %v4971 = vmul.f32 %v3834, %v4970
    %v4972 = vmul.f32 %v3835, %v4970
    %v4973 = vmul.f32 %v3836, %v4970
    %v4977 = vrot.slane %v4971, 2
    %v4978 = vrot.slane %v4972, 2
    %v4979 = vsel %vm928, %v4977, %v4978
    %v4980 = vrot.slane %v4973, 2
    %v4981 = vsel %vm928, %v4978, %v4980
    %4982 = vrot.lane.b32.xlu0 %v4979, 126
    %v4983 = vpop.permute.xlu0 %4982
    %4984 = vrot.lane.b32.xlu0 %v4981, 126
    %v4985 = vpop.permute.xlu0 %4984
    %v4988 = vadd.f32 %v4820, %v4983
    %v4989 = vadd.f32 %v4821, %v4985
    %s4990 = sld [smem:[#allocation4 + $0xd7]]
    %v4991 = vstv %s4990
    %v4992 = vmul.f32 %v3834, %v4991
    %v4993 = vmul.f32 %v3835, %v4991
    %v4994 = vmul.f32 %v3836, %v4991
    %v4998 = vrot.slane %v4992, 2
    %v4999 = vrot.slane %v4993, 2
    %v5000 = vsel %vm928, %v4998, %v4999
    %v5001 = vrot.slane %v4994, 2
    %v5002 = vsel %vm928, %v4999, %v5001
    %5003 = vrot.lane.b32.xlu0 %v5000, 126
    %v5004 = vpop.permute.xlu0 %5003
    %5005 = vrot.lane.b32.xlu0 %v5002, 126
    %v5006 = vpop.permute.xlu0 %5005
    %v5009 = vadd.f32 %v4841, %v5004
    %v5010 = vadd.f32 %v4842, %v5006
    %s5011 = sld [smem:[#allocation4 + $0xfb]]
    %v5012 = vstv %s5011
    %v5013 = vmul.f32 %v3834, %v5012
    %v5014 = vmul.f32 %v3835, %v5012
    %v5015 = vmul.f32 %v3836, %v5012
    %v5019 = vrot.slane %v5013, 2
    %v5020 = vrot.slane %v5014, 2
    %v5021 = vsel %vm928, %v5019, %v5020
    %v5022 = vrot.slane %v5015, 2
    %v5023 = vsel %vm928, %v5020, %v5022
    %5024 = vrot.lane.b32.xlu0 %v5021, 126
    %v5025 = vpop.permute.xlu0 %5024
    %5026 = vrot.lane.b32.xlu0 %v5023, 126
    %v5027 = vpop.permute.xlu0 %5026
    %v5030 = vadd.f32 %v4862, %v5025
    %v5031 = vadd.f32 %v4863, %v5027
    %s5032 = sld [smem:[#allocation4 + $0x11f]]
    %v5033 = vstv %s5032
    %v5034 = vmul.f32 %v3834, %v5033
    %v5035 = vmul.f32 %v3835, %v5033
    %v5036 = vmul.f32 %v3836, %v5033
    %v5040 = vrot.slane %v5034, 2
    %v5041 = vrot.slane %v5035, 2
    %v5042 = vsel %vm928, %v5040, %v5041
    %v5043 = vrot.slane %v5036, 2
    %v5044 = vsel %vm928, %v5041, %v5043
    %5045 = vrot.lane.b32.xlu0 %v5042, 126
    %v5046 = vpop.permute.xlu0 %5045
    %5047 = vrot.lane.b32.xlu0 %v5044, 126
    %v5048 = vpop.permute.xlu0 %5047
    %v5051 = vadd.f32 %v4883, %v5046
    %v5052 = vadd.f32 %v4884, %v5048
    %vm5053 = vcmask 130048
    %5054 = vst.msk [vmem:[#allocation8] sm:$0xff] %vm5053, %v4904
    %5055 = vst.msk [vmem:[#allocation8 + $0x8] sm:$0xff] %vm5053, %v4905
    %5058 = vrot.lane.b32.xlu0 %v4904, 110
    %v5059 = vpop.permute.xlu0 %5058
    %5060 = vrot.lane.b32.xlu0 %v4905, 110
    %v5061 = vpop.permute.xlu0 %5060
    %s5064 = scalar_lea.vmem [#allocation8], 128
    %5065 = vst.msk [vmem:[%s5064] sm:$0xff] %vm5053, %v5059
    %5066 = vst.msk [vmem:[%s5064 + $0x8] sm:$0xff] %vm5053, %v5061
    %s5067 = scalar_lea.vmem [#allocation8], 16
    %5068 = vst.msk [vmem:[%s5067] sm:$0xff] %vm5053, %v4925
    %5069 = vst.msk [vmem:[%s5067 + $0x8] sm:$0xff] %vm5053, %v4926
    %5072 = vrot.lane.b32.xlu0 %v4925, 110
    %v5073 = vpop.permute.xlu0 %5072
    %5074 = vrot.lane.b32.xlu0 %v4926, 110
    %v5075 = vpop.permute.xlu0 %5074
    %s5078 = scalar_lea.vmem [#allocation8], 144
    %5079 = vst.msk [vmem:[%s5078] sm:$0xff] %vm5053, %v5073
    %5080 = vst.msk [vmem:[%s5078 + $0x8] sm:$0xff] %vm5053, %v5075
    %s5081 = scalar_lea.vmem [#allocation8], 32
    %5082 = vst.msk [vmem:[%s5081] sm:$0xff] %vm5053, %v4946
    %5083 = vst.msk [vmem:[%s5081 + $0x8] sm:$0xff] %vm5053, %v4947
    %5086 = vrot.lane.b32.xlu0 %v4946, 110
    %v5087 = vpop.permute.xlu0 %5086
    %5088 = vrot.lane.b32.xlu0 %v4947, 110
    %v5089 = vpop.permute.xlu0 %5088
    %s5092 = scalar_lea.vmem [#allocation8], 160
    %5093 = vst.msk [vmem:[%s5092] sm:$0xff] %vm5053, %v5087
    %5094 = vst.msk [vmem:[%s5092 + $0x8] sm:$0xff] %vm5053, %v5089
    %s5095 = scalar_lea.vmem [#allocation8], 48
    %5096 = vst.msk [vmem:[%s5095] sm:$0xff] %vm5053, %v4967
    %5097 = vst.msk [vmem:[%s5095 + $0x8] sm:$0xff] %vm5053, %v4968
    %5100 = vrot.lane.b32.xlu0 %v4967, 110
    %v5101 = vpop.permute.xlu0 %5100
    %5102 = vrot.lane.b32.xlu0 %v4968, 110
    %v5103 = vpop.permute.xlu0 %5102
    %s5106 = scalar_lea.vmem [#allocation8], 176
    %5107 = vst.msk [vmem:[%s5106] sm:$0xff] %vm5053, %v5101
    %5108 = vst.msk [vmem:[%s5106 + $0x8] sm:$0xff] %vm5053, %v5103
    %s5109 = scalar_lea.vmem [#allocation8], 64
    %5110 = vst.msk [vmem:[%s5109] sm:$0xff] %vm5053, %v4988
    %5111 = vst.msk [vmem:[%s5109 + $0x8] sm:$0xff] %vm5053, %v4989
    %5114 = vrot.lane.b32.xlu0 %v4988, 110
    %v5115 = vpop.permute.xlu0 %5114
    %5116 = vrot.lane.b32.xlu0 %v4989, 110
    %v5117 = vpop.permute.xlu0 %5116
    %s5120 = scalar_lea.vmem [#allocation8], 192
    %5121 = vst.msk [vmem:[%s5120] sm:$0xff] %vm5053, %v5115
    %5122 = vst.msk [vmem:[%s5120 + $0x8] sm:$0xff] %vm5053, %v5117
    %s5123 = scalar_lea.vmem [#allocation8], 80
    %5124 = vst.msk [vmem:[%s5123] sm:$0xff] %vm5053, %v5009
    %5125 = vst.msk [vmem:[%s5123 + $0x8] sm:$0xff] %vm5053, %v5010
    %5128 = vrot.lane.b32.xlu0 %v5009, 110
    %v5129 = vpop.permute.xlu0 %5128
    %5130 = vrot.lane.b32.xlu0 %v5010, 110
    %v5131 = vpop.permute.xlu0 %5130
    %s5134 = scalar_lea.vmem [#allocation8], 208
    %5135 = vst.msk [vmem:[%s5134] sm:$0xff] %vm5053, %v5129
    %5136 = vst.msk [vmem:[%s5134 + $0x8] sm:$0xff] %vm5053, %v5131
    %s5137 = scalar_lea.vmem [#allocation8], 96
    %5138 = vst.msk [vmem:[%s5137] sm:$0xff] %vm5053, %v5030
    %5139 = vst.msk [vmem:[%s5137 + $0x8] sm:$0xff] %vm5053, %v5031
    %5142 = vrot.lane.b32.xlu0 %v5030, 110
    %v5143 = vpop.permute.xlu0 %5142
    %5144 = vrot.lane.b32.xlu0 %v5031, 110
    %v5145 = vpop.permute.xlu0 %5144
    %s5148 = scalar_lea.vmem [#allocation8], 224
    %5149 = vst.msk [vmem:[%s5148] sm:$0xff] %vm5053, %v5143
    %5150 = vst.msk [vmem:[%s5148 + $0x8] sm:$0xff] %vm5053, %v5145
    %s5151 = scalar_lea.vmem [#allocation8], 112
    %5152 = vst.msk [vmem:[%s5151] sm:$0xff] %vm5053, %v5051
    %5153 = vst.msk [vmem:[%s5151 + $0x8] sm:$0xff] %vm5053, %v5052
    %5156 = vrot.lane.b32.xlu0 %v5051, 110
    %v5157 = vpop.permute.xlu0 %5156
    %5158 = vrot.lane.b32.xlu0 %v5052, 110
    %v5159 = vpop.permute.xlu0 %5158
    %s5162 = scalar_lea.vmem [#allocation8], 240
    %5163 = vst.msk [vmem:[%s5162] sm:$0xff] %vm5053, %v5157
    %5164 = vst.msk [vmem:[%s5162 + $0x8] sm:$0xff] %vm5053, %v5159
    // Predicated region
    $region10: #{tpu_custom_call.1} parent=1 // pred_check
      _
    $region11: #{tpu_custom_call.1} parent=1 // pred_check_branch
      %5166 = sbr.rel (0) target = $region13
    $region12: #{tpu_custom_call.1} parent=1 // pred_region
      %s5168 = ssub.s32 4096, 4096
      %5169 = vsyncadd [#allocation7], %s5168
      %s5170 = sshll.u32 [#allocation8], 4
      %s5171 = int_to_ptr.vmem [resolvable:$true] %s5170
      %5176 = dma.vmem_to_hbm [thread:$0]  %s5171, 4096, %s2, [#allocation7], 128, 128, 8
    $region13: #{tpu_custom_call.1} parent=1 // pred_fallthru
      _
    // Predicated region
    $region14: #{tpu_custom_call.1} parent=1 // pred_check
      _
    $region15: #{tpu_custom_call.1} parent=1 // pred_check_branch
      %5178 = sbr.rel (0) target = $region17
    $region16: #{tpu_custom_call.1} parent=1 // pred_region
      %5179 = dma.done [#allocation7], 4096
    $region17: #{tpu_custom_call.1} parent=1 // pred_fallthru
      _
    %5180 = vsyncpa [#allocation6], 1
    %5181 = vsyncpa [#allocation7], 1

</llo_original>
